<compile_context>
chip_gen: v7x
topology: tpu7x:2x2x1
jax: 0.10.0
libtpu: 0.0.40
codegen_flags: <defaults>
</compile_context>

<pallas_src>
import functools

import jax
import jax.numpy as jnp
from jax.experimental import pallas as pl
from jax.experimental.pallas import tpu as pltpu

IN_FEATURES = 6000 * 2        # 12000
HIDDEN = 512
OUT_FEATURES = 2

K_PAD = 12032                 # 94 * 128 : smallest lane-aligned pad of 12000
TK = 6016                     # 47 * 128 : 2 reduction steps
N_BLOCKS = 2                  # hidden 512 -> 2 x 256 slabs ("parallel" -> v7x megacore)
TN = HIDDEN // N_BLOCKS       # 256


def _mlp1_kernel(x_ref, w1_ref, b1_ref, h_ref):
    """h[:, n-slab] = relu(x @ W1[:, n-slab] + b1[n-slab]), accumulated over K tiles."""
    k = pl.program_id(1)

    @pl.when(k == 0)
    def _():
        h_ref[...] = jnp.zeros_like(h_ref)

    # bf16 x bf16 on the MXU with f32 accumulation, straight into the resident output block.
    h_ref[...] += jnp.dot(x_ref[...], w1_ref[...],
                          preferred_element_type=jnp.float32)

    @pl.when(k == pl.num_programs(1) - 1)
    def _():
        h_ref[...] = jnp.maximum(h_ref[...] + b1_ref[...], 0.0)


def policy_logits(d_obs, w1_tiled, b1_row, w2, b2):
    """Forward of Policy.layers.  d_obs: (B, 12000) float; returns (B, 2) f32 logits."""
    B = d_obs.shape[0]
    b_pad = max(8, -(-B // 8) * 8)        # pad batch to a sublane multiple (trace-time int)

    # Zero-pad batch and K; d_obs is binary so the bf16 cast is exact.
    x_p = jnp.pad(d_obs.astype(jnp.bfloat16),
                  ((0, b_pad - B), (0, K_PAD - IN_FEATURES)))

    cost = pl.CostEstimate(
        flops=2 * b_pad * K_PAD * HIDDEN,
        transcendentals=0,
        bytes_accessed=(K_PAD * HIDDEN * 2          # W1 (bf16)
                        + b_pad * K_PAD * 2         # x   (bf16)
                        + b_pad * HIDDEN * 4        # hidden out (f32)
                        + HIDDEN * 4),              # b1
    )

    hidden = pl.pallas_call(
        _mlp1_kernel,
        out_shape=jax.ShapeDtypeStruct((b_pad, HIDDEN), jnp.float32),
        grid_spec=pltpu.PrefetchScalarGridSpec(
            num_scalar_prefetch=0,
            grid=(N_BLOCKS, K_PAD // TK),
            in_specs=[
                pl.BlockSpec((b_pad, TK), lambda n, k: (0, k)),        # x: K tile
                pl.BlockSpec((None, TK, TN), lambda n, k: (n, k, 0)),  # W1: contiguous slab
                pl.BlockSpec((1, TN), lambda n, k: (0, n)),            # b1 slice
            ],
            out_specs=pl.BlockSpec((b_pad, TN), lambda n, k: (0, n)),
        ),
        compiler_params=pltpu.CompilerParams(
            dimension_semantics=("parallel", "arbitrary")),
        cost_estimate=cost,
    )(x_p, w1_tiled, b1_row)

    # Tiny second layer in XLA (512x2): negligible; HIGHEST precision is free here.
    logits = jnp.dot(hidden, w2, precision=jax.lax.Precision.HIGHEST) + b2[None, :]
    return logits[:B]


@functools.partial(jax.jit, static_argnames=("deterministic",))
def policy_step(d_obs, params, key, deterministic=False):
    """Whole forward step on-device: logits, sampled action, action prob."""
    w1_tiled, b1_row, w2, b2 = params
    logits = policy_logits(d_obs, w1_tiled, b1_row, w2, b2)
    probs = jax.nn.softmax(logits[0])
    if deterministic:
        action = jnp.argmax(logits[0]).astype(jnp.int32)
        action_prob = jnp.asarray(1.0, jnp.float32)
    else:
        action = jax.random.categorical(key, logits[0]).astype(jnp.int32)
        action_prob = probs[action]
    return action, action_prob, logits


def policy_forward(d_obs, params, key, deterministic=False):
    """Mirrors Policy.forward: returns (action:int, action_prob:float, logits)."""
    action, action_prob, logits = policy_step(d_obs, params, key,
                                              deterministic=deterministic)
    # Single host sync only to match the PyTorch API's Python scalars.
    return int(action), float(action_prob), logits


def convert_action(action):
    return action + 2


def init_params(key):
    """PyTorch nn.Linear default init (U(-1/sqrt(fan_in), +1/sqrt(fan_in))).

    W1 is K-padded, pre-tiled to (N_BLOCKS, K_PAD, TN) and cast to bf16 ONCE here,
    so each call streams exactly one contiguous bf16 copy of W1 from HBM.
    """
    k1, k2, k3, k4 = jax.random.split(key, 4)
    bound1 = 1.0 / jnp.sqrt(IN_FEATURES)
    bound2 = 1.0 / jnp.sqrt(HIDDEN)
    w1 = jax.random.uniform(k1, (IN_FEATURES, HIDDEN), jnp.float32, -bound1, bound1)
    b1 = jax.random.uniform(k2, (HIDDEN,), jnp.float32, -bound1, bound1)
    w2 = jax.random.uniform(k3, (HIDDEN, OUT_FEATURES), jnp.float32, -bound2, bound2)
    b2 = jax.random.uniform(k4, (OUT_FEATURES,), jnp.float32, -bound2, bound2)

    w1_pad = jnp.zeros((K_PAD, HIDDEN), jnp.float32).at[:IN_FEATURES, :].set(w1)
    # [n, k, j] = w1_pad[k, n*TN + j]  -> contiguous per-slab weight stream.
    w1_tiled = (w1_pad.reshape(K_PAD, N_BLOCKS, TN)
                      .transpose(1, 0, 2)
                      .astype(jnp.bfloat16))
    b1_row = b1.reshape(1, HIDDEN)
    return w1_tiled, b1_row, w2, b2


if __name__ == "__main__":
    root = jax.random.PRNGKey(0)
    k_params, k_obs, k_sample = jax.random.split(root, 3)

    params = init_params(k_params)
    w1_tiled, b1_row, w2, b2 = params

    # Small batch; d_obs emulates pre_process output: concatenated binary frames in {0,1}.
    B = 2
    d_obs = (jax.random.uniform(k_obs, (B, IN_FEATURES)) > 0.9).astype(jnp.float32)

    # Pure-JAX reference using the same bf16-rounded W1 the kernel consumes.
    w1_full = (w1_tiled.astype(jnp.float32)
               .transpose(1, 0, 2)
               .reshape(K_PAD, HIDDEN)[:IN_FEATURES])
    x_ref = d_obs.astype(jnp.bfloat16).astype(jnp.float32)
    hidden_ref = jnp.maximum(
        jnp.dot(x_ref, w1_full, precision=jax.lax.Precision.HIGHEST) + b1_row, 0.0)
    ref = jnp.dot(hidden_ref, w2, precision=jax.lax.Precision.HIGHEST) + b2[None, :]

    action, action_prob, logits = policy_forward(d_obs, params, k_sample,
                                                 deterministic=False)
    logits = jax.block_until_ready(logits)

    assert logits.shape == (B, OUT_FEATURES)
    assert jnp.allclose(logits, ref, atol=1e-4, rtol=1e-4), "mismatch vs reference"
    assert action in (0, 1) and 0.0 <= action_prob <= 1.0

    print("KERNEL_OK")
</pallas_src>

<mosaic_0001>
module attributes {stable_mosaic.version = 11 : i64} {
  func.func @_mlp1_kernel(%arg0: i32, %arg1: i32, %arg2: memref<8x6016xbf16, #tpu.memory_space<vmem>>, %arg3: memref<1x6016x256xbf16, #tpu.memory_space<vmem>>, %arg4: memref<1x256xf32, #tpu.memory_space<vmem>>, %arg5: memref<8x256xf32, #tpu.memory_space<vmem>>) attributes {dimension_semantics = [#tpu.dimension_semantics<parallel>, #tpu.dimension_semantics<arbitrary>], iteration_bounds = array<i64: 2, 2>, scalar_prefetch = 0 : i64, scratch_operands = 0 : i64, tpu.core_type = #tpu.core_type<tc>, window_params = [{transform_indices = @transform_0, window_bounds = array<i64: 8, 6016>}, {transform_indices = @transform_1, window_bounds = array<i64: 1, 6016, 256>}, {transform_indices = @transform_2, window_bounds = array<i64: 1, 256>}, {transform_indices = @transform_3, window_bounds = array<i64: 8, 256>}]} {
    %c0_i32 = arith.constant 0 : i32
    %0 = arith.cmpi eq, %arg1, %c0_i32 : i32
    %1 = arith.extui %0 : i1 to i32
    %c0_i32_0 = arith.constant 0 : i32
    %2 = arith.cmpi ne, %1, %c0_i32_0 : i32
    scf.if %2 {
      %cst_10 = arith.constant 0.000000e+00 : f32
      %13 = vector.broadcast %cst_10 : f32 to vector<8x256xf32>
      %c0_11 = arith.constant 0 : index
      %c0_12 = arith.constant 0 : index
      %14 = vector.load %arg5[%c0_11, %c0_12] : memref<8x256xf32, #tpu.memory_space<vmem>>, vector<8x256xf32>
      tpu.vector_store %arg5[%c0_11, %c0_12], %13 {strides = array<i32>} : memref<8x256xf32, #tpu.memory_space<vmem>>, vector<8x256xf32>,
    } else {
    }
    %c0 = arith.constant 0 : index
    %c0_1 = arith.constant 0 : index
    %3 = vector.load %arg5[%c0, %c0_1] : memref<8x256xf32, #tpu.memory_space<vmem>>, vector<8x256xf32>
    %c0_2 = arith.constant 0 : index
    %c0_3 = arith.constant 0 : index
    %4 = vector.load %arg2[%c0_2, %c0_3] : memref<8x6016xbf16, #tpu.memory_space<vmem>>, vector<8x6016xbf16>
    %c0_4 = arith.constant 0 : index
    %c0_5 = arith.constant 0 : index
    %c0_6 = arith.constant 0 : index
    %5 = vector.load %arg3[%c0_4, %c0_5, %c0_6] : memref<1x6016x256xbf16, #tpu.memory_space<vmem>>, vector<1x6016x256xbf16>
    %6 = vector.shape_cast %5 : vector<1x6016x256xbf16> to vector<6016x256xbf16>
    %cst = arith.constant dense<0.000000e+00> : vector<8x256xf32>
    %7 = tpu.matmul %4, %6, %cst {dimension_numbers = #tpu.dot_dimension_numbers<[1], [0], [0], [1], [0, 0, 1, 1], [], []>} : vector<8x6016xbf16>, vector<6016x256xbf16>, vector<8x256xf32> -> vector<8x256xf32>
    %8 = arith.addf %3, %7 : vector<8x256xf32>
    %c0_7 = arith.constant 0 : index
    %c0_8 = arith.constant 0 : index
    %9 = vector.load %arg5[%c0_7, %c0_8] : memref<8x256xf32, #tpu.memory_space<vmem>>, vector<8x256xf32>
    tpu.vector_store %arg5[%c0_7, %c0_8], %8 {strides = array<i32>} : memref<8x256xf32, #tpu.memory_space<vmem>>, vector<8x256xf32>,
    %c1_i32 = arith.constant 1 : i32
    %10 = arith.cmpi eq, %arg1, %c1_i32 : i32
    %11 = arith.extui %10 : i1 to i32
    %c0_i32_9 = arith.constant 0 : i32
    %12 = arith.cmpi ne, %11, %c0_i32_9 : i32
    scf.if %12 {
      %c0_10 = arith.constant 0 : index
      %c0_11 = arith.constant 0 : index
      %13 = vector.load %arg5[%c0_10, %c0_11] : memref<8x256xf32, #tpu.memory_space<vmem>>, vector<8x256xf32>
      %c0_12 = arith.constant 0 : index
      %c0_13 = arith.constant 0 : index
      %14 = vector.load %arg4[%c0_12, %c0_13] : memref<1x256xf32, #tpu.memory_space<vmem>>, vector<1x256xf32>
      %15 = vector.broadcast %14 : vector<1x256xf32> to vector<8x256xf32>
      %16 = arith.addf %13, %15 : vector<8x256xf32>
      %cst_14 = arith.constant 0.000000e+00 : f32
      %17 = vector.broadcast %cst_14 : f32 to vector<8x256xf32>
      %18 = arith.maximumf %16, %17 : vector<8x256xf32>
      %c0_15 = arith.constant 0 : index
      %c0_16 = arith.constant 0 : index
      %19 = vector.load %arg5[%c0_15, %c0_16] : memref<8x256xf32, #tpu.memory_space<vmem>>, vector<8x256xf32>
      tpu.vector_store %arg5[%c0_15, %c0_16], %18 {strides = array<i32>} : memref<8x256xf32, #tpu.memory_space<vmem>>, vector<8x256xf32>,
    } else {
    }
    return
  }
  func.func @transform_0(%arg0: i32, %arg1: i32) -> (i32, i32) {
    %c0_i32 = arith.constant 0 : i32
    %c0_i32_0 = arith.constant 0 : i32
    return %c0_i32, %arg1 : i32, i32
  }
  func.func @transform_1(%arg0: i32, %arg1: i32) -> (i32, i32, i32) {
    %c0_i32 = arith.constant 0 : i32
    %c0_i32_0 = arith.constant 0 : i32
    return %arg0, %arg1, %c0_i32 : i32, i32, i32
  }
  func.func @transform_2(%arg0: i32, %arg1: i32) -> (i32, i32) {
    %c0_i32 = arith.constant 0 : i32
    %c0_i32_0 = arith.constant 0 : i32
    return %c0_i32, %arg0 : i32, i32
  }
  func.func @transform_3(%arg0: i32, %arg1: i32) -> (i32, i32) {
    %c0_i32 = arith.constant 0 : i32
    %c0_i32_0 = arith.constant 0 : i32
    return %c0_i32, %arg0 : i32, i32
  }
}

</mosaic_0001>

<llo_original>
// kernel: policy_step.1
$region0: #{policy_step.1}
  #allocation0 [shape = 'u32[]', space=smem, size = 0x4, offset = 0x4, fixed_abs, tag = 'smem constant byte address 0x4 - core index']
  #allocation1 [shape = 'u32[144,128]{1,0:T(1,128)}', space=vmem, size = 0x12000, scoped, tag = 'internal scratch']
  %s0 = inlined_call_operand.vmem [shape: bf16[8,12032], index: 0, kind: input, shape index: {}]
  %s1 = inlined_call_operand.hbm [shape: bf16[2,12032,256], index: 1, kind: input, shape index: {}]
  %s2 = inlined_call_operand.hbm [shape: f32[1,512], index: 2, kind: input, shape index: {}]
  %s3 = inlined_call_operand.vmem [shape: f32[8,512], index: 3, kind: output, shape index: {}]
  %s4 = sld [smem:[#allocation0]]
  $region61: #{policy_step.1} parent=0
    _
  %s6 = ssub.s32 1, %s4
  %s7 = scalar_select 0, %s6, %s4
  $region1: #{policy_step.1} parent=0
    #allocation2 [shape = 'u8[6160384]{0}', space=vmem, size = 0x5e0000, scoped, tag = 'input window, operand 1']
    #allocation3 [shape = 's32[2]{0}', space=sflag, size = 0x8, scoped, tag = 'scoped memory for policy_step.1']
    #allocation4 [shape = 'u8[2048]{0}', space=vmem, size = 0x800, scoped, tag = 'input window, operand 2']
    #allocation5 [shape = 's32[2]{0}', space=sflag, size = 0x8, scoped, tag = 'scoped memory for policy_step.1']
    %8 = vsyncpa [#allocation3], 0
    %s9 = scalar_lea.sflag [#allocation3], 1
    %10 = vsyncpa %s9, 0
    %11 = vsyncpa [#allocation5], 0
    %s12 = scalar_lea.sflag [#allocation5], 1
    %13 = vsyncpa %s12, 0
    loop: start=0, step=1, limit=6
    $region2: #{policy_step.1} parent=1 // loop_pre_header
      _
    $region3: #{policy_step.1} parent=1 // loop_header
      %s15 = sphi 0, %s19
      %p16 = scmp.ge.s32.totalorder %s15, 6
      %s22 = sphi 0, %s34
      %s23 = sphi 0, %s30
      %s24 = sphi 0, %s22
      %s25 = sphi 0, %s23
      %s26 = sphi 0, %s24
      %s27 = sphi 0, %s25
      %s37 = sphi 0, %s39
      %s40 = sphi 0, %s37
      %s41 = sphi 0, %s40
      %s57 = sphi 0, %s41
      %s65 = sphi 0, %s67
      %s68 = sphi 0, %s65
      %s69 = sphi 0, %s68
      %s85 = sphi 0, %s69
      %s91 = sphi 0, %s93
      %s94 = sphi 0, %s91
      %s95 = sphi 0, %s94
      %s111 = sphi 0, %s95
      %s117 = sphi 0, %s119
      %s120 = sphi 0, %s117
      %s121 = sphi 0, %s120
      %s137 = sphi 0, %s121
    $region4: #{policy_step.1} parent=1 // loop_header_branch
      %18 = sbr.rel (%p16) target = $region8
    $region5: #{policy_step.1} parent=1 // loop_body
      %s20 = ssub.s32 %s15, 1
      %s21 = ssub.s32 %s15, 2
      %s28 = sadd.s32 1, %s23
      %p29 = scmp.ge.s32.totalorder %s28, 2
      %s30 = scalar_select %p29, 0, %s28
      %s31 = sadd.s32 1, %s22
      %s32 = scalar_select %p29, %s31, %s22
      %p33 = scmp.ge.s32.totalorder %s32, 2
      %s34 = scalar_select %p33, 0, %s32
      %s35 = ssub.s32 %s23, %s30
      %p36 = scmp.eq.s32.totalorder %s35, 0
      %s38 = sadd.s32 %s37, 1
      %s39 = scalar_select %p36, %s37, %s38
      %p42 = pneg %p36
      %p43 = scmp.eq.s32.totalorder %s15, 3
      %p44 = por %p42, %p43
      %p45 = scmp.ne.s32.totalorder %s37, %s40
      %p46 = scmp.eq.s32.totalorder %s15, 0
      %p47 = por %p45, %p46
      %p48 = scmp.ne.s32.totalorder %s37, %s40
      %p49 = scmp.eq.s32.totalorder %s20, 3
      %p50 = por %p48, %p49
      %p51 = scmp.ne.s32.totalorder %s40, %s41
      %p52 = scmp.eq.s32.totalorder %s20, 0
      %p53 = por %p51, %p52
      %p54 = scmp.ne.s32.totalorder %s40, %s41
      %p55 = scmp.eq.s32.totalorder %s21, 3
      %p56 = por %p54, %p55
      %p58 = scmp.ne.s32.totalorder %s41, %s57
      %p59 = scmp.eq.s32.totalorder %s21, 0
      %p60 = por %p58, %p59
      %s61 = ssub.s32 %s22, %s34
      %s62 = ssub.s32 %s23, %s30
      %s63 = sor.u32 %s61, %s62
      %p64 = scmp.eq.s32.totalorder %s63, 0
      %s66 = sadd.s32 %s65, 1
      %s67 = scalar_select %p64, %s65, %s66
      %p70 = pneg %p64
      %p71 = scmp.eq.s32.totalorder %s15, 3
      %p72 = por %p70, %p71
      %p73 = scmp.ne.s32.totalorder %s65, %s68
      %p74 = scmp.eq.s32.totalorder %s15, 0
      %p75 = por %p73, %p74
      %p76 = scmp.ne.s32.totalorder %s65, %s68
      %p77 = scmp.eq.s32.totalorder %s20, 3
      %p78 = por %p76, %p77
      %p79 = scmp.ne.s32.totalorder %s68, %s69
      %p80 = scmp.eq.s32.totalorder %s20, 0
      %p81 = por %p79, %p80
      %p82 = scmp.ne.s32.totalorder %s68, %s69
      %p83 = scmp.eq.s32.totalorder %s21, 3
      %p84 = por %p82, %p83
      %p86 = scmp.ne.s32.totalorder %s69, %s85
      %p87 = scmp.eq.s32.totalorder %s21, 0
      %p88 = por %p86, %p87
      %s89 = ssub.s32 %s22, %s34
      %p90 = scmp.eq.s32.totalorder %s89, 0
      %s92 = sadd.s32 %s91, 1
      %s93 = scalar_select %p90, %s91, %s92
      %p96 = pneg %p90
      %p97 = scmp.eq.s32.totalorder %s15, 3
      %p98 = por %p96, %p97
      %p99 = scmp.ne.s32.totalorder %s91, %s94
      %p100 = scmp.eq.s32.totalorder %s15, 0
      %p101 = por %p99, %p100
      %p102 = scmp.ne.s32.totalorder %s91, %s94
      %p103 = scmp.eq.s32.totalorder %s20, 3
      %p104 = por %p102, %p103
      %p105 = scmp.ne.s32.totalorder %s94, %s95
      %p106 = scmp.eq.s32.totalorder %s20, 0
      %p107 = por %p105, %p106
      %p108 = scmp.ne.s32.totalorder %s94, %s95
      %p109 = scmp.eq.s32.totalorder %s21, 3
      %p110 = por %p108, %p109
      %p112 = scmp.ne.s32.totalorder %s95, %s111
      %p113 = scmp.eq.s32.totalorder %s21, 0
      %p114 = por %p112, %p113
      %s115 = ssub.s32 %s22, %s34
      %p116 = scmp.eq.s32.totalorder %s115, 0
      %s118 = sadd.s32 %s117, 1
      %s119 = scalar_select %p116, %s117, %s118
      %p122 = pneg %p116
      %p123 = scmp.eq.s32.totalorder %s15, 3
      %p124 = por %p122, %p123
      %p125 = scmp.ne.s32.totalorder %s117, %s120
      %p126 = scmp.eq.s32.totalorder %s15, 0
      %p127 = por %p125, %p126
      %p128 = scmp.ne.s32.totalorder %s117, %s120
      %p129 = scmp.eq.s32.totalorder %s20, 3
      %p130 = por %p128, %p129
      %p131 = scmp.ne.s32.totalorder %s120, %s121
      %p132 = scmp.eq.s32.totalorder %s20, 0
      %p133 = por %p131, %p132
      %p134 = scmp.ne.s32.totalorder %s120, %s121
      %p135 = scmp.eq.s32.totalorder %s21, 3
      %p136 = por %p134, %p135
      %p138 = scmp.ne.s32.totalorder %s121, %s137
      %p139 = scmp.eq.s32.totalorder %s21, 0
      %p140 = por %p138, %p139
      %p141 = scmp.le.s32.totalorder 1, %s15
      %p142 = scmp.lt.s32.totalorder %s15, 5
      %p143 = pnand %p141, %p142
      %p144 = pneg %p143
      // Predicated region
      $region9: #{policy_step.1} parent=5 // pred_check
        _
      $region10: #{policy_step.1} parent=5 // pred_check_branch
        %146 = sbr.rel (%p143) target = $region12
      $region11: #{policy_step.1} parent=5 // pred_region
        %s147 = ssub.s32 %s15, 1
      $region12: #{policy_step.1} parent=5 // pred_fallthru
        _
      %p148 = scmp.lt.s32.totalorder %s15, 4
      // Predicated region
      $region13: #{policy_step.1} parent=5 // pred_check
        %p149 = pneg %p148
      $region14: #{policy_step.1} parent=5 // pred_check_branch
        %151 = sbr.rel (%p149) target = $region16
      $region15: #{policy_step.1} parent=5 // pred_region
        // Predicated region
        $region17: #{policy_step.1} parent=15 // pred_check
          %p152 = pneg %p47
        $region18: #{policy_step.1} parent=15 // pred_check_branch
          %154 = sbr.rel (%p152) target = $region20
        $region19: #{policy_step.1} parent=15 // pred_region
          %s155 = smul.u32 47, %s23
          %p156 = scmp.lt.s32.totalorder %s155, 93
          %s157 = scalar_select %p156, %s155, 93
          %s158 = smul.addr %s157, 4
          %s159 = scalar_lea.vmem %s0, %s158
          %s160 = smul.u32 47, %s23
        $region20: #{policy_step.1} parent=15 // pred_fallthru
          _
        // Predicated region
        $region21: #{policy_step.1} parent=15 // pred_check
          %p161 = pneg %p75
        $region22: #{policy_step.1} parent=15 // pred_check_branch
          %163 = sbr.rel (%p161) target = $region24
        $region23: #{policy_step.1} parent=15 // pred_region
          %s164 = sand.u32 %s65, 1
          %s165 = scalar_lea.sflag [#allocation3], %s164
          %s166 = sand.u32 %s65, 1
          %s167 = smul.addr %s166, 6016
          %s168 = scalar_lea.vmem [#allocation2], %s167
          %s169 = smul.u32 752, %s23
          %s171 = ssub.s32 96256, 96256
          %172 = vsyncadd %s165, %s171
          %s173 = smul.addr %s169, 2
          %s174 = smul.addr %s22, 3008
          %s175 = sadd.s32 %s173, %s174
          %s176 = smul.addr %s175, 64
          %s177 = scalar_lea.hbm %s1, %s176
          %s178 = sshll.u32 %s168, 4
          %s179 = int_to_ptr.vmem [resolvable:$true] %s178
          %184 = dma.hbm_to_vmem [thread:$0]  %s177, 96256, %s179, %s165, 128, 128, 8
        $region24: #{policy_step.1} parent=15 // pred_fallthru
          _
        // Predicated region
        $region25: #{policy_step.1} parent=15 // pred_check
          %p185 = pneg %p101
        $region26: #{policy_step.1} parent=15 // pred_check_branch
          %187 = sbr.rel (%p185) target = $region28
        $region27: #{policy_step.1} parent=15 // pred_region
          %s188 = sand.u32 %s91, 1
          %s189 = scalar_lea.sflag [#allocation5], %s188
          %s190 = sand.u32 %s91, 1
          %s191 = smul.addr %s190, 2
          %s192 = scalar_lea.vmem [#allocation4], %s191
          %s193 = smul.u32 2, %s22
          %s195 = ssub.s32 32, 32
          %196 = vsyncadd %s189, %s195
          %s197 = smul.addr %s193, 16
          %s198 = scalar_lea.hbm %s2, %s197
          %s200 = sshll.u32 %s192, 4
          %s201 = int_to_ptr.vmem [resolvable:$true] %s200
          %203 = dma.hbm_to_vmem [thread:$0]  %s198, 32, %s201, %s189
        $region28: #{policy_step.1} parent=15 // pred_fallthru
          _
      $region16: #{policy_step.1} parent=5 // pred_fallthru
        _
      %p204 = scmp.le.s32.totalorder 1, %s15
      %p205 = scmp.lt.s32.totalorder %s15, 5
      %p206 = pnand %p204, %p205
      %p207 = pneg %p206
      // Predicated region
      $region29: #{policy_step.1} parent=5 // pred_check
        _
      $region30: #{policy_step.1} parent=5 // pred_check_branch
        %209 = sbr.rel (%p206) target = $region32
      $region31: #{policy_step.1} parent=5 // pred_region
        %s210 = ssub.s32 %s15, 1
        %s211 = sand.u32 %s68, 1
        %s212 = scalar_lea.sflag [#allocation3], %s211
        %s213 = sand.u32 %s68, 1
        %s214 = smul.addr %s213, 6016
        %s215 = scalar_lea.vmem [#allocation2], %s214
        // Predicated region
        $region33: #{policy_step.1} parent=31 // pred_check
          %p216 = pneg %p81
        $region34: #{policy_step.1} parent=31 // pred_check_branch
          %218 = sbr.rel (%p216) target = $region36
        $region35: #{policy_step.1} parent=31 // pred_region
          %219 = dma.done %s212, 96256
        $region36: #{policy_step.1} parent=31 // pred_fallthru
          _
        %s220 = sand.u32 %s94, 1
        %s221 = scalar_lea.sflag [#allocation5], %s220
        %s222 = sand.u32 %s94, 1
        %s223 = smul.addr %s222, 2
        %s224 = scalar_lea.vmem [#allocation4], %s223
        // Predicated region
        $region37: #{policy_step.1} parent=31 // pred_check
          %p225 = pneg %p107
        $region38: #{policy_step.1} parent=31 // pred_check_branch
          %227 = sbr.rel (%p225) target = $region40
        $region39: #{policy_step.1} parent=31 // pred_region
          %228 = dma.done %s221, 32
        $region40: #{policy_step.1} parent=31 // pred_fallthru
          _
        %s229 = smul.u32 47, %s25
        %p230 = scmp.lt.s32.totalorder %s229, 93
        %s231 = scalar_select %p230, %s229, 93
        %s232 = smul.addr %s231, 4
        %s233 = scalar_lea.vmem %s0, %s232
        %p234 = pneg %p53
        %p235 = pneg %p50
        %s236 = sand.u32 %s68, 1
        %s237 = scalar_lea.sflag [#allocation3], %s236
        %s238 = sand.u32 %s68, 1
        %s239 = smul.addr %s238, 6016
        %s240 = scalar_lea.vmem [#allocation2], %s239
        %p241 = pneg %p81
        %p242 = pneg %p78
        %s243 = sand.u32 %s94, 1
        %s244 = scalar_lea.sflag [#allocation5], %s243
        %s245 = sand.u32 %s94, 1
        %s246 = smul.addr %s245, 2
        %s247 = scalar_lea.vmem [#allocation4], %s246
        %p248 = pneg %p107
        %p249 = pneg %p104
        %p250 = pneg %p133
        %p251 = pneg %p130
        %s252 = smul.u32 2, %s24
        %p253 = scmp.lt.s32.totalorder %s252, 3
        %s254 = scalar_select %p253, %s252, 3
        %s255 = smul.addr %s254, 8
        %s256 = scalar_lea.vmem %s3, %s255
        %s257 = smul.u32 47, %s25
        %p258 = scmp.lt.s32.totalorder %s257, 93
        %s259 = scalar_select %p258, %s257, 93
        %s260 = smul.addr %s259, 4
        %s261 = scalar_lea.vmem %s0, %s260
        %s262 = smul.u32 47, %s25
        %s263 = smul.u32 752, %s25
        %s264 = smul.u32 2, %s24
        %s265 = smul.u32 2, %s24
        %p266 = scmp.lt.s32.totalorder %s265, 3
        %s267 = scalar_select %p266, %s265, 3
        %s268 = smul.addr %s267, 8
        %s269 = scalar_lea.vmem %s3, %s268
        %s270 = smul.u32 2, %s24
        %p272 = scmp.eq.s32.totalorder %s25, 0
        // Predicated region
        $region41: #{policy_step.1} parent=31 // pred_check
          %p273 = pneg %p272
        $region42: #{policy_step.1} parent=31 // pred_check_branch
          %275 = sbr.rel (%p273) target = $region44
        $region43: #{policy_step.1} parent=31 // pred_region
          %276 = vst [vmem:[%s269] sm:$0xff] 0.0
          %277 = vst [vmem:[%s269 + $0x8] sm:$0xff] 0.0
        $region44: #{policy_step.1} parent=31 // pred_fallthru
          _
        %v278 = vld [vmem:[%s269] sm:$0xff]
        %v279 = vld [vmem:[%s269 + $0x8] sm:$0xff]
        %v280 = vld [vmem:[%s261] sm:$0xff]
        %v281 = vld [vmem:[%s261 + $0x8] sm:$0xff]
        %v282 = vld [vmem:[%s261 + $0x10] sm:$0xff]
        %v283 = vld [vmem:[%s261 + $0x18] sm:$0xff]
        %v284 = vld [vmem:[%s261 + $0x20] sm:$0xff]
        %v285 = vld [vmem:[%s261 + $0x28] sm:$0xff]
        %v286 = vld [vmem:[%s261 + $0x30] sm:$0xff]
        %v287 = vld [vmem:[%s261 + $0x38] sm:$0xff]
        %v288 = vld [vmem:[%s261 + $0x40] sm:$0xff]
        %v289 = vld [vmem:[%s261 + $0x48] sm:$0xff]
        %v290 = vld [vmem:[%s261 + $0x50] sm:$0xff]
        %v291 = vld [vmem:[%s261 + $0x58] sm:$0xff]
        %v292 = vld [vmem:[%s261 + $0x60] sm:$0xff]
        %v293 = vld [vmem:[%s261 + $0x68] sm:$0xff]
        %v294 = vld [vmem:[%s261 + $0x70] sm:$0xff]
        %v295 = vld [vmem:[%s261 + $0x78] sm:$0xff]
        %v296 = vld [vmem:[%s261 + $0x80] sm:$0xff]
        %v297 = vld [vmem:[%s261 + $0x88] sm:$0xff]
        %v298 = vld [vmem:[%s261 + $0x90] sm:$0xff]
        %v299 = vld [vmem:[%s261 + $0x98] sm:$0xff]
        %v300 = vld [vmem:[%s261 + $0xa0] sm:$0xff]
        %v301 = vld [vmem:[%s261 + $0xa8] sm:$0xff]
        %v302 = vld [vmem:[%s261 + $0xb0] sm:$0xff]
        %v303 = vld [vmem:[%s261 + $0xb8] sm:$0xf]
        %v304 = vld [vmem:[%s215] sm:$0xff]
        %v305 = vld [vmem:[%s215 + $0x8] sm:$0xff]
        %v306 = vld [vmem:[%s215 + $0x10] sm:$0xff]
        %v307 = vld [vmem:[%s215 + $0x18] sm:$0xff]
        %v308 = vld [vmem:[%s215 + $0x20] sm:$0xff]
        %v309 = vld [vmem:[%s215 + $0x28] sm:$0xff]
        %v310 = vld [vmem:[%s215 + $0x30] sm:$0xff]
        %v311 = vld [vmem:[%s215 + $0x38] sm:$0xff]
        %v312 = vld [vmem:[%s215 + $0x40] sm:$0xff]
        %v313 = vld [vmem:[%s215 + $0x48] sm:$0xff]
        %v314 = vld [vmem:[%s215 + $0x50] sm:$0xff]
        %v315 = vld [vmem:[%s215 + $0x58] sm:$0xff]
        %v316 = vld [vmem:[%s215 + $0x60] sm:$0xff]
        %v317 = vld [vmem:[%s215 + $0x68] sm:$0xff]
        %v318 = vld [vmem:[%s215 + $0x70] sm:$0xff]
        %v319 = vld [vmem:[%s215 + $0x78] sm:$0xff]
        %v320 = vld [vmem:[%s215 + $0x80] sm:$0xff]
        %v321 = vld [vmem:[%s215 + $0x88] sm:$0xff]
        %v322 = vld [vmem:[%s215 + $0x90] sm:$0xff]
        %v323 = vld [vmem:[%s215 + $0x98] sm:$0xff]
        %v324 = vld [vmem:[%s215 + $0xa0] sm:$0xff]
        %v325 = vld [vmem:[%s215 + $0xa8] sm:$0xff]
        %v326 = vld [vmem:[%s215 + $0xb0] sm:$0xff]
        %v327 = vld [vmem:[%s215 + $0xb8] sm:$0xff]
        %v328 = vld [vmem:[%s215 + $0xc0] sm:$0xff]
        %v329 = vld [vmem:[%s215 + $0xc8] sm:$0xff]
        %v330 = vld [vmem:[%s215 + $0xd0] sm:$0xff]
        %v331 = vld [vmem:[%s215 + $0xd8] sm:$0xff]
        %v332 = vld [vmem:[%s215 + $0xe0] sm:$0xff]
        %v333 = vld [vmem:[%s215 + $0xe8] sm:$0xff]
        %v334 = vld [vmem:[%s215 + $0xf0] sm:$0xff]
        %v335 = vld [vmem:[%s215 + $0xf8] sm:$0xff]
        %v336 = vld [vmem:[%s215 + $0x100] sm:$0xff]
        %v337 = vld [vmem:[%s215 + $0x108] sm:$0xff]
        %v338 = vld [vmem:[%s215 + $0x110] sm:$0xff]
        %v339 = vld [vmem:[%s215 + $0x118] sm:$0xff]
        %v340 = vld [vmem:[%s215 + $0x120] sm:$0xff]
        %v341 = vld [vmem:[%s215 + $0x128] sm:$0xff]
        %v342 = vld [vmem:[%s215 + $0x130] sm:$0xff]
        %v343 = vld [vmem:[%s215 + $0x138] sm:$0xff]
        %v344 = vld [vmem:[%s215 + $0x140] sm:$0xff]
        %v345 = vld [vmem:[%s215 + $0x148] sm:$0xff]
        %v346 = vld [vmem:[%s215 + $0x150] sm:$0xff]
        %v347 = vld [vmem:[%s215 + $0x158] sm:$0xff]
        %v348 = vld [vmem:[%s215 + $0x160] sm:$0xff]
        %v349 = vld [vmem:[%s215 + $0x168] sm:$0xff]
        %v350 = vld [vmem:[%s215 + $0x170] sm:$0xff]
        %v351 = vld [vmem:[%s215 + $0x178] sm:$0xff]
        %v352 = vld [vmem:[%s215 + $0x180] sm:$0xff]
        %v353 = vld [vmem:[%s215 + $0x188] sm:$0xff]
        %v354 = vld [vmem:[%s215 + $0x190] sm:$0xff]
        %v355 = vld [vmem:[%s215 + $0x198] sm:$0xff]
        %v356 = vld [vmem:[%s215 + $0x1a0] sm:$0xff]
        %v357 = vld [vmem:[%s215 + $0x1a8] sm:$0xff]
        %v358 = vld [vmem:[%s215 + $0x1b0] sm:$0xff]
        %v359 = vld [vmem:[%s215 + $0x1b8] sm:$0xff]
        %v360 = vld [vmem:[%s215 + $0x1c0] sm:$0xff]
        %v361 = vld [vmem:[%s215 + $0x1c8] sm:$0xff]
        %v362 = vld [vmem:[%s215 + $0x1d0] sm:$0xff]
        %v363 = vld [vmem:[%s215 + $0x1d8] sm:$0xff]
        %v364 = vld [vmem:[%s215 + $0x1e0] sm:$0xff]
        %v365 = vld [vmem:[%s215 + $0x1e8] sm:$0xff]
        %v366 = vld [vmem:[%s215 + $0x1f0] sm:$0xff]
        %v367 = vld [vmem:[%s215 + $0x1f8] sm:$0xff]
        %v368 = vld [vmem:[%s215 + $0x200] sm:$0xff]
        %v369 = vld [vmem:[%s215 + $0x208] sm:$0xff]
        %v370 = vld [vmem:[%s215 + $0x210] sm:$0xff]
        %v371 = vld [vmem:[%s215 + $0x218] sm:$0xff]
        %v372 = vld [vmem:[%s215 + $0x220] sm:$0xff]
        %v373 = vld [vmem:[%s215 + $0x228] sm:$0xff]
        %v374 = vld [vmem:[%s215 + $0x230] sm:$0xff]
        %v375 = vld [vmem:[%s215 + $0x238] sm:$0xff]
        %v376 = vld [vmem:[%s215 + $0x240] sm:$0xff]
        %v377 = vld [vmem:[%s215 + $0x248] sm:$0xff]
        %v378 = vld [vmem:[%s215 + $0x250] sm:$0xff]
        %v379 = vld [vmem:[%s215 + $0x258] sm:$0xff]
        %v380 = vld [vmem:[%s215 + $0x260] sm:$0xff]
        %v381 = vld [vmem:[%s215 + $0x268] sm:$0xff]
        %v382 = vld [vmem:[%s215 + $0x270] sm:$0xff]
        %v383 = vld [vmem:[%s215 + $0x278] sm:$0xff]
        %v384 = vld [vmem:[%s215 + $0x280] sm:$0xff]
        %v385 = vld [vmem:[%s215 + $0x288] sm:$0xff]
        %v386 = vld [vmem:[%s215 + $0x290] sm:$0xff]
        %v387 = vld [vmem:[%s215 + $0x298] sm:$0xff]
        %v388 = vld [vmem:[%s215 + $0x2a0] sm:$0xff]
        %v389 = vld [vmem:[%s215 + $0x2a8] sm:$0xff]
        %v390 = vld [vmem:[%s215 + $0x2b0] sm:$0xff]
        %v391 = vld [vmem:[%s215 + $0x2b8] sm:$0xff]
        %v392 = vld [vmem:[%s215 + $0x2c0] sm:$0xff]
        %v393 = vld [vmem:[%s215 + $0x2c8] sm:$0xff]
        %v394 = vld [vmem:[%s215 + $0x2d0] sm:$0xff]
        %v395 = vld [vmem:[%s215 + $0x2d8] sm:$0xff]
        %v396 = vld [vmem:[%s215 + $0x2e0] sm:$0xff]
        %v397 = vld [vmem:[%s215 + $0x2e8] sm:$0xff]
        %v398 = vld [vmem:[%s215 + $0x2f0] sm:$0xff]
        %v399 = vld [vmem:[%s215 + $0x2f8] sm:$0xff]
        %v400 = vld [vmem:[%s215 + $0x300] sm:$0xff]
        %v401 = vld [vmem:[%s215 + $0x308] sm:$0xff]
        %v402 = vld [vmem:[%s215 + $0x310] sm:$0xff]
        %v403 = vld [vmem:[%s215 + $0x318] sm:$0xff]
        %v404 = vld [vmem:[%s215 + $0x320] sm:$0xff]
        %v405 = vld [vmem:[%s215 + $0x328] sm:$0xff]
        %v406 = vld [vmem:[%s215 + $0x330] sm:$0xff]
        %v407 = vld [vmem:[%s215 + $0x338] sm:$0xff]
        %v408 = vld [vmem:[%s215 + $0x340] sm:$0xff]
        %v409 = vld [vmem:[%s215 + $0x348] sm:$0xff]
        %v410 = vld [vmem:[%s215 + $0x350] sm:$0xff]
        %v411 = vld [vmem:[%s215 + $0x358] sm:$0xff]
        %v412 = vld [vmem:[%s215 + $0x360] sm:$0xff]
        %v413 = vld [vmem:[%s215 + $0x368] sm:$0xff]
        %v414 = vld [vmem:[%s215 + $0x370] sm:$0xff]
        %v415 = vld [vmem:[%s215 + $0x378] sm:$0xff]
        %v416 = vld [vmem:[%s215 + $0x380] sm:$0xff]
        %v417 = vld [vmem:[%s215 + $0x388] sm:$0xff]
        %v418 = vld [vmem:[%s215 + $0x390] sm:$0xff]
        %v419 = vld [vmem:[%s215 + $0x398] sm:$0xff]
        %v420 = vld [vmem:[%s215 + $0x3a0] sm:$0xff]
        %v421 = vld [vmem:[%s215 + $0x3a8] sm:$0xff]
        %v422 = vld [vmem:[%s215 + $0x3b0] sm:$0xff]
        %v423 = vld [vmem:[%s215 + $0x3b8] sm:$0xff]
        %v424 = vld [vmem:[%s215 + $0x3c0] sm:$0xff]
        %v425 = vld [vmem:[%s215 + $0x3c8] sm:$0xff]
        %v426 = vld [vmem:[%s215 + $0x3d0] sm:$0xff]
        %v427 = vld [vmem:[%s215 + $0x3d8] sm:$0xff]
        %v428 = vld [vmem:[%s215 + $0x3e0] sm:$0xff]
        %v429 = vld [vmem:[%s215 + $0x3e8] sm:$0xff]
        %v430 = vld [vmem:[%s215 + $0x3f0] sm:$0xff]
        %v431 = vld [vmem:[%s215 + $0x3f8] sm:$0xff]
        %v432 = vld [vmem:[%s215 + $0x400] sm:$0xff]
        %v433 = vld [vmem:[%s215 + $0x408] sm:$0xff]
        %v434 = vld [vmem:[%s215 + $0x410] sm:$0xff]
        %v435 = vld [vmem:[%s215 + $0x418] sm:$0xff]
        %v436 = vld [vmem:[%s215 + $0x420] sm:$0xff]
        %v437 = vld [vmem:[%s215 + $0x428] sm:$0xff]
        %v438 = vld [vmem:[%s215 + $0x430] sm:$0xff]
        %v439 = vld [vmem:[%s215 + $0x438] sm:$0xff]
        %v440 = vld [vmem:[%s215 + $0x440] sm:$0xff]
        %v441 = vld [vmem:[%s215 + $0x448] sm:$0xff]
        %v442 = vld [vmem:[%s215 + $0x450] sm:$0xff]
        %v443 = vld [vmem:[%s215 + $0x458] sm:$0xff]
        %v444 = vld [vmem:[%s215 + $0x460] sm:$0xff]
        %v445 = vld [vmem:[%s215 + $0x468] sm:$0xff]
        %v446 = vld [vmem:[%s215 + $0x470] sm:$0xff]
        %v447 = vld [vmem:[%s215 + $0x478] sm:$0xff]
        %v448 = vld [vmem:[%s215 + $0x480] sm:$0xff]
        %v449 = vld [vmem:[%s215 + $0x488] sm:$0xff]
        %v450 = vld [vmem:[%s215 + $0x490] sm:$0xff]
        %v451 = vld [vmem:[%s215 + $0x498] sm:$0xff]
        %v452 = vld [vmem:[%s215 + $0x4a0] sm:$0xff]
        %v453 = vld [vmem:[%s215 + $0x4a8] sm:$0xff]
        %v454 = vld [vmem:[%s215 + $0x4b0] sm:$0xff]
        %v455 = vld [vmem:[%s215 + $0x4b8] sm:$0xff]
        %v456 = vld [vmem:[%s215 + $0x4c0] sm:$0xff]
        %v457 = vld [vmem:[%s215 + $0x4c8] sm:$0xff]
        %v458 = vld [vmem:[%s215 + $0x4d0] sm:$0xff]
        %v459 = vld [vmem:[%s215 + $0x4d8] sm:$0xff]
        %v460 = vld [vmem:[%s215 + $0x4e0] sm:$0xff]
        %v461 = vld [vmem:[%s215 + $0x4e8] sm:$0xff]
        %v462 = vld [vmem:[%s215 + $0x4f0] sm:$0xff]
        %v463 = vld [vmem:[%s215 + $0x4f8] sm:$0xff]
        %v464 = vld [vmem:[%s215 + $0x500] sm:$0xff]
        %v465 = vld [vmem:[%s215 + $0x508] sm:$0xff]
        %v466 = vld [vmem:[%s215 + $0x510] sm:$0xff]
        %v467 = vld [vmem:[%s215 + $0x518] sm:$0xff]
        %v468 = vld [vmem:[%s215 + $0x520] sm:$0xff]
        %v469 = vld [vmem:[%s215 + $0x528] sm:$0xff]
        %v470 = vld [vmem:[%s215 + $0x530] sm:$0xff]
        %v471 = vld [vmem:[%s215 + $0x538] sm:$0xff]
        %v472 = vld [vmem:[%s215 + $0x540] sm:$0xff]
        %v473 = vld [vmem:[%s215 + $0x548] sm:$0xff]
        %v474 = vld [vmem:[%s215 + $0x550] sm:$0xff]
        %v475 = vld [vmem:[%s215 + $0x558] sm:$0xff]
        %v476 = vld [vmem:[%s215 + $0x560] sm:$0xff]
        %v477 = vld [vmem:[%s215 + $0x568] sm:$0xff]
        %v478 = vld [vmem:[%s215 + $0x570] sm:$0xff]
        %v479 = vld [vmem:[%s215 + $0x578] sm:$0xff]
        %v480 = vld [vmem:[%s215 + $0x580] sm:$0xff]
        %v481 = vld [vmem:[%s215 + $0x588] sm:$0xff]
        %v482 = vld [vmem:[%s215 + $0x590] sm:$0xff]
        %v483 = vld [vmem:[%s215 + $0x598] sm:$0xff]
        %v484 = vld [vmem:[%s215 + $0x5a0] sm:$0xff]
        %v485 = vld [vmem:[%s215 + $0x5a8] sm:$0xff]
        %v486 = vld [vmem:[%s215 + $0x5b0] sm:$0xff]
        %v487 = vld [vmem:[%s215 + $0x5b8] sm:$0xff]
        %v488 = vld [vmem:[%s215 + $0x5c0] sm:$0xff]
        %v489 = vld [vmem:[%s215 + $0x5c8] sm:$0xff]
        %v490 = vld [vmem:[%s215 + $0x5d0] sm:$0xff]
        %v491 = vld [vmem:[%s215 + $0x5d8] sm:$0xff]
        %v492 = vld [vmem:[%s215 + $0x5e0] sm:$0xff]
        %v493 = vld [vmem:[%s215 + $0x5e8] sm:$0xff]
        %v494 = vld [vmem:[%s215 + $0x5f0] sm:$0xff]
        %v495 = vld [vmem:[%s215 + $0x5f8] sm:$0xff]
        %v496 = vld [vmem:[%s215 + $0x600] sm:$0xff]
        %v497 = vld [vmem:[%s215 + $0x608] sm:$0xff]
        %v498 = vld [vmem:[%s215 + $0x610] sm:$0xff]
        %v499 = vld [vmem:[%s215 + $0x618] sm:$0xff]
        %v500 = vld [vmem:[%s215 + $0x620] sm:$0xff]
        %v501 = vld [vmem:[%s215 + $0x628] sm:$0xff]
        %v502 = vld [vmem:[%s215 + $0x630] sm:$0xff]
        %v503 = vld [vmem:[%s215 + $0x638] sm:$0xff]
        %v504 = vld [vmem:[%s215 + $0x640] sm:$0xff]
        %v505 = vld [vmem:[%s215 + $0x648] sm:$0xff]
        %v506 = vld [vmem:[%s215 + $0x650] sm:$0xff]
        %v507 = vld [vmem:[%s215 + $0x658] sm:$0xff]
        %v508 = vld [vmem:[%s215 + $0x660] sm:$0xff]
        %v509 = vld [vmem:[%s215 + $0x668] sm:$0xff]
        %v510 = vld [vmem:[%s215 + $0x670] sm:$0xff]
        %v511 = vld [vmem:[%s215 + $0x678] sm:$0xff]
        %v512 = vld [vmem:[%s215 + $0x680] sm:$0xff]
        %v513 = vld [vmem:[%s215 + $0x688] sm:$0xff]
        %v514 = vld [vmem:[%s215 + $0x690] sm:$0xff]
        %v515 = vld [vmem:[%s215 + $0x698] sm:$0xff]
        %v516 = vld [vmem:[%s215 + $0x6a0] sm:$0xff]
        %v517 = vld [vmem:[%s215 + $0x6a8] sm:$0xff]
        %v518 = vld [vmem:[%s215 + $0x6b0] sm:$0xff]
        %v519 = vld [vmem:[%s215 + $0x6b8] sm:$0xff]
        %v520 = vld [vmem:[%s215 + $0x6c0] sm:$0xff]
        %v521 = vld [vmem:[%s215 + $0x6c8] sm:$0xff]
        %v522 = vld [vmem:[%s215 + $0x6d0] sm:$0xff]
        %v523 = vld [vmem:[%s215 + $0x6d8] sm:$0xff]
        %v524 = vld [vmem:[%s215 + $0x6e0] sm:$0xff]
        %v525 = vld [vmem:[%s215 + $0x6e8] sm:$0xff]
        %v526 = vld [vmem:[%s215 + $0x6f0] sm:$0xff]
        %v527 = vld [vmem:[%s215 + $0x6f8] sm:$0xff]
        %v528 = vld [vmem:[%s215 + $0x700] sm:$0xff]
        %v529 = vld [vmem:[%s215 + $0x708] sm:$0xff]
        %v530 = vld [vmem:[%s215 + $0x710] sm:$0xff]
        %v531 = vld [vmem:[%s215 + $0x718] sm:$0xff]
        %v532 = vld [vmem:[%s215 + $0x720] sm:$0xff]
        %v533 = vld [vmem:[%s215 + $0x728] sm:$0xff]
        %v534 = vld [vmem:[%s215 + $0x730] sm:$0xff]
        %v535 = vld [vmem:[%s215 + $0x738] sm:$0xff]
        %v536 = vld [vmem:[%s215 + $0x740] sm:$0xff]
        %v537 = vld [vmem:[%s215 + $0x748] sm:$0xff]
        %v538 = vld [vmem:[%s215 + $0x750] sm:$0xff]
        %v539 = vld [vmem:[%s215 + $0x758] sm:$0xff]
        %v540 = vld [vmem:[%s215 + $0x760] sm:$0xff]
        %v541 = vld [vmem:[%s215 + $0x768] sm:$0xff]
        %v542 = vld [vmem:[%s215 + $0x770] sm:$0xff]
        %v543 = vld [vmem:[%s215 + $0x778] sm:$0xff]
        %v544 = vld [vmem:[%s215 + $0x780] sm:$0xff]
        %v545 = vld [vmem:[%s215 + $0x788] sm:$0xff]
        %v546 = vld [vmem:[%s215 + $0x790] sm:$0xff]
        %v547 = vld [vmem:[%s215 + $0x798] sm:$0xff]
        %v548 = vld [vmem:[%s215 + $0x7a0] sm:$0xff]
        %v549 = vld [vmem:[%s215 + $0x7a8] sm:$0xff]
        %v550 = vld [vmem:[%s215 + $0x7b0] sm:$0xff]
        %v551 = vld [vmem:[%s215 + $0x7b8] sm:$0xff]
        %v552 = vld [vmem:[%s215 + $0x7c0] sm:$0xff]
        %v553 = vld [vmem:[%s215 + $0x7c8] sm:$0xff]
        %v554 = vld [vmem:[%s215 + $0x7d0] sm:$0xff]
        %v555 = vld [vmem:[%s215 + $0x7d8] sm:$0xff]
        %v556 = vld [vmem:[%s215 + $0x7e0] sm:$0xff]
        %v557 = vld [vmem:[%s215 + $0x7e8] sm:$0xff]
        %v558 = vld [vmem:[%s215 + $0x7f0] sm:$0xff]
        %v559 = vld [vmem:[%s215 + $0x7f8] sm:$0xff]
        %v560 = vld [vmem:[%s215 + $0x800] sm:$0xff]
        %v561 = vld [vmem:[%s215 + $0x808] sm:$0xff]
        %v562 = vld [vmem:[%s215 + $0x810] sm:$0xff]
        %v563 = vld [vmem:[%s215 + $0x818] sm:$0xff]
        %v564 = vld [vmem:[%s215 + $0x820] sm:$0xff]
        %v565 = vld [vmem:[%s215 + $0x828] sm:$0xff]
        %v566 = vld [vmem:[%s215 + $0x830] sm:$0xff]
        %v567 = vld [vmem:[%s215 + $0x838] sm:$0xff]
        %v568 = vld [vmem:[%s215 + $0x840] sm:$0xff]
        %v569 = vld [vmem:[%s215 + $0x848] sm:$0xff]
        %v570 = vld [vmem:[%s215 + $0x850] sm:$0xff]
        %v571 = vld [vmem:[%s215 + $0x858] sm:$0xff]
        %v572 = vld [vmem:[%s215 + $0x860] sm:$0xff]
        %v573 = vld [vmem:[%s215 + $0x868] sm:$0xff]
        %v574 = vld [vmem:[%s215 + $0x870] sm:$0xff]
        %v575 = vld [vmem:[%s215 + $0x878] sm:$0xff]
        %v576 = vld [vmem:[%s215 + $0x880] sm:$0xff]
        %v577 = vld [vmem:[%s215 + $0x888] sm:$0xff]
        %v578 = vld [vmem:[%s215 + $0x890] sm:$0xff]
        %v579 = vld [vmem:[%s215 + $0x898] sm:$0xff]
        %v580 = vld [vmem:[%s215 + $0x8a0] sm:$0xff]
        %v581 = vld [vmem:[%s215 + $0x8a8] sm:$0xff]
        %v582 = vld [vmem:[%s215 + $0x8b0] sm:$0xff]
        %v583 = vld [vmem:[%s215 + $0x8b8] sm:$0xff]
        %v584 = vld [vmem:[%s215 + $0x8c0] sm:$0xff]
        %v585 = vld [vmem:[%s215 + $0x8c8] sm:$0xff]
        %v586 = vld [vmem:[%s215 + $0x8d0] sm:$0xff]
        %v587 = vld [vmem:[%s215 + $0x8d8] sm:$0xff]
        %v588 = vld [vmem:[%s215 + $0x8e0] sm:$0xff]
        %v589 = vld [vmem:[%s215 + $0x8e8] sm:$0xff]
        %v590 = vld [vmem:[%s215 + $0x8f0] sm:$0xff]
        %v591 = vld [vmem:[%s215 + $0x8f8] sm:$0xff]
        %v592 = vld [vmem:[%s215 + $0x900] sm:$0xff]
        %v593 = vld [vmem:[%s215 + $0x908] sm:$0xff]
        %v594 = vld [vmem:[%s215 + $0x910] sm:$0xff]
        %v595 = vld [vmem:[%s215 + $0x918] sm:$0xff]
        %v596 = vld [vmem:[%s215 + $0x920] sm:$0xff]
        %v597 = vld [vmem:[%s215 + $0x928] sm:$0xff]
        %v598 = vld [vmem:[%s215 + $0x930] sm:$0xff]
        %v599 = vld [vmem:[%s215 + $0x938] sm:$0xff]
        %v600 = vld [vmem:[%s215 + $0x940] sm:$0xff]
        %v601 = vld [vmem:[%s215 + $0x948] sm:$0xff]
        %v602 = vld [vmem:[%s215 + $0x950] sm:$0xff]
        %v603 = vld [vmem:[%s215 + $0x958] sm:$0xff]
        %v604 = vld [vmem:[%s215 + $0x960] sm:$0xff]
        %v605 = vld [vmem:[%s215 + $0x968] sm:$0xff]
        %v606 = vld [vmem:[%s215 + $0x970] sm:$0xff]
        %v607 = vld [vmem:[%s215 + $0x978] sm:$0xff]
        %v608 = vld [vmem:[%s215 + $0x980] sm:$0xff]
        %v609 = vld [vmem:[%s215 + $0x988] sm:$0xff]
        %v610 = vld [vmem:[%s215 + $0x990] sm:$0xff]
        %v611 = vld [vmem:[%s215 + $0x998] sm:$0xff]
        %v612 = vld [vmem:[%s215 + $0x9a0] sm:$0xff]
        %v613 = vld [vmem:[%s215 + $0x9a8] sm:$0xff]
        %v614 = vld [vmem:[%s215 + $0x9b0] sm:$0xff]
        %v615 = vld [vmem:[%s215 + $0x9b8] sm:$0xff]
        %v616 = vld [vmem:[%s215 + $0x9c0] sm:$0xff]
        %v617 = vld [vmem:[%s215 + $0x9c8] sm:$0xff]
        %v618 = vld [vmem:[%s215 + $0x9d0] sm:$0xff]
        %v619 = vld [vmem:[%s215 + $0x9d8] sm:$0xff]
        %v620 = vld [vmem:[%s215 + $0x9e0] sm:$0xff]
        %v621 = vld [vmem:[%s215 + $0x9e8] sm:$0xff]
        %v622 = vld [vmem:[%s215 + $0x9f0] sm:$0xff]
        %v623 = vld [vmem:[%s215 + $0x9f8] sm:$0xff]
        %v624 = vld [vmem:[%s215 + $0xa00] sm:$0xff]
        %v625 = vld [vmem:[%s215 + $0xa08] sm:$0xff]
        %v626 = vld [vmem:[%s215 + $0xa10] sm:$0xff]
        %v627 = vld [vmem:[%s215 + $0xa18] sm:$0xff]
        %v628 = vld [vmem:[%s215 + $0xa20] sm:$0xff]
        %v629 = vld [vmem:[%s215 + $0xa28] sm:$0xff]
        %v630 = vld [vmem:[%s215 + $0xa30] sm:$0xff]
        %v631 = vld [vmem:[%s215 + $0xa38] sm:$0xff]
        %v632 = vld [vmem:[%s215 + $0xa40] sm:$0xff]
        %v633 = vld [vmem:[%s215 + $0xa48] sm:$0xff]
        %v634 = vld [vmem:[%s215 + $0xa50] sm:$0xff]
        %v635 = vld [vmem:[%s215 + $0xa58] sm:$0xff]
        %v636 = vld [vmem:[%s215 + $0xa60] sm:$0xff]
        %v637 = vld [vmem:[%s215 + $0xa68] sm:$0xff]
        %v638 = vld [vmem:[%s215 + $0xa70] sm:$0xff]
        %v639 = vld [vmem:[%s215 + $0xa78] sm:$0xff]
        %v640 = vld [vmem:[%s215 + $0xa80] sm:$0xff]
        %v641 = vld [vmem:[%s215 + $0xa88] sm:$0xff]
        %v642 = vld [vmem:[%s215 + $0xa90] sm:$0xff]
        %v643 = vld [vmem:[%s215 + $0xa98] sm:$0xff]
        %v644 = vld [vmem:[%s215 + $0xaa0] sm:$0xff]
        %v645 = vld [vmem:[%s215 + $0xaa8] sm:$0xff]
        %v646 = vld [vmem:[%s215 + $0xab0] sm:$0xff]
        %v647 = vld [vmem:[%s215 + $0xab8] sm:$0xff]
        %v648 = vld [vmem:[%s215 + $0xac0] sm:$0xff]
        %v649 = vld [vmem:[%s215 + $0xac8] sm:$0xff]
        %v650 = vld [vmem:[%s215 + $0xad0] sm:$0xff]
        %v651 = vld [vmem:[%s215 + $0xad8] sm:$0xff]
        %v652 = vld [vmem:[%s215 + $0xae0] sm:$0xff]
        %v653 = vld [vmem:[%s215 + $0xae8] sm:$0xff]
        %v654 = vld [vmem:[%s215 + $0xaf0] sm:$0xff]
        %v655 = vld [vmem:[%s215 + $0xaf8] sm:$0xff]
        %v656 = vld [vmem:[%s215 + $0xb00] sm:$0xff]
        %v657 = vld [vmem:[%s215 + $0xb08] sm:$0xff]
        %v658 = vld [vmem:[%s215 + $0xb10] sm:$0xff]
        %v659 = vld [vmem:[%s215 + $0xb18] sm:$0xff]
        %v660 = vld [vmem:[%s215 + $0xb20] sm:$0xff]
        %v661 = vld [vmem:[%s215 + $0xb28] sm:$0xff]
        %v662 = vld [vmem:[%s215 + $0xb30] sm:$0xff]
        %v663 = vld [vmem:[%s215 + $0xb38] sm:$0xff]
        %v664 = vld [vmem:[%s215 + $0xb40] sm:$0xff]
        %v665 = vld [vmem:[%s215 + $0xb48] sm:$0xff]
        %v666 = vld [vmem:[%s215 + $0xb50] sm:$0xff]
        %v667 = vld [vmem:[%s215 + $0xb58] sm:$0xff]
        %v668 = vld [vmem:[%s215 + $0xb60] sm:$0xff]
        %v669 = vld [vmem:[%s215 + $0xb68] sm:$0xff]
        %v670 = vld [vmem:[%s215 + $0xb70] sm:$0xff]
        %v671 = vld [vmem:[%s215 + $0xb78] sm:$0xff]
        %v672 = vld [vmem:[%s215 + $0xb80] sm:$0xff]
        %v673 = vld [vmem:[%s215 + $0xb88] sm:$0xff]
        %v674 = vld [vmem:[%s215 + $0xb90] sm:$0xff]
        %v675 = vld [vmem:[%s215 + $0xb98] sm:$0xff]
        %v676 = vld [vmem:[%s215 + $0xba0] sm:$0xff]
        %v677 = vld [vmem:[%s215 + $0xba8] sm:$0xff]
        %v678 = vld [vmem:[%s215 + $0xbb0] sm:$0xff]
        %v679 = vld [vmem:[%s215 + $0xbb8] sm:$0xff]
        %v680 = vld [vmem:[%s215 + $0xbc0] sm:$0xff]
        %v681 = vld [vmem:[%s215 + $0xbc8] sm:$0xff]
        %v682 = vld [vmem:[%s215 + $0xbd0] sm:$0xff]
        %v683 = vld [vmem:[%s215 + $0xbd8] sm:$0xff]
        %v684 = vld [vmem:[%s215 + $0xbe0] sm:$0xff]
        %v685 = vld [vmem:[%s215 + $0xbe8] sm:$0xff]
        %v686 = vld [vmem:[%s215 + $0xbf0] sm:$0xff]
        %v687 = vld [vmem:[%s215 + $0xbf8] sm:$0xff]
        %v688 = vld [vmem:[%s215 + $0xc00] sm:$0xff]
        %v689 = vld [vmem:[%s215 + $0xc08] sm:$0xff]
        %v690 = vld [vmem:[%s215 + $0xc10] sm:$0xff]
        %v691 = vld [vmem:[%s215 + $0xc18] sm:$0xff]
        %v692 = vld [vmem:[%s215 + $0xc20] sm:$0xff]
        %v693 = vld [vmem:[%s215 + $0xc28] sm:$0xff]
        %v694 = vld [vmem:[%s215 + $0xc30] sm:$0xff]
        %v695 = vld [vmem:[%s215 + $0xc38] sm:$0xff]
        %v696 = vld [vmem:[%s215 + $0xc40] sm:$0xff]
        %v697 = vld [vmem:[%s215 + $0xc48] sm:$0xff]
        %v698 = vld [vmem:[%s215 + $0xc50] sm:$0xff]
        %v699 = vld [vmem:[%s215 + $0xc58] sm:$0xff]
        %v700 = vld [vmem:[%s215 + $0xc60] sm:$0xff]
        %v701 = vld [vmem:[%s215 + $0xc68] sm:$0xff]
        %v702 = vld [vmem:[%s215 + $0xc70] sm:$0xff]
        %v703 = vld [vmem:[%s215 + $0xc78] sm:$0xff]
        %v704 = vld [vmem:[%s215 + $0xc80] sm:$0xff]
        %v705 = vld [vmem:[%s215 + $0xc88] sm:$0xff]
        %v706 = vld [vmem:[%s215 + $0xc90] sm:$0xff]
        %v707 = vld [vmem:[%s215 + $0xc98] sm:$0xff]
        %v708 = vld [vmem:[%s215 + $0xca0] sm:$0xff]
        %v709 = vld [vmem:[%s215 + $0xca8] sm:$0xff]
        %v710 = vld [vmem:[%s215 + $0xcb0] sm:$0xff]
        %v711 = vld [vmem:[%s215 + $0xcb8] sm:$0xff]
        %v712 = vld [vmem:[%s215 + $0xcc0] sm:$0xff]
        %v713 = vld [vmem:[%s215 + $0xcc8] sm:$0xff]
        %v714 = vld [vmem:[%s215 + $0xcd0] sm:$0xff]
        %v715 = vld [vmem:[%s215 + $0xcd8] sm:$0xff]
        %v716 = vld [vmem:[%s215 + $0xce0] sm:$0xff]
        %v717 = vld [vmem:[%s215 + $0xce8] sm:$0xff]
        %v718 = vld [vmem:[%s215 + $0xcf0] sm:$0xff]
        %v719 = vld [vmem:[%s215 + $0xcf8] sm:$0xff]
        %v720 = vld [vmem:[%s215 + $0xd00] sm:$0xff]
        %v721 = vld [vmem:[%s215 + $0xd08] sm:$0xff]
        %v722 = vld [vmem:[%s215 + $0xd10] sm:$0xff]
        %v723 = vld [vmem:[%s215 + $0xd18] sm:$0xff]
        %v724 = vld [vmem:[%s215 + $0xd20] sm:$0xff]
        %v725 = vld [vmem:[%s215 + $0xd28] sm:$0xff]
        %v726 = vld [vmem:[%s215 + $0xd30] sm:$0xff]
        %v727 = vld [vmem:[%s215 + $0xd38] sm:$0xff]
        %v728 = vld [vmem:[%s215 + $0xd40] sm:$0xff]
        %v729 = vld [vmem:[%s215 + $0xd48] sm:$0xff]
        %v730 = vld [vmem:[%s215 + $0xd50] sm:$0xff]
        %v731 = vld [vmem:[%s215 + $0xd58] sm:$0xff]
        %v732 = vld [vmem:[%s215 + $0xd60] sm:$0xff]
        %v733 = vld [vmem:[%s215 + $0xd68] sm:$0xff]
        %v734 = vld [vmem:[%s215 + $0xd70] sm:$0xff]
        %v735 = vld [vmem:[%s215 + $0xd78] sm:$0xff]
        %v736 = vld [vmem:[%s215 + $0xd80] sm:$0xff]
        %v737 = vld [vmem:[%s215 + $0xd88] sm:$0xff]
        %v738 = vld [vmem:[%s215 + $0xd90] sm:$0xff]
        %v739 = vld [vmem:[%s215 + $0xd98] sm:$0xff]
        %v740 = vld [vmem:[%s215 + $0xda0] sm:$0xff]
        %v741 = vld [vmem:[%s215 + $0xda8] sm:$0xff]
        %v742 = vld [vmem:[%s215 + $0xdb0] sm:$0xff]
        %v743 = vld [vmem:[%s215 + $0xdb8] sm:$0xff]
        %v744 = vld [vmem:[%s215 + $0xdc0] sm:$0xff]
        %v745 = vld [vmem:[%s215 + $0xdc8] sm:$0xff]
        %v746 = vld [vmem:[%s215 + $0xdd0] sm:$0xff]
        %v747 = vld [vmem:[%s215 + $0xdd8] sm:$0xff]
        %v748 = vld [vmem:[%s215 + $0xde0] sm:$0xff]
        %v749 = vld [vmem:[%s215 + $0xde8] sm:$0xff]
        %v750 = vld [vmem:[%s215 + $0xdf0] sm:$0xff]
        %v751 = vld [vmem:[%s215 + $0xdf8] sm:$0xff]
        %v752 = vld [vmem:[%s215 + $0xe00] sm:$0xff]
        %v753 = vld [vmem:[%s215 + $0xe08] sm:$0xff]
        %v754 = vld [vmem:[%s215 + $0xe10] sm:$0xff]
        %v755 = vld [vmem:[%s215 + $0xe18] sm:$0xff]
        %v756 = vld [vmem:[%s215 + $0xe20] sm:$0xff]
        %v757 = vld [vmem:[%s215 + $0xe28] sm:$0xff]
        %v758 = vld [vmem:[%s215 + $0xe30] sm:$0xff]
        %v759 = vld [vmem:[%s215 + $0xe38] sm:$0xff]
        %v760 = vld [vmem:[%s215 + $0xe40] sm:$0xff]
        %v761 = vld [vmem:[%s215 + $0xe48] sm:$0xff]
        %v762 = vld [vmem:[%s215 + $0xe50] sm:$0xff]
        %v763 = vld [vmem:[%s215 + $0xe58] sm:$0xff]
        %v764 = vld [vmem:[%s215 + $0xe60] sm:$0xff]
        %v765 = vld [vmem:[%s215 + $0xe68] sm:$0xff]
        %v766 = vld [vmem:[%s215 + $0xe70] sm:$0xff]
        %v767 = vld [vmem:[%s215 + $0xe78] sm:$0xff]
        %v768 = vld [vmem:[%s215 + $0xe80] sm:$0xff]
        %v769 = vld [vmem:[%s215 + $0xe88] sm:$0xff]
        %v770 = vld [vmem:[%s215 + $0xe90] sm:$0xff]
        %v771 = vld [vmem:[%s215 + $0xe98] sm:$0xff]
        %v772 = vld [vmem:[%s215 + $0xea0] sm:$0xff]
        %v773 = vld [vmem:[%s215 + $0xea8] sm:$0xff]
        %v774 = vld [vmem:[%s215 + $0xeb0] sm:$0xff]
        %v775 = vld [vmem:[%s215 + $0xeb8] sm:$0xff]
        %v776 = vld [vmem:[%s215 + $0xec0] sm:$0xff]
        %v777 = vld [vmem:[%s215 + $0xec8] sm:$0xff]
        %v778 = vld [vmem:[%s215 + $0xed0] sm:$0xff]
        %v779 = vld [vmem:[%s215 + $0xed8] sm:$0xff]
        %v780 = vld [vmem:[%s215 + $0xee0] sm:$0xff]
        %v781 = vld [vmem:[%s215 + $0xee8] sm:$0xff]
        %v782 = vld [vmem:[%s215 + $0xef0] sm:$0xff]
        %v783 = vld [vmem:[%s215 + $0xef8] sm:$0xff]
        %v784 = vld [vmem:[%s215 + $0xf00] sm:$0xff]
        %v785 = vld [vmem:[%s215 + $0xf08] sm:$0xff]
        %v786 = vld [vmem:[%s215 + $0xf10] sm:$0xff]
        %v787 = vld [vmem:[%s215 + $0xf18] sm:$0xff]
        %v788 = vld [vmem:[%s215 + $0xf20] sm:$0xff]
        %v789 = vld [vmem:[%s215 + $0xf28] sm:$0xff]
        %v790 = vld [vmem:[%s215 + $0xf30] sm:$0xff]
        %v791 = vld [vmem:[%s215 + $0xf38] sm:$0xff]
        %v792 = vld [vmem:[%s215 + $0xf40] sm:$0xff]
        %v793 = vld [vmem:[%s215 + $0xf48] sm:$0xff]
        %v794 = vld [vmem:[%s215 + $0xf50] sm:$0xff]
        %v795 = vld [vmem:[%s215 + $0xf58] sm:$0xff]
        %v796 = vld [vmem:[%s215 + $0xf60] sm:$0xff]
        %v797 = vld [vmem:[%s215 + $0xf68] sm:$0xff]
        %v798 = vld [vmem:[%s215 + $0xf70] sm:$0xff]
        %v799 = vld [vmem:[%s215 + $0xf78] sm:$0xff]
        %v800 = vld [vmem:[%s215 + $0xf80] sm:$0xff]
        %v801 = vld [vmem:[%s215 + $0xf88] sm:$0xff]
        %v802 = vld [vmem:[%s215 + $0xf90] sm:$0xff]
        %v803 = vld [vmem:[%s215 + $0xf98] sm:$0xff]
        %v804 = vld [vmem:[%s215 + $0xfa0] sm:$0xff]
        %v805 = vld [vmem:[%s215 + $0xfa8] sm:$0xff]
        %v806 = vld [vmem:[%s215 + $0xfb0] sm:$0xff]
        %v807 = vld [vmem:[%s215 + $0xfb8] sm:$0xff]
        %v808 = vld [vmem:[%s215 + $0xfc0] sm:$0xff]
        %v809 = vld [vmem:[%s215 + $0xfc8] sm:$0xff]
        %v810 = vld [vmem:[%s215 + $0xfd0] sm:$0xff]
        %v811 = vld [vmem:[%s215 + $0xfd8] sm:$0xff]
        %v812 = vld [vmem:[%s215 + $0xfe0] sm:$0xff]
        %v813 = vld [vmem:[%s215 + $0xfe8] sm:$0xff]
        %v814 = vld [vmem:[%s215 + $0xff0] sm:$0xff]
        %v815 = vld [vmem:[%s215 + $0xff8] sm:$0xff]
        %v816 = vld [vmem:[%s215 + $0x1000] sm:$0xff]
        %v817 = vld [vmem:[%s215 + $0x1008] sm:$0xff]
        %v818 = vld [vmem:[%s215 + $0x1010] sm:$0xff]
        %v819 = vld [vmem:[%s215 + $0x1018] sm:$0xff]
        %v820 = vld [vmem:[%s215 + $0x1020] sm:$0xff]
        %v821 = vld [vmem:[%s215 + $0x1028] sm:$0xff]
        %v822 = vld [vmem:[%s215 + $0x1030] sm:$0xff]
        %v823 = vld [vmem:[%s215 + $0x1038] sm:$0xff]
        %v824 = vld [vmem:[%s215 + $0x1040] sm:$0xff]
        %v825 = vld [vmem:[%s215 + $0x1048] sm:$0xff]
        %v826 = vld [vmem:[%s215 + $0x1050] sm:$0xff]
        %v827 = vld [vmem:[%s215 + $0x1058] sm:$0xff]
        %v828 = vld [vmem:[%s215 + $0x1060] sm:$0xff]
        %v829 = vld [vmem:[%s215 + $0x1068] sm:$0xff]
        %v830 = vld [vmem:[%s215 + $0x1070] sm:$0xff]
        %v831 = vld [vmem:[%s215 + $0x1078] sm:$0xff]
        %v832 = vld [vmem:[%s215 + $0x1080] sm:$0xff]
        %v833 = vld [vmem:[%s215 + $0x1088] sm:$0xff]
        %v834 = vld [vmem:[%s215 + $0x1090] sm:$0xff]
        %v835 = vld [vmem:[%s215 + $0x1098] sm:$0xff]
        %v836 = vld [vmem:[%s215 + $0x10a0] sm:$0xff]
        %v837 = vld [vmem:[%s215 + $0x10a8] sm:$0xff]
        %v838 = vld [vmem:[%s215 + $0x10b0] sm:$0xff]
        %v839 = vld [vmem:[%s215 + $0x10b8] sm:$0xff]
        %v840 = vld [vmem:[%s215 + $0x10c0] sm:$0xff]
        %v841 = vld [vmem:[%s215 + $0x10c8] sm:$0xff]
        %v842 = vld [vmem:[%s215 + $0x10d0] sm:$0xff]
        %v843 = vld [vmem:[%s215 + $0x10d8] sm:$0xff]
        %v844 = vld [vmem:[%s215 + $0x10e0] sm:$0xff]
        %v845 = vld [vmem:[%s215 + $0x10e8] sm:$0xff]
        %v846 = vld [vmem:[%s215 + $0x10f0] sm:$0xff]
        %v847 = vld [vmem:[%s215 + $0x10f8] sm:$0xff]
        %v848 = vld [vmem:[%s215 + $0x1100] sm:$0xff]
        %v849 = vld [vmem:[%s215 + $0x1108] sm:$0xff]
        %v850 = vld [vmem:[%s215 + $0x1110] sm:$0xff]
        %v851 = vld [vmem:[%s215 + $0x1118] sm:$0xff]
        %v852 = vld [vmem:[%s215 + $0x1120] sm:$0xff]
        %v853 = vld [vmem:[%s215 + $0x1128] sm:$0xff]
        %v854 = vld [vmem:[%s215 + $0x1130] sm:$0xff]
        %v855 = vld [vmem:[%s215 + $0x1138] sm:$0xff]
        %v856 = vld [vmem:[%s215 + $0x1140] sm:$0xff]
        %v857 = vld [vmem:[%s215 + $0x1148] sm:$0xff]
        %v858 = vld [vmem:[%s215 + $0x1150] sm:$0xff]
        %v859 = vld [vmem:[%s215 + $0x1158] sm:$0xff]
        %v860 = vld [vmem:[%s215 + $0x1160] sm:$0xff]
        %v861 = vld [vmem:[%s215 + $0x1168] sm:$0xff]
        %v862 = vld [vmem:[%s215 + $0x1170] sm:$0xff]
        %v863 = vld [vmem:[%s215 + $0x1178] sm:$0xff]
        %v864 = vld [vmem:[%s215 + $0x1180] sm:$0xff]
        %v865 = vld [vmem:[%s215 + $0x1188] sm:$0xff]
        %v866 = vld [vmem:[%s215 + $0x1190] sm:$0xff]
        %v867 = vld [vmem:[%s215 + $0x1198] sm:$0xff]
        %v868 = vld [vmem:[%s215 + $0x11a0] sm:$0xff]
        %v869 = vld [vmem:[%s215 + $0x11a8] sm:$0xff]
        %v870 = vld [vmem:[%s215 + $0x11b0] sm:$0xff]
        %v871 = vld [vmem:[%s215 + $0x11b8] sm:$0xff]
        %v872 = vld [vmem:[%s215 + $0x11c0] sm:$0xff]
        %v873 = vld [vmem:[%s215 + $0x11c8] sm:$0xff]
        %v874 = vld [vmem:[%s215 + $0x11d0] sm:$0xff]
        %v875 = vld [vmem:[%s215 + $0x11d8] sm:$0xff]
        %v876 = vld [vmem:[%s215 + $0x11e0] sm:$0xff]
        %v877 = vld [vmem:[%s215 + $0x11e8] sm:$0xff]
        %v878 = vld [vmem:[%s215 + $0x11f0] sm:$0xff]
        %v879 = vld [vmem:[%s215 + $0x11f8] sm:$0xff]
        %v880 = vld [vmem:[%s215 + $0x1200] sm:$0xff]
        %v881 = vld [vmem:[%s215 + $0x1208] sm:$0xff]
        %v882 = vld [vmem:[%s215 + $0x1210] sm:$0xff]
        %v883 = vld [vmem:[%s215 + $0x1218] sm:$0xff]
        %v884 = vld [vmem:[%s215 + $0x1220] sm:$0xff]
        %v885 = vld [vmem:[%s215 + $0x1228] sm:$0xff]
        %v886 = vld [vmem:[%s215 + $0x1230] sm:$0xff]
        %v887 = vld [vmem:[%s215 + $0x1238] sm:$0xff]
        %v888 = vld [vmem:[%s215 + $0x1240] sm:$0xff]
        %v889 = vld [vmem:[%s215 + $0x1248] sm:$0xff]
        %v890 = vld [vmem:[%s215 + $0x1250] sm:$0xff]
        %v891 = vld [vmem:[%s215 + $0x1258] sm:$0xff]
        %v892 = vld [vmem:[%s215 + $0x1260] sm:$0xff]
        %v893 = vld [vmem:[%s215 + $0x1268] sm:$0xff]
        %v894 = vld [vmem:[%s215 + $0x1270] sm:$0xff]
        %v895 = vld [vmem:[%s215 + $0x1278] sm:$0xff]
        %v896 = vld [vmem:[%s215 + $0x1280] sm:$0xff]
        %v897 = vld [vmem:[%s215 + $0x1288] sm:$0xff]
        %v898 = vld [vmem:[%s215 + $0x1290] sm:$0xff]
        %v899 = vld [vmem:[%s215 + $0x1298] sm:$0xff]
        %v900 = vld [vmem:[%s215 + $0x12a0] sm:$0xff]
        %v901 = vld [vmem:[%s215 + $0x12a8] sm:$0xff]
        %v902 = vld [vmem:[%s215 + $0x12b0] sm:$0xff]
        %v903 = vld [vmem:[%s215 + $0x12b8] sm:$0xff]
        %v904 = vld [vmem:[%s215 + $0x12c0] sm:$0xff]
        %v905 = vld [vmem:[%s215 + $0x12c8] sm:$0xff]
        %v906 = vld [vmem:[%s215 + $0x12d0] sm:$0xff]
        %v907 = vld [vmem:[%s215 + $0x12d8] sm:$0xff]
        %v908 = vld [vmem:[%s215 + $0x12e0] sm:$0xff]
        %v909 = vld [vmem:[%s215 + $0x12e8] sm:$0xff]
        %v910 = vld [vmem:[%s215 + $0x12f0] sm:$0xff]
        %v911 = vld [vmem:[%s215 + $0x12f8] sm:$0xff]
        %v912 = vld [vmem:[%s215 + $0x1300] sm:$0xff]
        %v913 = vld [vmem:[%s215 + $0x1308] sm:$0xff]
        %v914 = vld [vmem:[%s215 + $0x1310] sm:$0xff]
        %v915 = vld [vmem:[%s215 + $0x1318] sm:$0xff]
        %v916 = vld [vmem:[%s215 + $0x1320] sm:$0xff]
        %v917 = vld [vmem:[%s215 + $0x1328] sm:$0xff]
        %v918 = vld [vmem:[%s215 + $0x1330] sm:$0xff]
        %v919 = vld [vmem:[%s215 + $0x1338] sm:$0xff]
        %v920 = vld [vmem:[%s215 + $0x1340] sm:$0xff]
        %v921 = vld [vmem:[%s215 + $0x1348] sm:$0xff]
        %v922 = vld [vmem:[%s215 + $0x1350] sm:$0xff]
        %v923 = vld [vmem:[%s215 + $0x1358] sm:$0xff]
        %v924 = vld [vmem:[%s215 + $0x1360] sm:$0xff]
        %v925 = vld [vmem:[%s215 + $0x1368] sm:$0xff]
        %v926 = vld [vmem:[%s215 + $0x1370] sm:$0xff]
        %v927 = vld [vmem:[%s215 + $0x1378] sm:$0xff]
        %v928 = vld [vmem:[%s215 + $0x1380] sm:$0xff]
        %v929 = vld [vmem:[%s215 + $0x1388] sm:$0xff]
        %v930 = vld [vmem:[%s215 + $0x1390] sm:$0xff]
        %v931 = vld [vmem:[%s215 + $0x1398] sm:$0xff]
        %v932 = vld [vmem:[%s215 + $0x13a0] sm:$0xff]
        %v933 = vld [vmem:[%s215 + $0x13a8] sm:$0xff]
        %v934 = vld [vmem:[%s215 + $0x13b0] sm:$0xff]
        %v935 = vld [vmem:[%s215 + $0x13b8] sm:$0xff]
        %v936 = vld [vmem:[%s215 + $0x13c0] sm:$0xff]
        %v937 = vld [vmem:[%s215 + $0x13c8] sm:$0xff]
        %v938 = vld [vmem:[%s215 + $0x13d0] sm:$0xff]
        %v939 = vld [vmem:[%s215 + $0x13d8] sm:$0xff]
        %v940 = vld [vmem:[%s215 + $0x13e0] sm:$0xff]
        %v941 = vld [vmem:[%s215 + $0x13e8] sm:$0xff]
        %v942 = vld [vmem:[%s215 + $0x13f0] sm:$0xff]
        %v943 = vld [vmem:[%s215 + $0x13f8] sm:$0xff]
        %v944 = vld [vmem:[%s215 + $0x1400] sm:$0xff]
        %v945 = vld [vmem:[%s215 + $0x1408] sm:$0xff]
        %v946 = vld [vmem:[%s215 + $0x1410] sm:$0xff]
        %v947 = vld [vmem:[%s215 + $0x1418] sm:$0xff]
        %v948 = vld [vmem:[%s215 + $0x1420] sm:$0xff]
        %v949 = vld [vmem:[%s215 + $0x1428] sm:$0xff]
        %v950 = vld [vmem:[%s215 + $0x1430] sm:$0xff]
        %v951 = vld [vmem:[%s215 + $0x1438] sm:$0xff]
        %v952 = vld [vmem:[%s215 + $0x1440] sm:$0xff]
        %v953 = vld [vmem:[%s215 + $0x1448] sm:$0xff]
        %v954 = vld [vmem:[%s215 + $0x1450] sm:$0xff]
        %v955 = vld [vmem:[%s215 + $0x1458] sm:$0xff]
        %v956 = vld [vmem:[%s215 + $0x1460] sm:$0xff]
        %v957 = vld [vmem:[%s215 + $0x1468] sm:$0xff]
        %v958 = vld [vmem:[%s215 + $0x1470] sm:$0xff]
        %v959 = vld [vmem:[%s215 + $0x1478] sm:$0xff]
        %v960 = vld [vmem:[%s215 + $0x1480] sm:$0xff]
        %v961 = vld [vmem:[%s215 + $0x1488] sm:$0xff]
        %v962 = vld [vmem:[%s215 + $0x1490] sm:$0xff]
        %v963 = vld [vmem:[%s215 + $0x1498] sm:$0xff]
        %v964 = vld [vmem:[%s215 + $0x14a0] sm:$0xff]
        %v965 = vld [vmem:[%s215 + $0x14a8] sm:$0xff]
        %v966 = vld [vmem:[%s215 + $0x14b0] sm:$0xff]
        %v967 = vld [vmem:[%s215 + $0x14b8] sm:$0xff]
        %v968 = vld [vmem:[%s215 + $0x14c0] sm:$0xff]
        %v969 = vld [vmem:[%s215 + $0x14c8] sm:$0xff]
        %v970 = vld [vmem:[%s215 + $0x14d0] sm:$0xff]
        %v971 = vld [vmem:[%s215 + $0x14d8] sm:$0xff]
        %v972 = vld [vmem:[%s215 + $0x14e0] sm:$0xff]
        %v973 = vld [vmem:[%s215 + $0x14e8] sm:$0xff]
        %v974 = vld [vmem:[%s215 + $0x14f0] sm:$0xff]
        %v975 = vld [vmem:[%s215 + $0x14f8] sm:$0xff]
        %v976 = vld [vmem:[%s215 + $0x1500] sm:$0xff]
        %v977 = vld [vmem:[%s215 + $0x1508] sm:$0xff]
        %v978 = vld [vmem:[%s215 + $0x1510] sm:$0xff]
        %v979 = vld [vmem:[%s215 + $0x1518] sm:$0xff]
        %v980 = vld [vmem:[%s215 + $0x1520] sm:$0xff]
        %v981 = vld [vmem:[%s215 + $0x1528] sm:$0xff]
        %v982 = vld [vmem:[%s215 + $0x1530] sm:$0xff]
        %v983 = vld [vmem:[%s215 + $0x1538] sm:$0xff]
        %v984 = vld [vmem:[%s215 + $0x1540] sm:$0xff]
        %v985 = vld [vmem:[%s215 + $0x1548] sm:$0xff]
        %v986 = vld [vmem:[%s215 + $0x1550] sm:$0xff]
        %v987 = vld [vmem:[%s215 + $0x1558] sm:$0xff]
        %v988 = vld [vmem:[%s215 + $0x1560] sm:$0xff]
        %v989 = vld [vmem:[%s215 + $0x1568] sm:$0xff]
        %v990 = vld [vmem:[%s215 + $0x1570] sm:$0xff]
        %v991 = vld [vmem:[%s215 + $0x1578] sm:$0xff]
        %v992 = vld [vmem:[%s215 + $0x1580] sm:$0xff]
        %v993 = vld [vmem:[%s215 + $0x1588] sm:$0xff]
        %v994 = vld [vmem:[%s215 + $0x1590] sm:$0xff]
        %v995 = vld [vmem:[%s215 + $0x1598] sm:$0xff]
        %v996 = vld [vmem:[%s215 + $0x15a0] sm:$0xff]
        %v997 = vld [vmem:[%s215 + $0x15a8] sm:$0xff]
        %v998 = vld [vmem:[%s215 + $0x15b0] sm:$0xff]
        %v999 = vld [vmem:[%s215 + $0x15b8] sm:$0xff]
        %v1000 = vld [vmem:[%s215 + $0x15c0] sm:$0xff]
        %v1001 = vld [vmem:[%s215 + $0x15c8] sm:$0xff]
        %v1002 = vld [vmem:[%s215 + $0x15d0] sm:$0xff]
        %v1003 = vld [vmem:[%s215 + $0x15d8] sm:$0xff]
        %v1004 = vld [vmem:[%s215 + $0x15e0] sm:$0xff]
        %v1005 = vld [vmem:[%s215 + $0x15e8] sm:$0xff]
        %v1006 = vld [vmem:[%s215 + $0x15f0] sm:$0xff]
        %v1007 = vld [vmem:[%s215 + $0x15f8] sm:$0xff]
        %v1008 = vld [vmem:[%s215 + $0x1600] sm:$0xff]
        %v1009 = vld [vmem:[%s215 + $0x1608] sm:$0xff]
        %v1010 = vld [vmem:[%s215 + $0x1610] sm:$0xff]
        %v1011 = vld [vmem:[%s215 + $0x1618] sm:$0xff]
        %v1012 = vld [vmem:[%s215 + $0x1620] sm:$0xff]
        %v1013 = vld [vmem:[%s215 + $0x1628] sm:$0xff]
        %v1014 = vld [vmem:[%s215 + $0x1630] sm:$0xff]
        %v1015 = vld [vmem:[%s215 + $0x1638] sm:$0xff]
        %v1016 = vld [vmem:[%s215 + $0x1640] sm:$0xff]
        %v1017 = vld [vmem:[%s215 + $0x1648] sm:$0xff]
        %v1018 = vld [vmem:[%s215 + $0x1650] sm:$0xff]
        %v1019 = vld [vmem:[%s215 + $0x1658] sm:$0xff]
        %v1020 = vld [vmem:[%s215 + $0x1660] sm:$0xff]
        %v1021 = vld [vmem:[%s215 + $0x1668] sm:$0xff]
        %v1022 = vld [vmem:[%s215 + $0x1670] sm:$0xff]
        %v1023 = vld [vmem:[%s215 + $0x1678] sm:$0xff]
        %v1024 = vld [vmem:[%s215 + $0x1680] sm:$0xff]
        %v1025 = vld [vmem:[%s215 + $0x1688] sm:$0xff]
        %v1026 = vld [vmem:[%s215 + $0x1690] sm:$0xff]
        %v1027 = vld [vmem:[%s215 + $0x1698] sm:$0xff]
        %v1028 = vld [vmem:[%s215 + $0x16a0] sm:$0xff]
        %v1029 = vld [vmem:[%s215 + $0x16a8] sm:$0xff]
        %v1030 = vld [vmem:[%s215 + $0x16b0] sm:$0xff]
        %v1031 = vld [vmem:[%s215 + $0x16b8] sm:$0xff]
        %v1032 = vld [vmem:[%s215 + $0x16c0] sm:$0xff]
        %v1033 = vld [vmem:[%s215 + $0x16c8] sm:$0xff]
        %v1034 = vld [vmem:[%s215 + $0x16d0] sm:$0xff]
        %v1035 = vld [vmem:[%s215 + $0x16d8] sm:$0xff]
        %v1036 = vld [vmem:[%s215 + $0x16e0] sm:$0xff]
        %v1037 = vld [vmem:[%s215 + $0x16e8] sm:$0xff]
        %v1038 = vld [vmem:[%s215 + $0x16f0] sm:$0xff]
        %v1039 = vld [vmem:[%s215 + $0x16f8] sm:$0xff]
        %v1040 = vld [vmem:[%s215 + $0x1700] sm:$0xff]
        %v1041 = vld [vmem:[%s215 + $0x1708] sm:$0xff]
        %v1042 = vld [vmem:[%s215 + $0x1710] sm:$0xff]
        %v1043 = vld [vmem:[%s215 + $0x1718] sm:$0xff]
        %v1044 = vld [vmem:[%s215 + $0x1720] sm:$0xff]
        %v1045 = vld [vmem:[%s215 + $0x1728] sm:$0xff]
        %v1046 = vld [vmem:[%s215 + $0x1730] sm:$0xff]
        %v1047 = vld [vmem:[%s215 + $0x1738] sm:$0xff]
        %v1048 = vld [vmem:[%s215 + $0x1740] sm:$0xff]
        %v1049 = vld [vmem:[%s215 + $0x1748] sm:$0xff]
        %v1050 = vld [vmem:[%s215 + $0x1750] sm:$0xff]
        %v1051 = vld [vmem:[%s215 + $0x1758] sm:$0xff]
        %v1052 = vld [vmem:[%s215 + $0x1760] sm:$0xff]
        %v1053 = vld [vmem:[%s215 + $0x1768] sm:$0xff]
        %v1054 = vld [vmem:[%s215 + $0x1770] sm:$0xff]
        %v1055 = vld [vmem:[%s215 + $0x1778] sm:$0xff]
        %v1080 = vunpack.c.l.b16 %v280
        %v1081 = vunpack.c.h.b16 %v280
        %v1082 = vunpack.c.l.b16 %v281
        %v1083 = vunpack.c.h.b16 %v281
        %v1084 = vunpack.c.l.b16 %v282
        %v1085 = vunpack.c.h.b16 %v282
        %v1086 = vunpack.c.l.b16 %v283
        %v1087 = vunpack.c.h.b16 %v283
        %v1088 = vunpack.c.l.b16 %v284
        %v1089 = vunpack.c.h.b16 %v284
        %v1090 = vunpack.c.l.b16 %v285
        %v1091 = vunpack.c.h.b16 %v285
        %v1092 = vunpack.c.l.b16 %v286
        %v1093 = vunpack.c.h.b16 %v286
        %v1094 = vunpack.c.l.b16 %v287
        %v1095 = vunpack.c.h.b16 %v287
        %v1096 = vunpack.c.l.b16 %v288
        %v1097 = vunpack.c.h.b16 %v288
        %v1098 = vunpack.c.l.b16 %v289
        %v1099 = vunpack.c.h.b16 %v289
        %v1100 = vunpack.c.l.b16 %v290
        %v1101 = vunpack.c.h.b16 %v290
        %v1102 = vunpack.c.l.b16 %v291
        %v1103 = vunpack.c.h.b16 %v291
        %v1104 = vunpack.c.l.b16 %v292
        %v1105 = vunpack.c.h.b16 %v292
        %v1106 = vunpack.c.l.b16 %v293
        %v1107 = vunpack.c.h.b16 %v293
        %v1108 = vunpack.c.l.b16 %v294
        %v1109 = vunpack.c.h.b16 %v294
        %v1110 = vunpack.c.l.b16 %v295
        %v1111 = vunpack.c.h.b16 %v295
        %v1112 = vunpack.c.l.b16 %v296
        %v1113 = vunpack.c.h.b16 %v296
        %v1114 = vunpack.c.l.b16 %v297
        %v1115 = vunpack.c.h.b16 %v297
        %v1116 = vunpack.c.l.b16 %v298
        %v1117 = vunpack.c.h.b16 %v298
        %v1118 = vunpack.c.l.b16 %v299
        %v1119 = vunpack.c.h.b16 %v299
        %v1120 = vunpack.c.l.b16 %v300
        %v1121 = vunpack.c.h.b16 %v300
        %v1122 = vunpack.c.l.b16 %v301
        %v1123 = vunpack.c.h.b16 %v301
        %v1124 = vunpack.c.l.b16 %v302
        %v1125 = vunpack.c.h.b16 %v302
        %v1126 = vunpack.c.l.b16 %v303
        %v1127 = vpack.c.b16 %v1080, %v1080
        %v1128 = vpack.c.b16 %v1081, %v1081
        %v1129 = vpack.c.b16 %v1082, %v1082
        %v1130 = vpack.c.b16 %v1083, %v1083
        %v1131 = vpack.c.b16 %v1084, %v1084
        %v1132 = vpack.c.b16 %v1085, %v1085
        %v1133 = vpack.c.b16 %v1086, %v1086
        %v1134 = vpack.c.b16 %v1087, %v1087
        %v1135 = vpack.c.b16 %v1088, %v1088
        %v1136 = vpack.c.b16 %v1089, %v1089
        %v1137 = vpack.c.b16 %v1090, %v1090
        %v1138 = vpack.c.b16 %v1091, %v1091
        %v1139 = vpack.c.b16 %v1092, %v1092
        %v1140 = vpack.c.b16 %v1093, %v1093
        %v1141 = vpack.c.b16 %v1094, %v1094
        %v1142 = vpack.c.b16 %v1095, %v1095
        %v1143 = vpack.c.b16 %v1096, %v1096
        %v1144 = vpack.c.b16 %v1097, %v1097
        %v1145 = vpack.c.b16 %v1098, %v1098
        %v1146 = vpack.c.b16 %v1099, %v1099
        %v1147 = vpack.c.b16 %v1100, %v1100
        %v1148 = vpack.c.b16 %v1101, %v1101
        %v1149 = vpack.c.b16 %v1102, %v1102
        %v1150 = vpack.c.b16 %v1103, %v1103
        %v1151 = vpack.c.b16 %v1104, %v1104
        %v1152 = vpack.c.b16 %v1105, %v1105
        %v1153 = vpack.c.b16 %v1106, %v1106
        %v1154 = vpack.c.b16 %v1107, %v1107
        %v1155 = vpack.c.b16 %v1108, %v1108
        %v1156 = vpack.c.b16 %v1109, %v1109
        %v1157 = vpack.c.b16 %v1110, %v1110
        %v1158 = vpack.c.b16 %v1111, %v1111
        %v1159 = vpack.c.b16 %v1112, %v1112
        %v1160 = vpack.c.b16 %v1113, %v1113
        %v1161 = vpack.c.b16 %v1114, %v1114
        %v1162 = vpack.c.b16 %v1115, %v1115
        %v1163 = vpack.c.b16 %v1116, %v1116
        %v1164 = vpack.c.b16 %v1117, %v1117
        %v1165 = vpack.c.b16 %v1118, %v1118
        %v1166 = vpack.c.b16 %v1119, %v1119
        %v1167 = vpack.c.b16 %v1120, %v1120
        %v1168 = vpack.c.b16 %v1121, %v1121
        %v1169 = vpack.c.b16 %v1122, %v1122
        %v1170 = vpack.c.b16 %v1123, %v1123
        %v1171 = vpack.c.b16 %v1124, %v1124
        %v1172 = vpack.c.b16 %v1125, %v1125
        %v1173 = vpack.c.b16 %v1126, %v1126
        %v1973 = vunpack.c.l.b16 %v304
        %v1974 = vunpack.c.h.b16 %v304
        %v1975 = vunpack.c.l.b16 %v305
        %v1976 = vunpack.c.h.b16 %v305
        %v1977 = vunpack.c.l.b16 %v306
        %v1978 = vunpack.c.h.b16 %v306
        %v1979 = vunpack.c.l.b16 %v307
        %v1980 = vunpack.c.h.b16 %v307
        %v1981 = vunpack.c.l.b16 %v308
        %v1982 = vunpack.c.h.b16 %v308
        %v1983 = vunpack.c.l.b16 %v309
        %v1984 = vunpack.c.h.b16 %v309
        %v1985 = vunpack.c.l.b16 %v310
        %v1986 = vunpack.c.h.b16 %v310
        %v1987 = vunpack.c.l.b16 %v311
        %v1988 = vunpack.c.h.b16 %v311
        %v1989 = vunpack.c.l.b16 %v312
        %v1990 = vunpack.c.h.b16 %v312
        %v1991 = vunpack.c.l.b16 %v313
        %v1992 = vunpack.c.h.b16 %v313
        %v1993 = vunpack.c.l.b16 %v314
        %v1994 = vunpack.c.h.b16 %v314
        %v1995 = vunpack.c.l.b16 %v315
        %v1996 = vunpack.c.h.b16 %v315
        %v1997 = vunpack.c.l.b16 %v316
        %v1998 = vunpack.c.h.b16 %v316
        %v1999 = vunpack.c.l.b16 %v317
        %v2000 = vunpack.c.h.b16 %v317
        %v2001 = vunpack.c.l.b16 %v318
        %v2002 = vunpack.c.h.b16 %v318
        %v2003 = vunpack.c.l.b16 %v319
        %v2004 = vunpack.c.h.b16 %v319
        %v2005 = vunpack.c.l.b16 %v320
        %v2006 = vunpack.c.h.b16 %v320
        %v2007 = vunpack.c.l.b16 %v321
        %v2008 = vunpack.c.h.b16 %v321
        %v2009 = vunpack.c.l.b16 %v322
        %v2010 = vunpack.c.h.b16 %v322
        %v2011 = vunpack.c.l.b16 %v323
        %v2012 = vunpack.c.h.b16 %v323
        %v2013 = vunpack.c.l.b16 %v324
        %v2014 = vunpack.c.h.b16 %v324
        %v2015 = vunpack.c.l.b16 %v325
        %v2016 = vunpack.c.h.b16 %v325
        %v2017 = vunpack.c.l.b16 %v326
        %v2018 = vunpack.c.h.b16 %v326
        %v2019 = vunpack.c.l.b16 %v327
        %v2020 = vunpack.c.h.b16 %v327
        %v2021 = vunpack.c.l.b16 %v328
        %v2022 = vunpack.c.h.b16 %v328
        %v2023 = vunpack.c.l.b16 %v329
        %v2024 = vunpack.c.h.b16 %v329
        %v2025 = vunpack.c.l.b16 %v330
        %v2026 = vunpack.c.h.b16 %v330
        %v2027 = vunpack.c.l.b16 %v331
        %v2028 = vunpack.c.h.b16 %v331
        %v2029 = vunpack.c.l.b16 %v332
        %v2030 = vunpack.c.h.b16 %v332
        %v2031 = vunpack.c.l.b16 %v333
        %v2032 = vunpack.c.h.b16 %v333
        %v2033 = vunpack.c.l.b16 %v334
        %v2034 = vunpack.c.h.b16 %v334
        %v2035 = vunpack.c.l.b16 %v335
        %v2036 = vunpack.c.h.b16 %v335
        %v2037 = vunpack.c.l.b16 %v336
        %v2038 = vunpack.c.h.b16 %v336
        %v2039 = vunpack.c.l.b16 %v337
        %v2040 = vunpack.c.h.b16 %v337
        %v2041 = vunpack.c.l.b16 %v338
        %v2042 = vunpack.c.h.b16 %v338
        %v2043 = vunpack.c.l.b16 %v339
        %v2044 = vunpack.c.h.b16 %v339
        %v2045 = vunpack.c.l.b16 %v340
        %v2046 = vunpack.c.h.b16 %v340
        %v2047 = vunpack.c.l.b16 %v341
        %v2048 = vunpack.c.h.b16 %v341
        %v2049 = vunpack.c.l.b16 %v342
        %v2050 = vunpack.c.h.b16 %v342
        %v2051 = vunpack.c.l.b16 %v343
        %v2052 = vunpack.c.h.b16 %v343
        %v2053 = vunpack.c.l.b16 %v344
        %v2054 = vunpack.c.h.b16 %v344
        %v2055 = vunpack.c.l.b16 %v345
        %v2056 = vunpack.c.h.b16 %v345
        %v2057 = vunpack.c.l.b16 %v346
        %v2058 = vunpack.c.h.b16 %v346
        %v2059 = vunpack.c.l.b16 %v347
        %v2060 = vunpack.c.h.b16 %v347
        %v2061 = vunpack.c.l.b16 %v348
        %v2062 = vunpack.c.h.b16 %v348
        %v2063 = vunpack.c.l.b16 %v349
        %v2064 = vunpack.c.h.b16 %v349
        %v2065 = vunpack.c.l.b16 %v350
        %v2066 = vunpack.c.h.b16 %v350
        %v2067 = vunpack.c.l.b16 %v351
        %v2068 = vunpack.c.h.b16 %v351
        %v2069 = vunpack.c.l.b16 %v352
        %v2070 = vunpack.c.h.b16 %v352
        %v2071 = vunpack.c.l.b16 %v353
        %v2072 = vunpack.c.h.b16 %v353
        %v2073 = vunpack.c.l.b16 %v354
        %v2074 = vunpack.c.h.b16 %v354
        %v2075 = vunpack.c.l.b16 %v355
        %v2076 = vunpack.c.h.b16 %v355
        %v2077 = vunpack.c.l.b16 %v356
        %v2078 = vunpack.c.h.b16 %v356
        %v2079 = vunpack.c.l.b16 %v357
        %v2080 = vunpack.c.h.b16 %v357
        %v2081 = vunpack.c.l.b16 %v358
        %v2082 = vunpack.c.h.b16 %v358
        %v2083 = vunpack.c.l.b16 %v359
        %v2084 = vunpack.c.h.b16 %v359
        %v2085 = vunpack.c.l.b16 %v360
        %v2086 = vunpack.c.h.b16 %v360
        %v2087 = vunpack.c.l.b16 %v361
        %v2088 = vunpack.c.h.b16 %v361
        %v2089 = vunpack.c.l.b16 %v362
        %v2090 = vunpack.c.h.b16 %v362
        %v2091 = vunpack.c.l.b16 %v363
        %v2092 = vunpack.c.h.b16 %v363
        %v2093 = vunpack.c.l.b16 %v364
        %v2094 = vunpack.c.h.b16 %v364
        %v2095 = vunpack.c.l.b16 %v365
        %v2096 = vunpack.c.h.b16 %v365
        %v2097 = vunpack.c.l.b16 %v366
        %v2098 = vunpack.c.h.b16 %v366
        %v2099 = vunpack.c.l.b16 %v367
        %v2100 = vunpack.c.h.b16 %v367
        %v2101 = vunpack.c.l.b16 %v368
        %v2102 = vunpack.c.h.b16 %v368
        %v2103 = vunpack.c.l.b16 %v369
        %v2104 = vunpack.c.h.b16 %v369
        %v2105 = vunpack.c.l.b16 %v370
        %v2106 = vunpack.c.h.b16 %v370
        %v2107 = vunpack.c.l.b16 %v371
        %v2108 = vunpack.c.h.b16 %v371
        %v2109 = vunpack.c.l.b16 %v372
        %v2110 = vunpack.c.h.b16 %v372
        %v2111 = vunpack.c.l.b16 %v373
        %v2112 = vunpack.c.h.b16 %v373
        %v2113 = vunpack.c.l.b16 %v374
        %v2114 = vunpack.c.h.b16 %v374
        %v2115 = vunpack.c.l.b16 %v375
        %v2116 = vunpack.c.h.b16 %v375
        %v2117 = vunpack.c.l.b16 %v376
        %v2118 = vunpack.c.h.b16 %v376
        %v2119 = vunpack.c.l.b16 %v377
        %v2120 = vunpack.c.h.b16 %v377
        %v2121 = vunpack.c.l.b16 %v378
        %v2122 = vunpack.c.h.b16 %v378
        %v2123 = vunpack.c.l.b16 %v379
        %v2124 = vunpack.c.h.b16 %v379
        %v2125 = vunpack.c.l.b16 %v380
        %v2126 = vunpack.c.h.b16 %v380
        %v2127 = vunpack.c.l.b16 %v381
        %v2128 = vunpack.c.h.b16 %v381
        %v2129 = vunpack.c.l.b16 %v382
        %v2130 = vunpack.c.h.b16 %v382
        %v2131 = vunpack.c.l.b16 %v383
        %v2132 = vunpack.c.h.b16 %v383
        %v2133 = vunpack.c.l.b16 %v384
        %v2134 = vunpack.c.h.b16 %v384
        %v2135 = vunpack.c.l.b16 %v385
        %v2136 = vunpack.c.h.b16 %v385
        %v2137 = vunpack.c.l.b16 %v386
        %v2138 = vunpack.c.h.b16 %v386
        %v2139 = vunpack.c.l.b16 %v387
        %v2140 = vunpack.c.h.b16 %v387
        %v2141 = vunpack.c.l.b16 %v388
        %v2142 = vunpack.c.h.b16 %v388
        %v2143 = vunpack.c.l.b16 %v389
        %v2144 = vunpack.c.h.b16 %v389
        %v2145 = vunpack.c.l.b16 %v390
        %v2146 = vunpack.c.h.b16 %v390
        %v2147 = vunpack.c.l.b16 %v391
        %v2148 = vunpack.c.h.b16 %v391
        %v2149 = vunpack.c.l.b16 %v392
        %v2150 = vunpack.c.h.b16 %v392
        %v2151 = vunpack.c.l.b16 %v393
        %v2152 = vunpack.c.h.b16 %v393
        %v2153 = vunpack.c.l.b16 %v394
        %v2154 = vunpack.c.h.b16 %v394
        %v2155 = vunpack.c.l.b16 %v395
        %v2156 = vunpack.c.h.b16 %v395
        %v2157 = vunpack.c.l.b16 %v396
        %v2158 = vunpack.c.h.b16 %v396
        %v2159 = vunpack.c.l.b16 %v397
        %v2160 = vunpack.c.h.b16 %v397
        %v2161 = vunpack.c.l.b16 %v398
        %v2162 = vunpack.c.h.b16 %v398
        %v2163 = vunpack.c.l.b16 %v399
        %v2164 = vunpack.c.h.b16 %v399
        %v2165 = vunpack.c.l.b16 %v400
        %v2166 = vunpack.c.h.b16 %v400
        %v2167 = vunpack.c.l.b16 %v401
        %v2168 = vunpack.c.h.b16 %v401
        %v2169 = vunpack.c.l.b16 %v402
        %v2170 = vunpack.c.h.b16 %v402
        %v2171 = vunpack.c.l.b16 %v403
        %v2172 = vunpack.c.h.b16 %v403
        %v2173 = vunpack.c.l.b16 %v404
        %v2174 = vunpack.c.h.b16 %v404
        %v2175 = vunpack.c.l.b16 %v405
        %v2176 = vunpack.c.h.b16 %v405
        %v2177 = vunpack.c.l.b16 %v406
        %v2178 = vunpack.c.h.b16 %v406
        %v2179 = vunpack.c.l.b16 %v407
        %v2180 = vunpack.c.h.b16 %v407
        %v2181 = vunpack.c.l.b16 %v408
        %v2182 = vunpack.c.h.b16 %v408
        %v2183 = vunpack.c.l.b16 %v409
        %v2184 = vunpack.c.h.b16 %v409
        %v2185 = vunpack.c.l.b16 %v410
        %v2186 = vunpack.c.h.b16 %v410
        %v2187 = vunpack.c.l.b16 %v411
        %v2188 = vunpack.c.h.b16 %v411
        %v2189 = vunpack.c.l.b16 %v412
        %v2190 = vunpack.c.h.b16 %v412
        %v2191 = vunpack.c.l.b16 %v413
        %v2192 = vunpack.c.h.b16 %v413
        %v2193 = vunpack.c.l.b16 %v414
        %v2194 = vunpack.c.h.b16 %v414
        %v2195 = vunpack.c.l.b16 %v415
        %v2196 = vunpack.c.h.b16 %v415
        %v2197 = vunpack.c.l.b16 %v416
        %v2198 = vunpack.c.h.b16 %v416
        %v2199 = vunpack.c.l.b16 %v417
        %v2200 = vunpack.c.h.b16 %v417
        %v2201 = vunpack.c.l.b16 %v418
        %v2202 = vunpack.c.h.b16 %v418
        %v2203 = vunpack.c.l.b16 %v419
        %v2204 = vunpack.c.h.b16 %v419
        %v2205 = vunpack.c.l.b16 %v420
        %v2206 = vunpack.c.h.b16 %v420
        %v2207 = vunpack.c.l.b16 %v421
        %v2208 = vunpack.c.h.b16 %v421
        %v2209 = vunpack.c.l.b16 %v422
        %v2210 = vunpack.c.h.b16 %v422
        %v2211 = vunpack.c.l.b16 %v423
        %v2212 = vunpack.c.h.b16 %v423
        %v2213 = vunpack.c.l.b16 %v424
        %v2214 = vunpack.c.h.b16 %v424
        %v2215 = vunpack.c.l.b16 %v425
        %v2216 = vunpack.c.h.b16 %v425
        %v2217 = vunpack.c.l.b16 %v426
        %v2218 = vunpack.c.h.b16 %v426
        %v2219 = vunpack.c.l.b16 %v427
        %v2220 = vunpack.c.h.b16 %v427
        %v2221 = vunpack.c.l.b16 %v428
        %v2222 = vunpack.c.h.b16 %v428
        %v2223 = vunpack.c.l.b16 %v429
        %v2224 = vunpack.c.h.b16 %v429
        %v2225 = vunpack.c.l.b16 %v430
        %v2226 = vunpack.c.h.b16 %v430
        %v2227 = vunpack.c.l.b16 %v431
        %v2228 = vunpack.c.h.b16 %v431
        %v2229 = vunpack.c.l.b16 %v432
        %v2230 = vunpack.c.h.b16 %v432
        %v2231 = vunpack.c.l.b16 %v433
        %v2232 = vunpack.c.h.b16 %v433
        %v2233 = vunpack.c.l.b16 %v434
        %v2234 = vunpack.c.h.b16 %v434
        %v2235 = vunpack.c.l.b16 %v435
        %v2236 = vunpack.c.h.b16 %v435
        %v2237 = vunpack.c.l.b16 %v436
        %v2238 = vunpack.c.h.b16 %v436
        %v2239 = vunpack.c.l.b16 %v437
        %v2240 = vunpack.c.h.b16 %v437
        %v2241 = vunpack.c.l.b16 %v438
        %v2242 = vunpack.c.h.b16 %v438
        %v2243 = vunpack.c.l.b16 %v439
        %v2244 = vunpack.c.h.b16 %v439
        %v2245 = vunpack.c.l.b16 %v440
        %v2246 = vunpack.c.h.b16 %v440
        %v2247 = vunpack.c.l.b16 %v441
        %v2248 = vunpack.c.h.b16 %v441
        %v2249 = vunpack.c.l.b16 %v442
        %v2250 = vunpack.c.h.b16 %v442
        %v2251 = vunpack.c.l.b16 %v443
        %v2252 = vunpack.c.h.b16 %v443
        %v2253 = vunpack.c.l.b16 %v444
        %v2254 = vunpack.c.h.b16 %v444
        %v2255 = vunpack.c.l.b16 %v445
        %v2256 = vunpack.c.h.b16 %v445
        %v2257 = vunpack.c.l.b16 %v446
        %v2258 = vunpack.c.h.b16 %v446
        %v2259 = vunpack.c.l.b16 %v447
        %v2260 = vunpack.c.h.b16 %v447
        %v2261 = vunpack.c.l.b16 %v448
        %v2262 = vunpack.c.h.b16 %v448
        %v2263 = vunpack.c.l.b16 %v449
        %v2264 = vunpack.c.h.b16 %v449
        %v2265 = vunpack.c.l.b16 %v450
        %v2266 = vunpack.c.h.b16 %v450
        %v2267 = vunpack.c.l.b16 %v451
        %v2268 = vunpack.c.h.b16 %v451
        %v2269 = vunpack.c.l.b16 %v452
        %v2270 = vunpack.c.h.b16 %v452
        %v2271 = vunpack.c.l.b16 %v453
        %v2272 = vunpack.c.h.b16 %v453
        %v2273 = vunpack.c.l.b16 %v454
        %v2274 = vunpack.c.h.b16 %v454
        %v2275 = vunpack.c.l.b16 %v455
        %v2276 = vunpack.c.h.b16 %v455
        %v2277 = vunpack.c.l.b16 %v456
        %v2278 = vunpack.c.h.b16 %v456
        %v2279 = vunpack.c.l.b16 %v457
        %v2280 = vunpack.c.h.b16 %v457
        %v2281 = vunpack.c.l.b16 %v458
        %v2282 = vunpack.c.h.b16 %v458
        %v2283 = vunpack.c.l.b16 %v459
        %v2284 = vunpack.c.h.b16 %v459
        %v2285 = vunpack.c.l.b16 %v460
        %v2286 = vunpack.c.h.b16 %v460
        %v2287 = vunpack.c.l.b16 %v461
        %v2288 = vunpack.c.h.b16 %v461
        %v2289 = vunpack.c.l.b16 %v462
        %v2290 = vunpack.c.h.b16 %v462
        %v2291 = vunpack.c.l.b16 %v463
        %v2292 = vunpack.c.h.b16 %v463
        %v2293 = vunpack.c.l.b16 %v464
        %v2294 = vunpack.c.h.b16 %v464
        %v2295 = vunpack.c.l.b16 %v465
        %v2296 = vunpack.c.h.b16 %v465
        %v2297 = vunpack.c.l.b16 %v466
        %v2298 = vunpack.c.h.b16 %v466
        %v2299 = vunpack.c.l.b16 %v467
        %v2300 = vunpack.c.h.b16 %v467
        %v2301 = vunpack.c.l.b16 %v468
        %v2302 = vunpack.c.h.b16 %v468
        %v2303 = vunpack.c.l.b16 %v469
        %v2304 = vunpack.c.h.b16 %v469
        %v2305 = vunpack.c.l.b16 %v470
        %v2306 = vunpack.c.h.b16 %v470
        %v2307 = vunpack.c.l.b16 %v471
        %v2308 = vunpack.c.h.b16 %v471
        %v2309 = vunpack.c.l.b16 %v472
        %v2310 = vunpack.c.h.b16 %v472
        %v2311 = vunpack.c.l.b16 %v473
        %v2312 = vunpack.c.h.b16 %v473
        %v2313 = vunpack.c.l.b16 %v474
        %v2314 = vunpack.c.h.b16 %v474
        %v2315 = vunpack.c.l.b16 %v475
        %v2316 = vunpack.c.h.b16 %v475
        %v2317 = vunpack.c.l.b16 %v476
        %v2318 = vunpack.c.h.b16 %v476
        %v2319 = vunpack.c.l.b16 %v477
        %v2320 = vunpack.c.h.b16 %v477
        %v2321 = vunpack.c.l.b16 %v478
        %v2322 = vunpack.c.h.b16 %v478
        %v2323 = vunpack.c.l.b16 %v479
        %v2324 = vunpack.c.h.b16 %v479
        %v2325 = vunpack.c.l.b16 %v480
        %v2326 = vunpack.c.h.b16 %v480
        %v2327 = vunpack.c.l.b16 %v481
        %v2328 = vunpack.c.h.b16 %v481
        %v2329 = vunpack.c.l.b16 %v482
        %v2330 = vunpack.c.h.b16 %v482
        %v2331 = vunpack.c.l.b16 %v483
        %v2332 = vunpack.c.h.b16 %v483
        %v2333 = vunpack.c.l.b16 %v484
        %v2334 = vunpack.c.h.b16 %v484
        %v2335 = vunpack.c.l.b16 %v485
        %v2336 = vunpack.c.h.b16 %v485
        %v2337 = vunpack.c.l.b16 %v486
        %v2338 = vunpack.c.h.b16 %v486
        %v2339 = vunpack.c.l.b16 %v487
        %v2340 = vunpack.c.h.b16 %v487
        %v2341 = vunpack.c.l.b16 %v488
        %v2342 = vunpack.c.h.b16 %v488
        %v2343 = vunpack.c.l.b16 %v489
        %v2344 = vunpack.c.h.b16 %v489
        %v2345 = vunpack.c.l.b16 %v490
        %v2346 = vunpack.c.h.b16 %v490
        %v2347 = vunpack.c.l.b16 %v491
        %v2348 = vunpack.c.h.b16 %v491
        %v2349 = vunpack.c.l.b16 %v492
        %v2350 = vunpack.c.h.b16 %v492
        %v2351 = vunpack.c.l.b16 %v493
        %v2352 = vunpack.c.h.b16 %v493
        %v2353 = vunpack.c.l.b16 %v494
        %v2354 = vunpack.c.h.b16 %v494
        %v2355 = vunpack.c.l.b16 %v495
        %v2356 = vunpack.c.h.b16 %v495
        %v2357 = vunpack.c.l.b16 %v496
        %v2358 = vunpack.c.h.b16 %v496
        %v2359 = vunpack.c.l.b16 %v497
        %v2360 = vunpack.c.h.b16 %v497
        %v2361 = vunpack.c.l.b16 %v498
        %v2362 = vunpack.c.h.b16 %v498
        %v2363 = vunpack.c.l.b16 %v499
        %v2364 = vunpack.c.h.b16 %v499
        %v2365 = vunpack.c.l.b16 %v500
        %v2366 = vunpack.c.h.b16 %v500
        %v2367 = vunpack.c.l.b16 %v501
        %v2368 = vunpack.c.h.b16 %v501
        %v2369 = vunpack.c.l.b16 %v502
        %v2370 = vunpack.c.h.b16 %v502
        %v2371 = vunpack.c.l.b16 %v503
        %v2372 = vunpack.c.h.b16 %v503
        %v2373 = vunpack.c.l.b16 %v504
        %v2374 = vunpack.c.h.b16 %v504
        %v2375 = vunpack.c.l.b16 %v505
        %v2376 = vunpack.c.h.b16 %v505
        %v2377 = vunpack.c.l.b16 %v506
        %v2378 = vunpack.c.h.b16 %v506
        %v2379 = vunpack.c.l.b16 %v507
        %v2380 = vunpack.c.h.b16 %v507
        %v2381 = vunpack.c.l.b16 %v508
        %v2382 = vunpack.c.h.b16 %v508
        %v2383 = vunpack.c.l.b16 %v509
        %v2384 = vunpack.c.h.b16 %v509
        %v2385 = vunpack.c.l.b16 %v510
        %v2386 = vunpack.c.h.b16 %v510
        %v2387 = vunpack.c.l.b16 %v511
        %v2388 = vunpack.c.h.b16 %v511
        %v2389 = vunpack.c.l.b16 %v512
        %v2390 = vunpack.c.h.b16 %v512
        %v2391 = vunpack.c.l.b16 %v513
        %v2392 = vunpack.c.h.b16 %v513
        %v2393 = vunpack.c.l.b16 %v514
        %v2394 = vunpack.c.h.b16 %v514
        %v2395 = vunpack.c.l.b16 %v515
        %v2396 = vunpack.c.h.b16 %v515
        %v2397 = vunpack.c.l.b16 %v516
        %v2398 = vunpack.c.h.b16 %v516
        %v2399 = vunpack.c.l.b16 %v517
        %v2400 = vunpack.c.h.b16 %v517
        %v2401 = vunpack.c.l.b16 %v518
        %v2402 = vunpack.c.h.b16 %v518
        %v2403 = vunpack.c.l.b16 %v519
        %v2404 = vunpack.c.h.b16 %v519
        %v2405 = vunpack.c.l.b16 %v520
        %v2406 = vunpack.c.h.b16 %v520
        %v2407 = vunpack.c.l.b16 %v521
        %v2408 = vunpack.c.h.b16 %v521
        %v2409 = vunpack.c.l.b16 %v522
        %v2410 = vunpack.c.h.b16 %v522
        %v2411 = vunpack.c.l.b16 %v523
        %v2412 = vunpack.c.h.b16 %v523
        %v2413 = vunpack.c.l.b16 %v524
        %v2414 = vunpack.c.h.b16 %v524
        %v2415 = vunpack.c.l.b16 %v525
        %v2416 = vunpack.c.h.b16 %v525
        %v2417 = vunpack.c.l.b16 %v526
        %v2418 = vunpack.c.h.b16 %v526
        %v2419 = vunpack.c.l.b16 %v527
        %v2420 = vunpack.c.h.b16 %v527
        %v2421 = vunpack.c.l.b16 %v528
        %v2422 = vunpack.c.h.b16 %v528
        %v2423 = vunpack.c.l.b16 %v529
        %v2424 = vunpack.c.h.b16 %v529
        %v2425 = vunpack.c.l.b16 %v530
        %v2426 = vunpack.c.h.b16 %v530
        %v2427 = vunpack.c.l.b16 %v531
        %v2428 = vunpack.c.h.b16 %v531
        %v2429 = vunpack.c.l.b16 %v532
        %v2430 = vunpack.c.h.b16 %v532
        %v2431 = vunpack.c.l.b16 %v533
        %v2432 = vunpack.c.h.b16 %v533
        %v2433 = vunpack.c.l.b16 %v534
        %v2434 = vunpack.c.h.b16 %v534
        %v2435 = vunpack.c.l.b16 %v535
        %v2436 = vunpack.c.h.b16 %v535
        %v2437 = vunpack.c.l.b16 %v536
        %v2438 = vunpack.c.h.b16 %v536
        %v2439 = vunpack.c.l.b16 %v537
        %v2440 = vunpack.c.h.b16 %v537
        %v2441 = vunpack.c.l.b16 %v538
        %v2442 = vunpack.c.h.b16 %v538
        %v2443 = vunpack.c.l.b16 %v539
        %v2444 = vunpack.c.h.b16 %v539
        %v2445 = vunpack.c.l.b16 %v540
        %v2446 = vunpack.c.h.b16 %v540
        %v2447 = vunpack.c.l.b16 %v541
        %v2448 = vunpack.c.h.b16 %v541
        %v2449 = vunpack.c.l.b16 %v542
        %v2450 = vunpack.c.h.b16 %v542
        %v2451 = vunpack.c.l.b16 %v543
        %v2452 = vunpack.c.h.b16 %v543
        %v2453 = vunpack.c.l.b16 %v544
        %v2454 = vunpack.c.h.b16 %v544
        %v2455 = vunpack.c.l.b16 %v545
        %v2456 = vunpack.c.h.b16 %v545
        %v2457 = vunpack.c.l.b16 %v546
        %v2458 = vunpack.c.h.b16 %v546
        %v2459 = vunpack.c.l.b16 %v547
        %v2460 = vunpack.c.h.b16 %v547
        %v2461 = vunpack.c.l.b16 %v548
        %v2462 = vunpack.c.h.b16 %v548
        %v2463 = vunpack.c.l.b16 %v549
        %v2464 = vunpack.c.h.b16 %v549
        %v2465 = vunpack.c.l.b16 %v550
        %v2466 = vunpack.c.h.b16 %v550
        %v2467 = vunpack.c.l.b16 %v551
        %v2468 = vunpack.c.h.b16 %v551
        %v2469 = vunpack.c.l.b16 %v552
        %v2470 = vunpack.c.h.b16 %v552
        %v2471 = vunpack.c.l.b16 %v553
        %v2472 = vunpack.c.h.b16 %v553
        %v2473 = vunpack.c.l.b16 %v554
        %v2474 = vunpack.c.h.b16 %v554
        %v2475 = vunpack.c.l.b16 %v555
        %v2476 = vunpack.c.h.b16 %v555
        %v2477 = vunpack.c.l.b16 %v556
        %v2478 = vunpack.c.h.b16 %v556
        %v2479 = vunpack.c.l.b16 %v557
        %v2480 = vunpack.c.h.b16 %v557
        %v2481 = vunpack.c.l.b16 %v558
        %v2482 = vunpack.c.h.b16 %v558
        %v2483 = vunpack.c.l.b16 %v559
        %v2484 = vunpack.c.h.b16 %v559
        %v2485 = vunpack.c.l.b16 %v560
        %v2486 = vunpack.c.h.b16 %v560
        %v2487 = vunpack.c.l.b16 %v561
        %v2488 = vunpack.c.h.b16 %v561
        %v2489 = vunpack.c.l.b16 %v562
        %v2490 = vunpack.c.h.b16 %v562
        %v2491 = vunpack.c.l.b16 %v563
        %v2492 = vunpack.c.h.b16 %v563
        %v2493 = vunpack.c.l.b16 %v564
        %v2494 = vunpack.c.h.b16 %v564
        %v2495 = vunpack.c.l.b16 %v565
        %v2496 = vunpack.c.h.b16 %v565
        %v2497 = vunpack.c.l.b16 %v566
        %v2498 = vunpack.c.h.b16 %v566
        %v2499 = vunpack.c.l.b16 %v567
        %v2500 = vunpack.c.h.b16 %v567
        %v2501 = vunpack.c.l.b16 %v568
        %v2502 = vunpack.c.h.b16 %v568
        %v2503 = vunpack.c.l.b16 %v569
        %v2504 = vunpack.c.h.b16 %v569
        %v2505 = vunpack.c.l.b16 %v570
        %v2506 = vunpack.c.h.b16 %v570
        %v2507 = vunpack.c.l.b16 %v571
        %v2508 = vunpack.c.h.b16 %v571
        %v2509 = vunpack.c.l.b16 %v572
        %v2510 = vunpack.c.h.b16 %v572
        %v2511 = vunpack.c.l.b16 %v573
        %v2512 = vunpack.c.h.b16 %v573
        %v2513 = vunpack.c.l.b16 %v574
        %v2514 = vunpack.c.h.b16 %v574
        %v2515 = vunpack.c.l.b16 %v575
        %v2516 = vunpack.c.h.b16 %v575
        %v2517 = vunpack.c.l.b16 %v576
        %v2518 = vunpack.c.h.b16 %v576
        %v2519 = vunpack.c.l.b16 %v577
        %v2520 = vunpack.c.h.b16 %v577
        %v2521 = vunpack.c.l.b16 %v578
        %v2522 = vunpack.c.h.b16 %v578
        %v2523 = vunpack.c.l.b16 %v579
        %v2524 = vunpack.c.h.b16 %v579
        %v2525 = vunpack.c.l.b16 %v580
        %v2526 = vunpack.c.h.b16 %v580
        %v2527 = vunpack.c.l.b16 %v581
        %v2528 = vunpack.c.h.b16 %v581
        %v2529 = vunpack.c.l.b16 %v582
        %v2530 = vunpack.c.h.b16 %v582
        %v2531 = vunpack.c.l.b16 %v583
        %v2532 = vunpack.c.h.b16 %v583
        %v2533 = vunpack.c.l.b16 %v584
        %v2534 = vunpack.c.h.b16 %v584
        %v2535 = vunpack.c.l.b16 %v585
        %v2536 = vunpack.c.h.b16 %v585
        %v2537 = vunpack.c.l.b16 %v586
        %v2538 = vunpack.c.h.b16 %v586
        %v2539 = vunpack.c.l.b16 %v587
        %v2540 = vunpack.c.h.b16 %v587
        %v2541 = vunpack.c.l.b16 %v588
        %v2542 = vunpack.c.h.b16 %v588
        %v2543 = vunpack.c.l.b16 %v589
        %v2544 = vunpack.c.h.b16 %v589
        %v2545 = vunpack.c.l.b16 %v590
        %v2546 = vunpack.c.h.b16 %v590
        %v2547 = vunpack.c.l.b16 %v591
        %v2548 = vunpack.c.h.b16 %v591
        %v2549 = vunpack.c.l.b16 %v592
        %v2550 = vunpack.c.h.b16 %v592
        %v2551 = vunpack.c.l.b16 %v593
        %v2552 = vunpack.c.h.b16 %v593
        %v2553 = vunpack.c.l.b16 %v594
        %v2554 = vunpack.c.h.b16 %v594
        %v2555 = vunpack.c.l.b16 %v595
        %v2556 = vunpack.c.h.b16 %v595
        %v2557 = vunpack.c.l.b16 %v596
        %v2558 = vunpack.c.h.b16 %v596
        %v2559 = vunpack.c.l.b16 %v597
        %v2560 = vunpack.c.h.b16 %v597
        %v2561 = vunpack.c.l.b16 %v598
        %v2562 = vunpack.c.h.b16 %v598
        %v2563 = vunpack.c.l.b16 %v599
        %v2564 = vunpack.c.h.b16 %v599
        %v2565 = vunpack.c.l.b16 %v600
        %v2566 = vunpack.c.h.b16 %v600
        %v2567 = vunpack.c.l.b16 %v601
        %v2568 = vunpack.c.h.b16 %v601
        %v2569 = vunpack.c.l.b16 %v602
        %v2570 = vunpack.c.h.b16 %v602
        %v2571 = vunpack.c.l.b16 %v603
        %v2572 = vunpack.c.h.b16 %v603
        %v2573 = vunpack.c.l.b16 %v604
        %v2574 = vunpack.c.h.b16 %v604
        %v2575 = vunpack.c.l.b16 %v605
        %v2576 = vunpack.c.h.b16 %v605
        %v2577 = vunpack.c.l.b16 %v606
        %v2578 = vunpack.c.h.b16 %v606
        %v2579 = vunpack.c.l.b16 %v607
        %v2580 = vunpack.c.h.b16 %v607
        %v2581 = vunpack.c.l.b16 %v608
        %v2582 = vunpack.c.h.b16 %v608
        %v2583 = vunpack.c.l.b16 %v609
        %v2584 = vunpack.c.h.b16 %v609
        %v2585 = vunpack.c.l.b16 %v610
        %v2586 = vunpack.c.h.b16 %v610
        %v2587 = vunpack.c.l.b16 %v611
        %v2588 = vunpack.c.h.b16 %v611
        %v2589 = vunpack.c.l.b16 %v612
        %v2590 = vunpack.c.h.b16 %v612
        %v2591 = vunpack.c.l.b16 %v613
        %v2592 = vunpack.c.h.b16 %v613
        %v2593 = vunpack.c.l.b16 %v614
        %v2594 = vunpack.c.h.b16 %v614
        %v2595 = vunpack.c.l.b16 %v615
        %v2596 = vunpack.c.h.b16 %v615
        %v2597 = vunpack.c.l.b16 %v616
        %v2598 = vunpack.c.h.b16 %v616
        %v2599 = vunpack.c.l.b16 %v617
        %v2600 = vunpack.c.h.b16 %v617
        %v2601 = vunpack.c.l.b16 %v618
        %v2602 = vunpack.c.h.b16 %v618
        %v2603 = vunpack.c.l.b16 %v619
        %v2604 = vunpack.c.h.b16 %v619
        %v2605 = vunpack.c.l.b16 %v620
        %v2606 = vunpack.c.h.b16 %v620
        %v2607 = vunpack.c.l.b16 %v621
        %v2608 = vunpack.c.h.b16 %v621
        %v2609 = vunpack.c.l.b16 %v622
        %v2610 = vunpack.c.h.b16 %v622
        %v2611 = vunpack.c.l.b16 %v623
        %v2612 = vunpack.c.h.b16 %v623
        %v2613 = vunpack.c.l.b16 %v624
        %v2614 = vunpack.c.h.b16 %v624
        %v2615 = vunpack.c.l.b16 %v625
        %v2616 = vunpack.c.h.b16 %v625
        %v2617 = vunpack.c.l.b16 %v626
        %v2618 = vunpack.c.h.b16 %v626
        %v2619 = vunpack.c.l.b16 %v627
        %v2620 = vunpack.c.h.b16 %v627
        %v2621 = vunpack.c.l.b16 %v628
        %v2622 = vunpack.c.h.b16 %v628
        %v2623 = vunpack.c.l.b16 %v629
        %v2624 = vunpack.c.h.b16 %v629
        %v2625 = vunpack.c.l.b16 %v630
        %v2626 = vunpack.c.h.b16 %v630
        %v2627 = vunpack.c.l.b16 %v631
        %v2628 = vunpack.c.h.b16 %v631
        %v2629 = vunpack.c.l.b16 %v632
        %v2630 = vunpack.c.h.b16 %v632
        %v2631 = vunpack.c.l.b16 %v633
        %v2632 = vunpack.c.h.b16 %v633
        %v2633 = vunpack.c.l.b16 %v634
        %v2634 = vunpack.c.h.b16 %v634
        %v2635 = vunpack.c.l.b16 %v635
        %v2636 = vunpack.c.h.b16 %v635
        %v2637 = vunpack.c.l.b16 %v636
        %v2638 = vunpack.c.h.b16 %v636
        %v2639 = vunpack.c.l.b16 %v637
        %v2640 = vunpack.c.h.b16 %v637
        %v2641 = vunpack.c.l.b16 %v638
        %v2642 = vunpack.c.h.b16 %v638
        %v2643 = vunpack.c.l.b16 %v639
        %v2644 = vunpack.c.h.b16 %v639
        %v2645 = vunpack.c.l.b16 %v640
        %v2646 = vunpack.c.h.b16 %v640
        %v2647 = vunpack.c.l.b16 %v641
        %v2648 = vunpack.c.h.b16 %v641
        %v2649 = vunpack.c.l.b16 %v642
        %v2650 = vunpack.c.h.b16 %v642
        %v2651 = vunpack.c.l.b16 %v643
        %v2652 = vunpack.c.h.b16 %v643
        %v2653 = vunpack.c.l.b16 %v644
        %v2654 = vunpack.c.h.b16 %v644
        %v2655 = vunpack.c.l.b16 %v645
        %v2656 = vunpack.c.h.b16 %v645
        %v2657 = vunpack.c.l.b16 %v646
        %v2658 = vunpack.c.h.b16 %v646
        %v2659 = vunpack.c.l.b16 %v647
        %v2660 = vunpack.c.h.b16 %v647
        %v2661 = vunpack.c.l.b16 %v648
        %v2662 = vunpack.c.h.b16 %v648
        %v2663 = vunpack.c.l.b16 %v649
        %v2664 = vunpack.c.h.b16 %v649
        %v2665 = vunpack.c.l.b16 %v650
        %v2666 = vunpack.c.h.b16 %v650
        %v2667 = vunpack.c.l.b16 %v651
        %v2668 = vunpack.c.h.b16 %v651
        %v2669 = vunpack.c.l.b16 %v652
        %v2670 = vunpack.c.h.b16 %v652
        %v2671 = vunpack.c.l.b16 %v653
        %v2672 = vunpack.c.h.b16 %v653
        %v2673 = vunpack.c.l.b16 %v654
        %v2674 = vunpack.c.h.b16 %v654
        %v2675 = vunpack.c.l.b16 %v655
        %v2676 = vunpack.c.h.b16 %v655
        %v2677 = vunpack.c.l.b16 %v656
        %v2678 = vunpack.c.h.b16 %v656
        %v2679 = vunpack.c.l.b16 %v657
        %v2680 = vunpack.c.h.b16 %v657
        %v2681 = vunpack.c.l.b16 %v658
        %v2682 = vunpack.c.h.b16 %v658
        %v2683 = vunpack.c.l.b16 %v659
        %v2684 = vunpack.c.h.b16 %v659
        %v2685 = vunpack.c.l.b16 %v660
        %v2686 = vunpack.c.h.b16 %v660
        %v2687 = vunpack.c.l.b16 %v661
        %v2688 = vunpack.c.h.b16 %v661
        %v2689 = vunpack.c.l.b16 %v662
        %v2690 = vunpack.c.h.b16 %v662
        %v2691 = vunpack.c.l.b16 %v663
        %v2692 = vunpack.c.h.b16 %v663
        %v2693 = vunpack.c.l.b16 %v664
        %v2694 = vunpack.c.h.b16 %v664
        %v2695 = vunpack.c.l.b16 %v665
        %v2696 = vunpack.c.h.b16 %v665
        %v2697 = vunpack.c.l.b16 %v666
        %v2698 = vunpack.c.h.b16 %v666
        %v2699 = vunpack.c.l.b16 %v667
        %v2700 = vunpack.c.h.b16 %v667
        %v2701 = vunpack.c.l.b16 %v668
        %v2702 = vunpack.c.h.b16 %v668
        %v2703 = vunpack.c.l.b16 %v669
        %v2704 = vunpack.c.h.b16 %v669
        %v2705 = vunpack.c.l.b16 %v670
        %v2706 = vunpack.c.h.b16 %v670
        %v2707 = vunpack.c.l.b16 %v671
        %v2708 = vunpack.c.h.b16 %v671
        %v2709 = vunpack.c.l.b16 %v672
        %v2710 = vunpack.c.h.b16 %v672
        %v2711 = vunpack.c.l.b16 %v673
        %v2712 = vunpack.c.h.b16 %v673
        %v2713 = vunpack.c.l.b16 %v674
        %v2714 = vunpack.c.h.b16 %v674
        %v2715 = vunpack.c.l.b16 %v675
        %v2716 = vunpack.c.h.b16 %v675
        %v2717 = vunpack.c.l.b16 %v676
        %v2718 = vunpack.c.h.b16 %v676
        %v2719 = vunpack.c.l.b16 %v677
        %v2720 = vunpack.c.h.b16 %v677
        %v2721 = vunpack.c.l.b16 %v678
        %v2722 = vunpack.c.h.b16 %v678
        %v2723 = vunpack.c.l.b16 %v679
        %v2724 = vunpack.c.h.b16 %v679
        %v2725 = vunpack.c.l.b16 %v680
        %v2726 = vunpack.c.h.b16 %v680
        %v2727 = vunpack.c.l.b16 %v681
        %v2728 = vunpack.c.h.b16 %v681
        %v2729 = vunpack.c.l.b16 %v682
        %v2730 = vunpack.c.h.b16 %v682
        %v2731 = vunpack.c.l.b16 %v683
        %v2732 = vunpack.c.h.b16 %v683
        %v2733 = vunpack.c.l.b16 %v684
        %v2734 = vunpack.c.h.b16 %v684
        %v2735 = vunpack.c.l.b16 %v685
        %v2736 = vunpack.c.h.b16 %v685
        %v2737 = vunpack.c.l.b16 %v686
        %v2738 = vunpack.c.h.b16 %v686
        %v2739 = vunpack.c.l.b16 %v687
        %v2740 = vunpack.c.h.b16 %v687
        %v2741 = vunpack.c.l.b16 %v688
        %v2742 = vunpack.c.h.b16 %v688
        %v2743 = vunpack.c.l.b16 %v689
        %v2744 = vunpack.c.h.b16 %v689
        %v2745 = vunpack.c.l.b16 %v690
        %v2746 = vunpack.c.h.b16 %v690
        %v2747 = vunpack.c.l.b16 %v691
        %v2748 = vunpack.c.h.b16 %v691
        %v2749 = vunpack.c.l.b16 %v692
        %v2750 = vunpack.c.h.b16 %v692
        %v2751 = vunpack.c.l.b16 %v693
        %v2752 = vunpack.c.h.b16 %v693
        %v2753 = vunpack.c.l.b16 %v694
        %v2754 = vunpack.c.h.b16 %v694
        %v2755 = vunpack.c.l.b16 %v695
        %v2756 = vunpack.c.h.b16 %v695
        %v2757 = vunpack.c.l.b16 %v696
        %v2758 = vunpack.c.h.b16 %v696
        %v2759 = vunpack.c.l.b16 %v697
        %v2760 = vunpack.c.h.b16 %v697
        %v2761 = vunpack.c.l.b16 %v698
        %v2762 = vunpack.c.h.b16 %v698
        %v2763 = vunpack.c.l.b16 %v699
        %v2764 = vunpack.c.h.b16 %v699
        %v2765 = vunpack.c.l.b16 %v700
        %v2766 = vunpack.c.h.b16 %v700
        %v2767 = vunpack.c.l.b16 %v701
        %v2768 = vunpack.c.h.b16 %v701
        %v2769 = vunpack.c.l.b16 %v702
        %v2770 = vunpack.c.h.b16 %v702
        %v2771 = vunpack.c.l.b16 %v703
        %v2772 = vunpack.c.h.b16 %v703
        %v2773 = vunpack.c.l.b16 %v704
        %v2774 = vunpack.c.h.b16 %v704
        %v2775 = vunpack.c.l.b16 %v705
        %v2776 = vunpack.c.h.b16 %v705
        %v2777 = vunpack.c.l.b16 %v706
        %v2778 = vunpack.c.h.b16 %v706
        %v2779 = vunpack.c.l.b16 %v707
        %v2780 = vunpack.c.h.b16 %v707
        %v2781 = vunpack.c.l.b16 %v708
        %v2782 = vunpack.c.h.b16 %v708
        %v2783 = vunpack.c.l.b16 %v709
        %v2784 = vunpack.c.h.b16 %v709
        %v2785 = vunpack.c.l.b16 %v710
        %v2786 = vunpack.c.h.b16 %v710
        %v2787 = vunpack.c.l.b16 %v711
        %v2788 = vunpack.c.h.b16 %v711
        %v2789 = vunpack.c.l.b16 %v712
        %v2790 = vunpack.c.h.b16 %v712
        %v2791 = vunpack.c.l.b16 %v713
        %v2792 = vunpack.c.h.b16 %v713
        %v2793 = vunpack.c.l.b16 %v714
        %v2794 = vunpack.c.h.b16 %v714
        %v2795 = vunpack.c.l.b16 %v715
        %v2796 = vunpack.c.h.b16 %v715
        %v2797 = vunpack.c.l.b16 %v716
        %v2798 = vunpack.c.h.b16 %v716
        %v2799 = vunpack.c.l.b16 %v717
        %v2800 = vunpack.c.h.b16 %v717
        %v2801 = vunpack.c.l.b16 %v718
        %v2802 = vunpack.c.h.b16 %v718
        %v2803 = vunpack.c.l.b16 %v719
        %v2804 = vunpack.c.h.b16 %v719
        %v2805 = vunpack.c.l.b16 %v720
        %v2806 = vunpack.c.h.b16 %v720
        %v2807 = vunpack.c.l.b16 %v721
        %v2808 = vunpack.c.h.b16 %v721
        %v2809 = vunpack.c.l.b16 %v722
        %v2810 = vunpack.c.h.b16 %v722
        %v2811 = vunpack.c.l.b16 %v723
        %v2812 = vunpack.c.h.b16 %v723
        %v2813 = vunpack.c.l.b16 %v724
        %v2814 = vunpack.c.h.b16 %v724
        %v2815 = vunpack.c.l.b16 %v725
        %v2816 = vunpack.c.h.b16 %v725
        %v2817 = vunpack.c.l.b16 %v726
        %v2818 = vunpack.c.h.b16 %v726
        %v2819 = vunpack.c.l.b16 %v727
        %v2820 = vunpack.c.h.b16 %v727
        %v2821 = vunpack.c.l.b16 %v728
        %v2822 = vunpack.c.h.b16 %v728
        %v2823 = vunpack.c.l.b16 %v729
        %v2824 = vunpack.c.h.b16 %v729
        %v2825 = vunpack.c.l.b16 %v730
        %v2826 = vunpack.c.h.b16 %v730
        %v2827 = vunpack.c.l.b16 %v731
        %v2828 = vunpack.c.h.b16 %v731
        %v2829 = vunpack.c.l.b16 %v732
        %v2830 = vunpack.c.h.b16 %v732
        %v2831 = vunpack.c.l.b16 %v733
        %v2832 = vunpack.c.h.b16 %v733
        %v2833 = vunpack.c.l.b16 %v734
        %v2834 = vunpack.c.h.b16 %v734
        %v2835 = vunpack.c.l.b16 %v735
        %v2836 = vunpack.c.h.b16 %v735
        %v2837 = vunpack.c.l.b16 %v736
        %v2838 = vunpack.c.h.b16 %v736
        %v2839 = vunpack.c.l.b16 %v737
        %v2840 = vunpack.c.h.b16 %v737
        %v2841 = vunpack.c.l.b16 %v738
        %v2842 = vunpack.c.h.b16 %v738
        %v2843 = vunpack.c.l.b16 %v739
        %v2844 = vunpack.c.h.b16 %v739
        %v2845 = vunpack.c.l.b16 %v740
        %v2846 = vunpack.c.h.b16 %v740
        %v2847 = vunpack.c.l.b16 %v741
        %v2848 = vunpack.c.h.b16 %v741
        %v2849 = vunpack.c.l.b16 %v742
        %v2850 = vunpack.c.h.b16 %v742
        %v2851 = vunpack.c.l.b16 %v743
        %v2852 = vunpack.c.h.b16 %v743
        %v2853 = vunpack.c.l.b16 %v744
        %v2854 = vunpack.c.h.b16 %v744
        %v2855 = vunpack.c.l.b16 %v745
        %v2856 = vunpack.c.h.b16 %v745
        %v2857 = vunpack.c.l.b16 %v746
        %v2858 = vunpack.c.h.b16 %v746
        %v2859 = vunpack.c.l.b16 %v747
        %v2860 = vunpack.c.h.b16 %v747
        %v2861 = vunpack.c.l.b16 %v748
        %v2862 = vunpack.c.h.b16 %v748
        %v2863 = vunpack.c.l.b16 %v749
        %v2864 = vunpack.c.h.b16 %v749
        %v2865 = vunpack.c.l.b16 %v750
        %v2866 = vunpack.c.h.b16 %v750
        %v2867 = vunpack.c.l.b16 %v751
        %v2868 = vunpack.c.h.b16 %v751
        %v2869 = vunpack.c.l.b16 %v752
        %v2870 = vunpack.c.h.b16 %v752
        %v2871 = vunpack.c.l.b16 %v753
        %v2872 = vunpack.c.h.b16 %v753
        %v2873 = vunpack.c.l.b16 %v754
        %v2874 = vunpack.c.h.b16 %v754
        %v2875 = vunpack.c.l.b16 %v755
        %v2876 = vunpack.c.h.b16 %v755
        %v2877 = vunpack.c.l.b16 %v756
        %v2878 = vunpack.c.h.b16 %v756
        %v2879 = vunpack.c.l.b16 %v757
        %v2880 = vunpack.c.h.b16 %v757
        %v2881 = vunpack.c.l.b16 %v758
        %v2882 = vunpack.c.h.b16 %v758
        %v2883 = vunpack.c.l.b16 %v759
        %v2884 = vunpack.c.h.b16 %v759
        %v2885 = vunpack.c.l.b16 %v760
        %v2886 = vunpack.c.h.b16 %v760
        %v2887 = vunpack.c.l.b16 %v761
        %v2888 = vunpack.c.h.b16 %v761
        %v2889 = vunpack.c.l.b16 %v762
        %v2890 = vunpack.c.h.b16 %v762
        %v2891 = vunpack.c.l.b16 %v763
        %v2892 = vunpack.c.h.b16 %v763
        %v2893 = vunpack.c.l.b16 %v764
        %v2894 = vunpack.c.h.b16 %v764
        %v2895 = vunpack.c.l.b16 %v765
        %v2896 = vunpack.c.h.b16 %v765
        %v2897 = vunpack.c.l.b16 %v766
        %v2898 = vunpack.c.h.b16 %v766
        %v2899 = vunpack.c.l.b16 %v767
        %v2900 = vunpack.c.h.b16 %v767
        %v2901 = vunpack.c.l.b16 %v768
        %v2902 = vunpack.c.h.b16 %v768
        %v2903 = vunpack.c.l.b16 %v769
        %v2904 = vunpack.c.h.b16 %v769
        %v2905 = vunpack.c.l.b16 %v770
        %v2906 = vunpack.c.h.b16 %v770
        %v2907 = vunpack.c.l.b16 %v771
        %v2908 = vunpack.c.h.b16 %v771
        %v2909 = vunpack.c.l.b16 %v772
        %v2910 = vunpack.c.h.b16 %v772
        %v2911 = vunpack.c.l.b16 %v773
        %v2912 = vunpack.c.h.b16 %v773
        %v2913 = vunpack.c.l.b16 %v774
        %v2914 = vunpack.c.h.b16 %v774
        %v2915 = vunpack.c.l.b16 %v775
        %v2916 = vunpack.c.h.b16 %v775
        %v2917 = vunpack.c.l.b16 %v776
        %v2918 = vunpack.c.h.b16 %v776
        %v2919 = vunpack.c.l.b16 %v777
        %v2920 = vunpack.c.h.b16 %v777
        %v2921 = vunpack.c.l.b16 %v778
        %v2922 = vunpack.c.h.b16 %v778
        %v2923 = vunpack.c.l.b16 %v779
        %v2924 = vunpack.c.h.b16 %v779
        %v2925 = vunpack.c.l.b16 %v780
        %v2926 = vunpack.c.h.b16 %v780
        %v2927 = vunpack.c.l.b16 %v781
        %v2928 = vunpack.c.h.b16 %v781
        %v2929 = vunpack.c.l.b16 %v782
        %v2930 = vunpack.c.h.b16 %v782
        %v2931 = vunpack.c.l.b16 %v783
        %v2932 = vunpack.c.h.b16 %v783
        %v2933 = vunpack.c.l.b16 %v784
        %v2934 = vunpack.c.h.b16 %v784
        %v2935 = vunpack.c.l.b16 %v785
        %v2936 = vunpack.c.h.b16 %v785
        %v2937 = vunpack.c.l.b16 %v786
        %v2938 = vunpack.c.h.b16 %v786
        %v2939 = vunpack.c.l.b16 %v787
        %v2940 = vunpack.c.h.b16 %v787
        %v2941 = vunpack.c.l.b16 %v788
        %v2942 = vunpack.c.h.b16 %v788
        %v2943 = vunpack.c.l.b16 %v789
        %v2944 = vunpack.c.h.b16 %v789
        %v2945 = vunpack.c.l.b16 %v790
        %v2946 = vunpack.c.h.b16 %v790
        %v2947 = vunpack.c.l.b16 %v791
        %v2948 = vunpack.c.h.b16 %v791
        %v2949 = vunpack.c.l.b16 %v792
        %v2950 = vunpack.c.h.b16 %v792
        %v2951 = vunpack.c.l.b16 %v793
        %v2952 = vunpack.c.h.b16 %v793
        %v2953 = vunpack.c.l.b16 %v794
        %v2954 = vunpack.c.h.b16 %v794
        %v2955 = vunpack.c.l.b16 %v795
        %v2956 = vunpack.c.h.b16 %v795
        %v2957 = vunpack.c.l.b16 %v796
        %v2958 = vunpack.c.h.b16 %v796
        %v2959 = vunpack.c.l.b16 %v797
        %v2960 = vunpack.c.h.b16 %v797
        %v2961 = vunpack.c.l.b16 %v798
        %v2962 = vunpack.c.h.b16 %v798
        %v2963 = vunpack.c.l.b16 %v799
        %v2964 = vunpack.c.h.b16 %v799
        %v2965 = vunpack.c.l.b16 %v800
        %v2966 = vunpack.c.h.b16 %v800
        %v2967 = vunpack.c.l.b16 %v801
        %v2968 = vunpack.c.h.b16 %v801
        %v2969 = vunpack.c.l.b16 %v802
        %v2970 = vunpack.c.h.b16 %v802
        %v2971 = vunpack.c.l.b16 %v803
        %v2972 = vunpack.c.h.b16 %v803
        %v2973 = vunpack.c.l.b16 %v804
        %v2974 = vunpack.c.h.b16 %v804
        %v2975 = vunpack.c.l.b16 %v805
        %v2976 = vunpack.c.h.b16 %v805
        %v2977 = vunpack.c.l.b16 %v806
        %v2978 = vunpack.c.h.b16 %v806
        %v2979 = vunpack.c.l.b16 %v807
        %v2980 = vunpack.c.h.b16 %v807
        %v2981 = vunpack.c.l.b16 %v808
        %v2982 = vunpack.c.h.b16 %v808
        %v2983 = vunpack.c.l.b16 %v809
        %v2984 = vunpack.c.h.b16 %v809
        %v2985 = vunpack.c.l.b16 %v810
        %v2986 = vunpack.c.h.b16 %v810
        %v2987 = vunpack.c.l.b16 %v811
        %v2988 = vunpack.c.h.b16 %v811
        %v2989 = vunpack.c.l.b16 %v812
        %v2990 = vunpack.c.h.b16 %v812
        %v2991 = vunpack.c.l.b16 %v813
        %v2992 = vunpack.c.h.b16 %v813
        %v2993 = vunpack.c.l.b16 %v814
        %v2994 = vunpack.c.h.b16 %v814
        %v2995 = vunpack.c.l.b16 %v815
        %v2996 = vunpack.c.h.b16 %v815
        %v2997 = vunpack.c.l.b16 %v816
        %v2998 = vunpack.c.h.b16 %v816
        %v2999 = vunpack.c.l.b16 %v817
        %v3000 = vunpack.c.h.b16 %v817
        %v3001 = vunpack.c.l.b16 %v818
        %v3002 = vunpack.c.h.b16 %v818
        %v3003 = vunpack.c.l.b16 %v819
        %v3004 = vunpack.c.h.b16 %v819
        %v3005 = vunpack.c.l.b16 %v820
        %v3006 = vunpack.c.h.b16 %v820
        %v3007 = vunpack.c.l.b16 %v821
        %v3008 = vunpack.c.h.b16 %v821
        %v3009 = vunpack.c.l.b16 %v822
        %v3010 = vunpack.c.h.b16 %v822
        %v3011 = vunpack.c.l.b16 %v823
        %v3012 = vunpack.c.h.b16 %v823
        %v3013 = vunpack.c.l.b16 %v824
        %v3014 = vunpack.c.h.b16 %v824
        %v3015 = vunpack.c.l.b16 %v825
        %v3016 = vunpack.c.h.b16 %v825
        %v3017 = vunpack.c.l.b16 %v826
        %v3018 = vunpack.c.h.b16 %v826
        %v3019 = vunpack.c.l.b16 %v827
        %v3020 = vunpack.c.h.b16 %v827
        %v3021 = vunpack.c.l.b16 %v828
        %v3022 = vunpack.c.h.b16 %v828
        %v3023 = vunpack.c.l.b16 %v829
        %v3024 = vunpack.c.h.b16 %v829
        %v3025 = vunpack.c.l.b16 %v830
        %v3026 = vunpack.c.h.b16 %v830
        %v3027 = vunpack.c.l.b16 %v831
        %v3028 = vunpack.c.h.b16 %v831
        %v3029 = vunpack.c.l.b16 %v832
        %v3030 = vunpack.c.h.b16 %v832
        %v3031 = vunpack.c.l.b16 %v833
        %v3032 = vunpack.c.h.b16 %v833
        %v3033 = vunpack.c.l.b16 %v834
        %v3034 = vunpack.c.h.b16 %v834
        %v3035 = vunpack.c.l.b16 %v835
        %v3036 = vunpack.c.h.b16 %v835
        %v3037 = vunpack.c.l.b16 %v836
        %v3038 = vunpack.c.h.b16 %v836
        %v3039 = vunpack.c.l.b16 %v837
        %v3040 = vunpack.c.h.b16 %v837
        %v3041 = vunpack.c.l.b16 %v838
        %v3042 = vunpack.c.h.b16 %v838
        %v3043 = vunpack.c.l.b16 %v839
        %v3044 = vunpack.c.h.b16 %v839
        %v3045 = vunpack.c.l.b16 %v840
        %v3046 = vunpack.c.h.b16 %v840
        %v3047 = vunpack.c.l.b16 %v841
        %v3048 = vunpack.c.h.b16 %v841
        %v3049 = vunpack.c.l.b16 %v842
        %v3050 = vunpack.c.h.b16 %v842
        %v3051 = vunpack.c.l.b16 %v843
        %v3052 = vunpack.c.h.b16 %v843
        %v3053 = vunpack.c.l.b16 %v844
        %v3054 = vunpack.c.h.b16 %v844
        %v3055 = vunpack.c.l.b16 %v845
        %v3056 = vunpack.c.h.b16 %v845
        %v3057 = vunpack.c.l.b16 %v846
        %v3058 = vunpack.c.h.b16 %v846
        %v3059 = vunpack.c.l.b16 %v847
        %v3060 = vunpack.c.h.b16 %v847
        %v3061 = vunpack.c.l.b16 %v848
        %v3062 = vunpack.c.h.b16 %v848
        %v3063 = vunpack.c.l.b16 %v849
        %v3064 = vunpack.c.h.b16 %v849
        %v3065 = vunpack.c.l.b16 %v850
        %v3066 = vunpack.c.h.b16 %v850
        %v3067 = vunpack.c.l.b16 %v851
        %v3068 = vunpack.c.h.b16 %v851
        %v3069 = vunpack.c.l.b16 %v852
        %v3070 = vunpack.c.h.b16 %v852
        %v3071 = vunpack.c.l.b16 %v853
        %v3072 = vunpack.c.h.b16 %v853
        %v3073 = vunpack.c.l.b16 %v854
        %v3074 = vunpack.c.h.b16 %v854
        %v3075 = vunpack.c.l.b16 %v855
        %v3076 = vunpack.c.h.b16 %v855
        %v3077 = vunpack.c.l.b16 %v856
        %v3078 = vunpack.c.h.b16 %v856
        %v3079 = vunpack.c.l.b16 %v857
        %v3080 = vunpack.c.h.b16 %v857
        %v3081 = vunpack.c.l.b16 %v858
        %v3082 = vunpack.c.h.b16 %v858
        %v3083 = vunpack.c.l.b16 %v859
        %v3084 = vunpack.c.h.b16 %v859
        %v3085 = vunpack.c.l.b16 %v860
        %v3086 = vunpack.c.h.b16 %v860
        %v3087 = vunpack.c.l.b16 %v861
        %v3088 = vunpack.c.h.b16 %v861
        %v3089 = vunpack.c.l.b16 %v862
        %v3090 = vunpack.c.h.b16 %v862
        %v3091 = vunpack.c.l.b16 %v863
        %v3092 = vunpack.c.h.b16 %v863
        %v3093 = vunpack.c.l.b16 %v864
        %v3094 = vunpack.c.h.b16 %v864
        %v3095 = vunpack.c.l.b16 %v865
        %v3096 = vunpack.c.h.b16 %v865
        %v3097 = vunpack.c.l.b16 %v866
        %v3098 = vunpack.c.h.b16 %v866
        %v3099 = vunpack.c.l.b16 %v867
        %v3100 = vunpack.c.h.b16 %v867
        %v3101 = vunpack.c.l.b16 %v868
        %v3102 = vunpack.c.h.b16 %v868
        %v3103 = vunpack.c.l.b16 %v869
        %v3104 = vunpack.c.h.b16 %v869
        %v3105 = vunpack.c.l.b16 %v870
        %v3106 = vunpack.c.h.b16 %v870
        %v3107 = vunpack.c.l.b16 %v871
        %v3108 = vunpack.c.h.b16 %v871
        %v3109 = vunpack.c.l.b16 %v872
        %v3110 = vunpack.c.h.b16 %v872
        %v3111 = vunpack.c.l.b16 %v873
        %v3112 = vunpack.c.h.b16 %v873
        %v3113 = vunpack.c.l.b16 %v874
        %v3114 = vunpack.c.h.b16 %v874
        %v3115 = vunpack.c.l.b16 %v875
        %v3116 = vunpack.c.h.b16 %v875
        %v3117 = vunpack.c.l.b16 %v876
        %v3118 = vunpack.c.h.b16 %v876
        %v3119 = vunpack.c.l.b16 %v877
        %v3120 = vunpack.c.h.b16 %v877
        %v3121 = vunpack.c.l.b16 %v878
        %v3122 = vunpack.c.h.b16 %v878
        %v3123 = vunpack.c.l.b16 %v879
        %v3124 = vunpack.c.h.b16 %v879
        %v3125 = vunpack.c.l.b16 %v880
        %v3126 = vunpack.c.h.b16 %v880
        %v3127 = vunpack.c.l.b16 %v881
        %v3128 = vunpack.c.h.b16 %v881
        %v3129 = vunpack.c.l.b16 %v882
        %v3130 = vunpack.c.h.b16 %v882
        %v3131 = vunpack.c.l.b16 %v883
        %v3132 = vunpack.c.h.b16 %v883
        %v3133 = vunpack.c.l.b16 %v884
        %v3134 = vunpack.c.h.b16 %v884
        %v3135 = vunpack.c.l.b16 %v885
        %v3136 = vunpack.c.h.b16 %v885
        %v3137 = vunpack.c.l.b16 %v886
        %v3138 = vunpack.c.h.b16 %v886
        %v3139 = vunpack.c.l.b16 %v887
        %v3140 = vunpack.c.h.b16 %v887
        %v3141 = vunpack.c.l.b16 %v888
        %v3142 = vunpack.c.h.b16 %v888
        %v3143 = vunpack.c.l.b16 %v889
        %v3144 = vunpack.c.h.b16 %v889
        %v3145 = vunpack.c.l.b16 %v890
        %v3146 = vunpack.c.h.b16 %v890
        %v3147 = vunpack.c.l.b16 %v891
        %v3148 = vunpack.c.h.b16 %v891
        %v3149 = vunpack.c.l.b16 %v892
        %v3150 = vunpack.c.h.b16 %v892
        %v3151 = vunpack.c.l.b16 %v893
        %v3152 = vunpack.c.h.b16 %v893
        %v3153 = vunpack.c.l.b16 %v894
        %v3154 = vunpack.c.h.b16 %v894
        %v3155 = vunpack.c.l.b16 %v895
        %v3156 = vunpack.c.h.b16 %v895
        %v3157 = vunpack.c.l.b16 %v896
        %v3158 = vunpack.c.h.b16 %v896
        %v3159 = vunpack.c.l.b16 %v897
        %v3160 = vunpack.c.h.b16 %v897
        %v3161 = vunpack.c.l.b16 %v898
        %v3162 = vunpack.c.h.b16 %v898
        %v3163 = vunpack.c.l.b16 %v899
        %v3164 = vunpack.c.h.b16 %v899
        %v3165 = vunpack.c.l.b16 %v900
        %v3166 = vunpack.c.h.b16 %v900
        %v3167 = vunpack.c.l.b16 %v901
        %v3168 = vunpack.c.h.b16 %v901
        %v3169 = vunpack.c.l.b16 %v902
        %v3170 = vunpack.c.h.b16 %v902
        %v3171 = vunpack.c.l.b16 %v903
        %v3172 = vunpack.c.h.b16 %v903
        %v3173 = vunpack.c.l.b16 %v904
        %v3174 = vunpack.c.h.b16 %v904
        %v3175 = vunpack.c.l.b16 %v905
        %v3176 = vunpack.c.h.b16 %v905
        %v3177 = vunpack.c.l.b16 %v906
        %v3178 = vunpack.c.h.b16 %v906
        %v3179 = vunpack.c.l.b16 %v907
        %v3180 = vunpack.c.h.b16 %v907
        %v3181 = vunpack.c.l.b16 %v908
        %v3182 = vunpack.c.h.b16 %v908
        %v3183 = vunpack.c.l.b16 %v909
        %v3184 = vunpack.c.h.b16 %v909
        %v3185 = vunpack.c.l.b16 %v910
        %v3186 = vunpack.c.h.b16 %v910
        %v3187 = vunpack.c.l.b16 %v911
        %v3188 = vunpack.c.h.b16 %v911
        %v3189 = vunpack.c.l.b16 %v912
        %v3190 = vunpack.c.h.b16 %v912
        %v3191 = vunpack.c.l.b16 %v913
        %v3192 = vunpack.c.h.b16 %v913
        %v3193 = vunpack.c.l.b16 %v914
        %v3194 = vunpack.c.h.b16 %v914
        %v3195 = vunpack.c.l.b16 %v915
        %v3196 = vunpack.c.h.b16 %v915
        %v3197 = vunpack.c.l.b16 %v916
        %v3198 = vunpack.c.h.b16 %v916
        %v3199 = vunpack.c.l.b16 %v917
        %v3200 = vunpack.c.h.b16 %v917
        %v3201 = vunpack.c.l.b16 %v918
        %v3202 = vunpack.c.h.b16 %v918
        %v3203 = vunpack.c.l.b16 %v919
        %v3204 = vunpack.c.h.b16 %v919
        %v3205 = vunpack.c.l.b16 %v920
        %v3206 = vunpack.c.h.b16 %v920
        %v3207 = vunpack.c.l.b16 %v921
        %v3208 = vunpack.c.h.b16 %v921
        %v3209 = vunpack.c.l.b16 %v922
        %v3210 = vunpack.c.h.b16 %v922
        %v3211 = vunpack.c.l.b16 %v923
        %v3212 = vunpack.c.h.b16 %v923
        %v3213 = vunpack.c.l.b16 %v924
        %v3214 = vunpack.c.h.b16 %v924
        %v3215 = vunpack.c.l.b16 %v925
        %v3216 = vunpack.c.h.b16 %v925
        %v3217 = vunpack.c.l.b16 %v926
        %v3218 = vunpack.c.h.b16 %v926
        %v3219 = vunpack.c.l.b16 %v927
        %v3220 = vunpack.c.h.b16 %v927
        %v3221 = vunpack.c.l.b16 %v928
        %v3222 = vunpack.c.h.b16 %v928
        %v3223 = vunpack.c.l.b16 %v929
        %v3224 = vunpack.c.h.b16 %v929
        %v3225 = vunpack.c.l.b16 %v930
        %v3226 = vunpack.c.h.b16 %v930
        %v3227 = vunpack.c.l.b16 %v931
        %v3228 = vunpack.c.h.b16 %v931
        %v3229 = vunpack.c.l.b16 %v932
        %v3230 = vunpack.c.h.b16 %v932
        %v3231 = vunpack.c.l.b16 %v933
        %v3232 = vunpack.c.h.b16 %v933
        %v3233 = vunpack.c.l.b16 %v934
        %v3234 = vunpack.c.h.b16 %v934
        %v3235 = vunpack.c.l.b16 %v935
        %v3236 = vunpack.c.h.b16 %v935
        %v3237 = vunpack.c.l.b16 %v936
        %v3238 = vunpack.c.h.b16 %v936
        %v3239 = vunpack.c.l.b16 %v937
        %v3240 = vunpack.c.h.b16 %v937
        %v3241 = vunpack.c.l.b16 %v938
        %v3242 = vunpack.c.h.b16 %v938
        %v3243 = vunpack.c.l.b16 %v939
        %v3244 = vunpack.c.h.b16 %v939
        %v3245 = vunpack.c.l.b16 %v940
        %v3246 = vunpack.c.h.b16 %v940
        %v3247 = vunpack.c.l.b16 %v941
        %v3248 = vunpack.c.h.b16 %v941
        %v3249 = vunpack.c.l.b16 %v942
        %v3250 = vunpack.c.h.b16 %v942
        %v3251 = vunpack.c.l.b16 %v943
        %v3252 = vunpack.c.h.b16 %v943
        %v3253 = vunpack.c.l.b16 %v944
        %v3254 = vunpack.c.h.b16 %v944
        %v3255 = vunpack.c.l.b16 %v945
        %v3256 = vunpack.c.h.b16 %v945
        %v3257 = vunpack.c.l.b16 %v946
        %v3258 = vunpack.c.h.b16 %v946
        %v3259 = vunpack.c.l.b16 %v947
        %v3260 = vunpack.c.h.b16 %v947
        %v3261 = vunpack.c.l.b16 %v948
        %v3262 = vunpack.c.h.b16 %v948
        %v3263 = vunpack.c.l.b16 %v949
        %v3264 = vunpack.c.h.b16 %v949
        %v3265 = vunpack.c.l.b16 %v950
        %v3266 = vunpack.c.h.b16 %v950
        %v3267 = vunpack.c.l.b16 %v951
        %v3268 = vunpack.c.h.b16 %v951
        %v3269 = vunpack.c.l.b16 %v952
        %v3270 = vunpack.c.h.b16 %v952
        %v3271 = vunpack.c.l.b16 %v953
        %v3272 = vunpack.c.h.b16 %v953
        %v3273 = vunpack.c.l.b16 %v954
        %v3274 = vunpack.c.h.b16 %v954
        %v3275 = vunpack.c.l.b16 %v955
        %v3276 = vunpack.c.h.b16 %v955
        %v3277 = vunpack.c.l.b16 %v956
        %v3278 = vunpack.c.h.b16 %v956
        %v3279 = vunpack.c.l.b16 %v957
        %v3280 = vunpack.c.h.b16 %v957
        %v3281 = vunpack.c.l.b16 %v958
        %v3282 = vunpack.c.h.b16 %v958
        %v3283 = vunpack.c.l.b16 %v959
        %v3284 = vunpack.c.h.b16 %v959
        %v3285 = vunpack.c.l.b16 %v960
        %v3286 = vunpack.c.h.b16 %v960
        %v3287 = vunpack.c.l.b16 %v961
        %v3288 = vunpack.c.h.b16 %v961
        %v3289 = vunpack.c.l.b16 %v962
        %v3290 = vunpack.c.h.b16 %v962
        %v3291 = vunpack.c.l.b16 %v963
        %v3292 = vunpack.c.h.b16 %v963
        %v3293 = vunpack.c.l.b16 %v964
        %v3294 = vunpack.c.h.b16 %v964
        %v3295 = vunpack.c.l.b16 %v965
        %v3296 = vunpack.c.h.b16 %v965
        %v3297 = vunpack.c.l.b16 %v966
        %v3298 = vunpack.c.h.b16 %v966
        %v3299 = vunpack.c.l.b16 %v967
        %v3300 = vunpack.c.h.b16 %v967
        %v3301 = vunpack.c.l.b16 %v968
        %v3302 = vunpack.c.h.b16 %v968
        %v3303 = vunpack.c.l.b16 %v969
        %v3304 = vunpack.c.h.b16 %v969
        %v3305 = vunpack.c.l.b16 %v970
        %v3306 = vunpack.c.h.b16 %v970
        %v3307 = vunpack.c.l.b16 %v971
        %v3308 = vunpack.c.h.b16 %v971
        %v3309 = vunpack.c.l.b16 %v972
        %v3310 = vunpack.c.h.b16 %v972
        %v3311 = vunpack.c.l.b16 %v973
        %v3312 = vunpack.c.h.b16 %v973
        %v3313 = vunpack.c.l.b16 %v974
        %v3314 = vunpack.c.h.b16 %v974
        %v3315 = vunpack.c.l.b16 %v975
        %v3316 = vunpack.c.h.b16 %v975
        %v3317 = vunpack.c.l.b16 %v976
        %v3318 = vunpack.c.h.b16 %v976
        %v3319 = vunpack.c.l.b16 %v977
        %v3320 = vunpack.c.h.b16 %v977
        %v3321 = vunpack.c.l.b16 %v978
        %v3322 = vunpack.c.h.b16 %v978
        %v3323 = vunpack.c.l.b16 %v979
        %v3324 = vunpack.c.h.b16 %v979
        %v3325 = vunpack.c.l.b16 %v980
        %v3326 = vunpack.c.h.b16 %v980
        %v3327 = vunpack.c.l.b16 %v981
        %v3328 = vunpack.c.h.b16 %v981
        %v3329 = vunpack.c.l.b16 %v982
        %v3330 = vunpack.c.h.b16 %v982
        %v3331 = vunpack.c.l.b16 %v983
        %v3332 = vunpack.c.h.b16 %v983
        %v3333 = vunpack.c.l.b16 %v984
        %v3334 = vunpack.c.h.b16 %v984
        %v3335 = vunpack.c.l.b16 %v985
        %v3336 = vunpack.c.h.b16 %v985
        %v3337 = vunpack.c.l.b16 %v986
        %v3338 = vunpack.c.h.b16 %v986
        %v3339 = vunpack.c.l.b16 %v987
        %v3340 = vunpack.c.h.b16 %v987
        %v3341 = vunpack.c.l.b16 %v988
        %v3342 = vunpack.c.h.b16 %v988
        %v3343 = vunpack.c.l.b16 %v989
        %v3344 = vunpack.c.h.b16 %v989
        %v3345 = vunpack.c.l.b16 %v990
        %v3346 = vunpack.c.h.b16 %v990
        %v3347 = vunpack.c.l.b16 %v991
        %v3348 = vunpack.c.h.b16 %v991
        %v3349 = vunpack.c.l.b16 %v992
        %v3350 = vunpack.c.h.b16 %v992
        %v3351 = vunpack.c.l.b16 %v993
        %v3352 = vunpack.c.h.b16 %v993
        %v3353 = vunpack.c.l.b16 %v994
        %v3354 = vunpack.c.h.b16 %v994
        %v3355 = vunpack.c.l.b16 %v995
        %v3356 = vunpack.c.h.b16 %v995
        %v3357 = vunpack.c.l.b16 %v996
        %v3358 = vunpack.c.h.b16 %v996
        %v3359 = vunpack.c.l.b16 %v997
        %v3360 = vunpack.c.h.b16 %v997
        %v3361 = vunpack.c.l.b16 %v998
        %v3362 = vunpack.c.h.b16 %v998
        %v3363 = vunpack.c.l.b16 %v999
        %v3364 = vunpack.c.h.b16 %v999
        %v3365 = vunpack.c.l.b16 %v1000
        %v3366 = vunpack.c.h.b16 %v1000
        %v3367 = vunpack.c.l.b16 %v1001
        %v3368 = vunpack.c.h.b16 %v1001
        %v3369 = vunpack.c.l.b16 %v1002
        %v3370 = vunpack.c.h.b16 %v1002
        %v3371 = vunpack.c.l.b16 %v1003
        %v3372 = vunpack.c.h.b16 %v1003
        %v3373 = vunpack.c.l.b16 %v1004
        %v3374 = vunpack.c.h.b16 %v1004
        %v3375 = vunpack.c.l.b16 %v1005
        %v3376 = vunpack.c.h.b16 %v1005
        %v3377 = vunpack.c.l.b16 %v1006
        %v3378 = vunpack.c.h.b16 %v1006
        %v3379 = vunpack.c.l.b16 %v1007
        %v3380 = vunpack.c.h.b16 %v1007
        %v3381 = vunpack.c.l.b16 %v1008
        %v3382 = vunpack.c.h.b16 %v1008
        %v3383 = vunpack.c.l.b16 %v1009
        %v3384 = vunpack.c.h.b16 %v1009
        %v3385 = vunpack.c.l.b16 %v1010
        %v3386 = vunpack.c.h.b16 %v1010
        %v3387 = vunpack.c.l.b16 %v1011
        %v3388 = vunpack.c.h.b16 %v1011
        %v3389 = vunpack.c.l.b16 %v1012
        %v3390 = vunpack.c.h.b16 %v1012
        %v3391 = vunpack.c.l.b16 %v1013
        %v3392 = vunpack.c.h.b16 %v1013
        %v3393 = vunpack.c.l.b16 %v1014
        %v3394 = vunpack.c.h.b16 %v1014
        %v3395 = vunpack.c.l.b16 %v1015
        %v3396 = vunpack.c.h.b16 %v1015
        %v3397 = vunpack.c.l.b16 %v1016
        %v3398 = vunpack.c.h.b16 %v1016
        %v3399 = vunpack.c.l.b16 %v1017
        %v3400 = vunpack.c.h.b16 %v1017
        %v3401 = vunpack.c.l.b16 %v1018
        %v3402 = vunpack.c.h.b16 %v1018
        %v3403 = vunpack.c.l.b16 %v1019
        %v3404 = vunpack.c.h.b16 %v1019
        %v3405 = vunpack.c.l.b16 %v1020
        %v3406 = vunpack.c.h.b16 %v1020
        %v3407 = vunpack.c.l.b16 %v1021
        %v3408 = vunpack.c.h.b16 %v1021
        %v3409 = vunpack.c.l.b16 %v1022
        %v3410 = vunpack.c.h.b16 %v1022
        %v3411 = vunpack.c.l.b16 %v1023
        %v3412 = vunpack.c.h.b16 %v1023
        %v3413 = vunpack.c.l.b16 %v1024
        %v3414 = vunpack.c.h.b16 %v1024
        %v3415 = vunpack.c.l.b16 %v1025
        %v3416 = vunpack.c.h.b16 %v1025
        %v3417 = vunpack.c.l.b16 %v1026
        %v3418 = vunpack.c.h.b16 %v1026
        %v3419 = vunpack.c.l.b16 %v1027
        %v3420 = vunpack.c.h.b16 %v1027
        %v3421 = vunpack.c.l.b16 %v1028
        %v3422 = vunpack.c.h.b16 %v1028
        %v3423 = vunpack.c.l.b16 %v1029
        %v3424 = vunpack.c.h.b16 %v1029
        %v3425 = vunpack.c.l.b16 %v1030
        %v3426 = vunpack.c.h.b16 %v1030
        %v3427 = vunpack.c.l.b16 %v1031
        %v3428 = vunpack.c.h.b16 %v1031
        %v3429 = vunpack.c.l.b16 %v1032
        %v3430 = vunpack.c.h.b16 %v1032
        %v3431 = vunpack.c.l.b16 %v1033
        %v3432 = vunpack.c.h.b16 %v1033
        %v3433 = vunpack.c.l.b16 %v1034
        %v3434 = vunpack.c.h.b16 %v1034
        %v3435 = vunpack.c.l.b16 %v1035
        %v3436 = vunpack.c.h.b16 %v1035
        %v3437 = vunpack.c.l.b16 %v1036
        %v3438 = vunpack.c.h.b16 %v1036
        %v3439 = vunpack.c.l.b16 %v1037
        %v3440 = vunpack.c.h.b16 %v1037
        %v3441 = vunpack.c.l.b16 %v1038
        %v3442 = vunpack.c.h.b16 %v1038
        %v3443 = vunpack.c.l.b16 %v1039
        %v3444 = vunpack.c.h.b16 %v1039
        %v3445 = vunpack.c.l.b16 %v1040
        %v3446 = vunpack.c.h.b16 %v1040
        %v3447 = vunpack.c.l.b16 %v1041
        %v3448 = vunpack.c.h.b16 %v1041
        %v3449 = vunpack.c.l.b16 %v1042
        %v3450 = vunpack.c.h.b16 %v1042
        %v3451 = vunpack.c.l.b16 %v1043
        %v3452 = vunpack.c.h.b16 %v1043
        %v3453 = vunpack.c.l.b16 %v1044
        %v3454 = vunpack.c.h.b16 %v1044
        %v3455 = vunpack.c.l.b16 %v1045
        %v3456 = vunpack.c.h.b16 %v1045
        %v3457 = vunpack.c.l.b16 %v1046
        %v3458 = vunpack.c.h.b16 %v1046
        %v3459 = vunpack.c.l.b16 %v1047
        %v3460 = vunpack.c.h.b16 %v1047
        %v3461 = vunpack.c.l.b16 %v1048
        %v3462 = vunpack.c.h.b16 %v1048
        %v3463 = vunpack.c.l.b16 %v1049
        %v3464 = vunpack.c.h.b16 %v1049
        %v3465 = vunpack.c.l.b16 %v1050
        %v3466 = vunpack.c.h.b16 %v1050
        %v3467 = vunpack.c.l.b16 %v1051
        %v3468 = vunpack.c.h.b16 %v1051
        %v3469 = vunpack.c.l.b16 %v1052
        %v3470 = vunpack.c.h.b16 %v1052
        %v3471 = vunpack.c.l.b16 %v1053
        %v3472 = vunpack.c.h.b16 %v1053
        %v3473 = vunpack.c.l.b16 %v1054
        %v3474 = vunpack.c.h.b16 %v1054
        %v3475 = vunpack.c.l.b16 %v1055
        %v3476 = vunpack.c.h.b16 %v1055
        %v3477 = vpack.c.b16 %v1975, %v1973
        %v3478 = vpack.c.b16 %v1976, %v1974
        %v3479 = vpack.c.b16 %v1979, %v1977
        %v3480 = vpack.c.b16 %v1980, %v1978
        %v3481 = vpack.c.b16 %v1983, %v1981
        %v3482 = vpack.c.b16 %v1984, %v1982
        %v3483 = vpack.c.b16 %v1987, %v1985
        %v3484 = vpack.c.b16 %v1988, %v1986
        %v3485 = vpack.c.b16 %v1991, %v1989
        %v3486 = vpack.c.b16 %v1992, %v1990
        %v3487 = vpack.c.b16 %v1995, %v1993
        %v3488 = vpack.c.b16 %v1996, %v1994
        %v3489 = vpack.c.b16 %v1999, %v1997
        %v3490 = vpack.c.b16 %v2000, %v1998
        %v3491 = vpack.c.b16 %v2003, %v2001
        %v3492 = vpack.c.b16 %v2004, %v2002
        %v3493 = vpack.c.b16 %v2007, %v2005
        %v3494 = vpack.c.b16 %v2008, %v2006
        %v3495 = vpack.c.b16 %v2011, %v2009
        %v3496 = vpack.c.b16 %v2012, %v2010
        %v3497 = vpack.c.b16 %v2015, %v2013
        %v3498 = vpack.c.b16 %v2016, %v2014
        %v3499 = vpack.c.b16 %v2019, %v2017
        %v3500 = vpack.c.b16 %v2020, %v2018
        %v3501 = vpack.c.b16 %v2023, %v2021
        %v3502 = vpack.c.b16 %v2024, %v2022
        %v3503 = vpack.c.b16 %v2027, %v2025
        %v3504 = vpack.c.b16 %v2028, %v2026
        %v3505 = vpack.c.b16 %v2031, %v2029
        %v3506 = vpack.c.b16 %v2032, %v2030
        %v3507 = vpack.c.b16 %v2035, %v2033
        %v3508 = vpack.c.b16 %v2036, %v2034
        %v3509 = vpack.c.b16 %v2039, %v2037
        %v3510 = vpack.c.b16 %v2040, %v2038
        %v3511 = vpack.c.b16 %v2043, %v2041
        %v3512 = vpack.c.b16 %v2044, %v2042
        %v3513 = vpack.c.b16 %v2047, %v2045
        %v3514 = vpack.c.b16 %v2048, %v2046
        %v3515 = vpack.c.b16 %v2051, %v2049
        %v3516 = vpack.c.b16 %v2052, %v2050
        %v3517 = vpack.c.b16 %v2055, %v2053
        %v3518 = vpack.c.b16 %v2056, %v2054
        %v3519 = vpack.c.b16 %v2059, %v2057
        %v3520 = vpack.c.b16 %v2060, %v2058
        %v3521 = vpack.c.b16 %v2063, %v2061
        %v3522 = vpack.c.b16 %v2064, %v2062
        %v3523 = vpack.c.b16 %v2067, %v2065
        %v3524 = vpack.c.b16 %v2068, %v2066
        %v3525 = vpack.c.b16 %v2071, %v2069
        %v3526 = vpack.c.b16 %v2072, %v2070
        %v3527 = vpack.c.b16 %v2075, %v2073
        %v3528 = vpack.c.b16 %v2076, %v2074
        %v3529 = vpack.c.b16 %v2079, %v2077
        %v3530 = vpack.c.b16 %v2080, %v2078
        %v3531 = vpack.c.b16 %v2083, %v2081
        %v3532 = vpack.c.b16 %v2084, %v2082
        %v3533 = vpack.c.b16 %v2087, %v2085
        %v3534 = vpack.c.b16 %v2088, %v2086
        %v3535 = vpack.c.b16 %v2091, %v2089
        %v3536 = vpack.c.b16 %v2092, %v2090
        %v3537 = vpack.c.b16 %v2095, %v2093
        %v3538 = vpack.c.b16 %v2096, %v2094
        %v3539 = vpack.c.b16 %v2099, %v2097
        %v3540 = vpack.c.b16 %v2100, %v2098
        %v3541 = vpack.c.b16 %v2103, %v2101
        %v3542 = vpack.c.b16 %v2104, %v2102
        %v3543 = vpack.c.b16 %v2107, %v2105
        %v3544 = vpack.c.b16 %v2108, %v2106
        %v3545 = vpack.c.b16 %v2111, %v2109
        %v3546 = vpack.c.b16 %v2112, %v2110
        %v3547 = vpack.c.b16 %v2115, %v2113
        %v3548 = vpack.c.b16 %v2116, %v2114
        %v3549 = vpack.c.b16 %v2119, %v2117
        %v3550 = vpack.c.b16 %v2120, %v2118
        %v3551 = vpack.c.b16 %v2123, %v2121
        %v3552 = vpack.c.b16 %v2124, %v2122
        %v3553 = vpack.c.b16 %v2127, %v2125
        %v3554 = vpack.c.b16 %v2128, %v2126
        %v3555 = vpack.c.b16 %v2131, %v2129
        %v3556 = vpack.c.b16 %v2132, %v2130
        %v3557 = vpack.c.b16 %v2135, %v2133
        %v3558 = vpack.c.b16 %v2136, %v2134
        %v3559 = vpack.c.b16 %v2139, %v2137
        %v3560 = vpack.c.b16 %v2140, %v2138
        %v3561 = vpack.c.b16 %v2143, %v2141
        %v3562 = vpack.c.b16 %v2144, %v2142
        %v3563 = vpack.c.b16 %v2147, %v2145
        %v3564 = vpack.c.b16 %v2148, %v2146
        %v3565 = vpack.c.b16 %v2151, %v2149
        %v3566 = vpack.c.b16 %v2152, %v2150
        %v3567 = vpack.c.b16 %v2155, %v2153
        %v3568 = vpack.c.b16 %v2156, %v2154
        %v3569 = vpack.c.b16 %v2159, %v2157
        %v3570 = vpack.c.b16 %v2160, %v2158
        %v3571 = vpack.c.b16 %v2163, %v2161
        %v3572 = vpack.c.b16 %v2164, %v2162
        %v3573 = vpack.c.b16 %v2167, %v2165
        %v3574 = vpack.c.b16 %v2168, %v2166
        %v3575 = vpack.c.b16 %v2171, %v2169
        %v3576 = vpack.c.b16 %v2172, %v2170
        %v3577 = vpack.c.b16 %v2175, %v2173
        %v3578 = vpack.c.b16 %v2176, %v2174
        %v3579 = vpack.c.b16 %v2179, %v2177
        %v3580 = vpack.c.b16 %v2180, %v2178
        %v3581 = vpack.c.b16 %v2183, %v2181
        %v3582 = vpack.c.b16 %v2184, %v2182
        %v3583 = vpack.c.b16 %v2187, %v2185
        %v3584 = vpack.c.b16 %v2188, %v2186
        %v3585 = vpack.c.b16 %v2191, %v2189
        %v3586 = vpack.c.b16 %v2192, %v2190
        %v3587 = vpack.c.b16 %v2195, %v2193
        %v3588 = vpack.c.b16 %v2196, %v2194
        %v3589 = vpack.c.b16 %v2199, %v2197
        %v3590 = vpack.c.b16 %v2200, %v2198
        %v3591 = vpack.c.b16 %v2203, %v2201
        %v3592 = vpack.c.b16 %v2204, %v2202
        %v3593 = vpack.c.b16 %v2207, %v2205
        %v3594 = vpack.c.b16 %v2208, %v2206
        %v3595 = vpack.c.b16 %v2211, %v2209
        %v3596 = vpack.c.b16 %v2212, %v2210
        %v3597 = vpack.c.b16 %v2215, %v2213
        %v3598 = vpack.c.b16 %v2216, %v2214
        %v3599 = vpack.c.b16 %v2219, %v2217
        %v3600 = vpack.c.b16 %v2220, %v2218
        %v3601 = vpack.c.b16 %v2223, %v2221
        %v3602 = vpack.c.b16 %v2224, %v2222
        %v3603 = vpack.c.b16 %v2227, %v2225
        %v3604 = vpack.c.b16 %v2228, %v2226
        %v3605 = vpack.c.b16 %v2231, %v2229
        %v3606 = vpack.c.b16 %v2232, %v2230
        %v3607 = vpack.c.b16 %v2235, %v2233
        %v3608 = vpack.c.b16 %v2236, %v2234
        %v3609 = vpack.c.b16 %v2239, %v2237
        %v3610 = vpack.c.b16 %v2240, %v2238
        %v3611 = vpack.c.b16 %v2243, %v2241
        %v3612 = vpack.c.b16 %v2244, %v2242
        %v3613 = vpack.c.b16 %v2247, %v2245
        %v3614 = vpack.c.b16 %v2248, %v2246
        %v3615 = vpack.c.b16 %v2251, %v2249
        %v3616 = vpack.c.b16 %v2252, %v2250
        %v3617 = vpack.c.b16 %v2255, %v2253
        %v3618 = vpack.c.b16 %v2256, %v2254
        %v3619 = vpack.c.b16 %v2259, %v2257
        %v3620 = vpack.c.b16 %v2260, %v2258
        %v3621 = vpack.c.b16 %v2263, %v2261
        %v3622 = vpack.c.b16 %v2264, %v2262
        %v3623 = vpack.c.b16 %v2267, %v2265
        %v3624 = vpack.c.b16 %v2268, %v2266
        %v3625 = vpack.c.b16 %v2271, %v2269
        %v3626 = vpack.c.b16 %v2272, %v2270
        %v3627 = vpack.c.b16 %v2275, %v2273
        %v3628 = vpack.c.b16 %v2276, %v2274
        %v3629 = vpack.c.b16 %v2279, %v2277
        %v3630 = vpack.c.b16 %v2280, %v2278
        %v3631 = vpack.c.b16 %v2283, %v2281
        %v3632 = vpack.c.b16 %v2284, %v2282
        %v3633 = vpack.c.b16 %v2287, %v2285
        %v3634 = vpack.c.b16 %v2288, %v2286
        %v3635 = vpack.c.b16 %v2291, %v2289
        %v3636 = vpack.c.b16 %v2292, %v2290
        %v3637 = vpack.c.b16 %v2295, %v2293
        %v3638 = vpack.c.b16 %v2296, %v2294
        %v3639 = vpack.c.b16 %v2299, %v2297
        %v3640 = vpack.c.b16 %v2300, %v2298
        %v3641 = vpack.c.b16 %v2303, %v2301
        %v3642 = vpack.c.b16 %v2304, %v2302
        %v3643 = vpack.c.b16 %v2307, %v2305
        %v3644 = vpack.c.b16 %v2308, %v2306
        %v3645 = vpack.c.b16 %v2311, %v2309
        %v3646 = vpack.c.b16 %v2312, %v2310
        %v3647 = vpack.c.b16 %v2315, %v2313
        %v3648 = vpack.c.b16 %v2316, %v2314
        %v3649 = vpack.c.b16 %v2319, %v2317
        %v3650 = vpack.c.b16 %v2320, %v2318
        %v3651 = vpack.c.b16 %v2323, %v2321
        %v3652 = vpack.c.b16 %v2324, %v2322
        %v3653 = vpack.c.b16 %v2327, %v2325
        %v3654 = vpack.c.b16 %v2328, %v2326
        %v3655 = vpack.c.b16 %v2331, %v2329
        %v3656 = vpack.c.b16 %v2332, %v2330
        %v3657 = vpack.c.b16 %v2335, %v2333
        %v3658 = vpack.c.b16 %v2336, %v2334
        %v3659 = vpack.c.b16 %v2339, %v2337
        %v3660 = vpack.c.b16 %v2340, %v2338
        %v3661 = vpack.c.b16 %v2343, %v2341
        %v3662 = vpack.c.b16 %v2344, %v2342
        %v3663 = vpack.c.b16 %v2347, %v2345
        %v3664 = vpack.c.b16 %v2348, %v2346
        %v3665 = vpack.c.b16 %v2351, %v2349
        %v3666 = vpack.c.b16 %v2352, %v2350
        %v3667 = vpack.c.b16 %v2355, %v2353
        %v3668 = vpack.c.b16 %v2356, %v2354
        %v3669 = vpack.c.b16 %v2359, %v2357
        %v3670 = vpack.c.b16 %v2360, %v2358
        %v3671 = vpack.c.b16 %v2363, %v2361
        %v3672 = vpack.c.b16 %v2364, %v2362
        %v3673 = vpack.c.b16 %v2367, %v2365
        %v3674 = vpack.c.b16 %v2368, %v2366
        %v3675 = vpack.c.b16 %v2371, %v2369
        %v3676 = vpack.c.b16 %v2372, %v2370
        %v3677 = vpack.c.b16 %v2375, %v2373
        %v3678 = vpack.c.b16 %v2376, %v2374
        %v3679 = vpack.c.b16 %v2379, %v2377
        %v3680 = vpack.c.b16 %v2380, %v2378
        %v3681 = vpack.c.b16 %v2383, %v2381
        %v3682 = vpack.c.b16 %v2384, %v2382
        %v3683 = vpack.c.b16 %v2387, %v2385
        %v3684 = vpack.c.b16 %v2388, %v2386
        %v3685 = vpack.c.b16 %v2391, %v2389
        %v3686 = vpack.c.b16 %v2392, %v2390
        %v3687 = vpack.c.b16 %v2395, %v2393
        %v3688 = vpack.c.b16 %v2396, %v2394
        %v3689 = vpack.c.b16 %v2399, %v2397
        %v3690 = vpack.c.b16 %v2400, %v2398
        %v3691 = vpack.c.b16 %v2403, %v2401
        %v3692 = vpack.c.b16 %v2404, %v2402
        %v3693 = vpack.c.b16 %v2407, %v2405
        %v3694 = vpack.c.b16 %v2408, %v2406
        %v3695 = vpack.c.b16 %v2411, %v2409
        %v3696 = vpack.c.b16 %v2412, %v2410
        %v3697 = vpack.c.b16 %v2415, %v2413
        %v3698 = vpack.c.b16 %v2416, %v2414
        %v3699 = vpack.c.b16 %v2419, %v2417
        %v3700 = vpack.c.b16 %v2420, %v2418
        %v3701 = vpack.c.b16 %v2423, %v2421
        %v3702 = vpack.c.b16 %v2424, %v2422
        %v3703 = vpack.c.b16 %v2427, %v2425
        %v3704 = vpack.c.b16 %v2428, %v2426
        %v3705 = vpack.c.b16 %v2431, %v2429
        %v3706 = vpack.c.b16 %v2432, %v2430
        %v3707 = vpack.c.b16 %v2435, %v2433
        %v3708 = vpack.c.b16 %v2436, %v2434
        %v3709 = vpack.c.b16 %v2439, %v2437
        %v3710 = vpack.c.b16 %v2440, %v2438
        %v3711 = vpack.c.b16 %v2443, %v2441
        %v3712 = vpack.c.b16 %v2444, %v2442
        %v3713 = vpack.c.b16 %v2447, %v2445
        %v3714 = vpack.c.b16 %v2448, %v2446
        %v3715 = vpack.c.b16 %v2451, %v2449
        %v3716 = vpack.c.b16 %v2452, %v2450
        %v3717 = vpack.c.b16 %v2455, %v2453
        %v3718 = vpack.c.b16 %v2456, %v2454
        %v3719 = vpack.c.b16 %v2459, %v2457
        %v3720 = vpack.c.b16 %v2460, %v2458
        %v3721 = vpack.c.b16 %v2463, %v2461
        %v3722 = vpack.c.b16 %v2464, %v2462
        %v3723 = vpack.c.b16 %v2467, %v2465
        %v3724 = vpack.c.b16 %v2468, %v2466
        %v3725 = vpack.c.b16 %v2471, %v2469
        %v3726 = vpack.c.b16 %v2472, %v2470
        %v3727 = vpack.c.b16 %v2475, %v2473
        %v3728 = vpack.c.b16 %v2476, %v2474
        %v3729 = vpack.c.b16 %v2479, %v2477
        %v3730 = vpack.c.b16 %v2480, %v2478
        %v3731 = vpack.c.b16 %v2483, %v2481
        %v3732 = vpack.c.b16 %v2484, %v2482
        %v3733 = vpack.c.b16 %v2487, %v2485
        %v3734 = vpack.c.b16 %v2488, %v2486
        %v3735 = vpack.c.b16 %v2491, %v2489
        %v3736 = vpack.c.b16 %v2492, %v2490
        %v3737 = vpack.c.b16 %v2495, %v2493
        %v3738 = vpack.c.b16 %v2496, %v2494
        %v3739 = vpack.c.b16 %v2499, %v2497
        %v3740 = vpack.c.b16 %v2500, %v2498
        %v3741 = vpack.c.b16 %v2503, %v2501
        %v3742 = vpack.c.b16 %v2504, %v2502
        %v3743 = vpack.c.b16 %v2507, %v2505
        %v3744 = vpack.c.b16 %v2508, %v2506
        %v3745 = vpack.c.b16 %v2511, %v2509
        %v3746 = vpack.c.b16 %v2512, %v2510
        %v3747 = vpack.c.b16 %v2515, %v2513
        %v3748 = vpack.c.b16 %v2516, %v2514
        %v3749 = vpack.c.b16 %v2519, %v2517
        %v3750 = vpack.c.b16 %v2520, %v2518
        %v3751 = vpack.c.b16 %v2523, %v2521
        %v3752 = vpack.c.b16 %v2524, %v2522
        %v3753 = vpack.c.b16 %v2527, %v2525
        %v3754 = vpack.c.b16 %v2528, %v2526
        %v3755 = vpack.c.b16 %v2531, %v2529
        %v3756 = vpack.c.b16 %v2532, %v2530
        %v3757 = vpack.c.b16 %v2535, %v2533
        %v3758 = vpack.c.b16 %v2536, %v2534
        %v3759 = vpack.c.b16 %v2539, %v2537
        %v3760 = vpack.c.b16 %v2540, %v2538
        %v3761 = vpack.c.b16 %v2543, %v2541
        %v3762 = vpack.c.b16 %v2544, %v2542
        %v3763 = vpack.c.b16 %v2547, %v2545
        %v3764 = vpack.c.b16 %v2548, %v2546
        %v3765 = vpack.c.b16 %v2551, %v2549
        %v3766 = vpack.c.b16 %v2552, %v2550
        %v3767 = vpack.c.b16 %v2555, %v2553
        %v3768 = vpack.c.b16 %v2556, %v2554
        %v3769 = vpack.c.b16 %v2559, %v2557
        %v3770 = vpack.c.b16 %v2560, %v2558
        %v3771 = vpack.c.b16 %v2563, %v2561
        %v3772 = vpack.c.b16 %v2564, %v2562
        %v3773 = vpack.c.b16 %v2567, %v2565
        %v3774 = vpack.c.b16 %v2568, %v2566
        %v3775 = vpack.c.b16 %v2571, %v2569
        %v3776 = vpack.c.b16 %v2572, %v2570
        %v3777 = vpack.c.b16 %v2575, %v2573
        %v3778 = vpack.c.b16 %v2576, %v2574
        %v3779 = vpack.c.b16 %v2579, %v2577
        %v3780 = vpack.c.b16 %v2580, %v2578
        %v3781 = vpack.c.b16 %v2583, %v2581
        %v3782 = vpack.c.b16 %v2584, %v2582
        %v3783 = vpack.c.b16 %v2587, %v2585
        %v3784 = vpack.c.b16 %v2588, %v2586
        %v3785 = vpack.c.b16 %v2591, %v2589
        %v3786 = vpack.c.b16 %v2592, %v2590
        %v3787 = vpack.c.b16 %v2595, %v2593
        %v3788 = vpack.c.b16 %v2596, %v2594
        %v3789 = vpack.c.b16 %v2599, %v2597
        %v3790 = vpack.c.b16 %v2600, %v2598
        %v3791 = vpack.c.b16 %v2603, %v2601
        %v3792 = vpack.c.b16 %v2604, %v2602
        %v3793 = vpack.c.b16 %v2607, %v2605
        %v3794 = vpack.c.b16 %v2608, %v2606
        %v3795 = vpack.c.b16 %v2611, %v2609
        %v3796 = vpack.c.b16 %v2612, %v2610
        %v3797 = vpack.c.b16 %v2615, %v2613
        %v3798 = vpack.c.b16 %v2616, %v2614
        %v3799 = vpack.c.b16 %v2619, %v2617
        %v3800 = vpack.c.b16 %v2620, %v2618
        %v3801 = vpack.c.b16 %v2623, %v2621
        %v3802 = vpack.c.b16 %v2624, %v2622
        %v3803 = vpack.c.b16 %v2627, %v2625
        %v3804 = vpack.c.b16 %v2628, %v2626
        %v3805 = vpack.c.b16 %v2631, %v2629
        %v3806 = vpack.c.b16 %v2632, %v2630
        %v3807 = vpack.c.b16 %v2635, %v2633
        %v3808 = vpack.c.b16 %v2636, %v2634
        %v3809 = vpack.c.b16 %v2639, %v2637
        %v3810 = vpack.c.b16 %v2640, %v2638
        %v3811 = vpack.c.b16 %v2643, %v2641
        %v3812 = vpack.c.b16 %v2644, %v2642
        %v3813 = vpack.c.b16 %v2647, %v2645
        %v3814 = vpack.c.b16 %v2648, %v2646
        %v3815 = vpack.c.b16 %v2651, %v2649
        %v3816 = vpack.c.b16 %v2652, %v2650
        %v3817 = vpack.c.b16 %v2655, %v2653
        %v3818 = vpack.c.b16 %v2656, %v2654
        %v3819 = vpack.c.b16 %v2659, %v2657
        %v3820 = vpack.c.b16 %v2660, %v2658
        %v3821 = vpack.c.b16 %v2663, %v2661
        %v3822 = vpack.c.b16 %v2664, %v2662
        %v3823 = vpack.c.b16 %v2667, %v2665
        %v3824 = vpack.c.b16 %v2668, %v2666
        %v3825 = vpack.c.b16 %v2671, %v2669
        %v3826 = vpack.c.b16 %v2672, %v2670
        %v3827 = vpack.c.b16 %v2675, %v2673
        %v3828 = vpack.c.b16 %v2676, %v2674
        %v3829 = vpack.c.b16 %v2679, %v2677
        %v3830 = vpack.c.b16 %v2680, %v2678
        %v3831 = vpack.c.b16 %v2683, %v2681
        %v3832 = vpack.c.b16 %v2684, %v2682
        %v3833 = vpack.c.b16 %v2687, %v2685
        %v3834 = vpack.c.b16 %v2688, %v2686
        %v3835 = vpack.c.b16 %v2691, %v2689
        %v3836 = vpack.c.b16 %v2692, %v2690
        %v3837 = vpack.c.b16 %v2695, %v2693
        %v3838 = vpack.c.b16 %v2696, %v2694
        %v3839 = vpack.c.b16 %v2699, %v2697
        %v3840 = vpack.c.b16 %v2700, %v2698
        %v3841 = vpack.c.b16 %v2703, %v2701
        %v3842 = vpack.c.b16 %v2704, %v2702
        %v3843 = vpack.c.b16 %v2707, %v2705
        %v3844 = vpack.c.b16 %v2708, %v2706
        %v3845 = vpack.c.b16 %v2711, %v2709
        %v3846 = vpack.c.b16 %v2712, %v2710
        %v3847 = vpack.c.b16 %v2715, %v2713
        %v3848 = vpack.c.b16 %v2716, %v2714
        %v3849 = vpack.c.b16 %v2719, %v2717
        %v3850 = vpack.c.b16 %v2720, %v2718
        %v3851 = vpack.c.b16 %v2723, %v2721
        %v3852 = vpack.c.b16 %v2724, %v2722
        %v3853 = vpack.c.b16 %v2727, %v2725
        %v3854 = vpack.c.b16 %v2728, %v2726
        %v3855 = vpack.c.b16 %v2731, %v2729
        %v3856 = vpack.c.b16 %v2732, %v2730
        %v3857 = vpack.c.b16 %v2735, %v2733
        %v3858 = vpack.c.b16 %v2736, %v2734
        %v3859 = vpack.c.b16 %v2739, %v2737
        %v3860 = vpack.c.b16 %v2740, %v2738
        %v3861 = vpack.c.b16 %v2743, %v2741
        %v3862 = vpack.c.b16 %v2744, %v2742
        %v3863 = vpack.c.b16 %v2747, %v2745
        %v3864 = vpack.c.b16 %v2748, %v2746
        %v3865 = vpack.c.b16 %v2751, %v2749
        %v3866 = vpack.c.b16 %v2752, %v2750
        %v3867 = vpack.c.b16 %v2755, %v2753
        %v3868 = vpack.c.b16 %v2756, %v2754
        %v3869 = vpack.c.b16 %v2759, %v2757
        %v3870 = vpack.c.b16 %v2760, %v2758
        %v3871 = vpack.c.b16 %v2763, %v2761
        %v3872 = vpack.c.b16 %v2764, %v2762
        %v3873 = vpack.c.b16 %v2767, %v2765
        %v3874 = vpack.c.b16 %v2768, %v2766
        %v3875 = vpack.c.b16 %v2771, %v2769
        %v3876 = vpack.c.b16 %v2772, %v2770
        %v3877 = vpack.c.b16 %v2775, %v2773
        %v3878 = vpack.c.b16 %v2776, %v2774
        %v3879 = vpack.c.b16 %v2779, %v2777
        %v3880 = vpack.c.b16 %v2780, %v2778
        %v3881 = vpack.c.b16 %v2783, %v2781
        %v3882 = vpack.c.b16 %v2784, %v2782
        %v3883 = vpack.c.b16 %v2787, %v2785
        %v3884 = vpack.c.b16 %v2788, %v2786
        %v3885 = vpack.c.b16 %v2791, %v2789
        %v3886 = vpack.c.b16 %v2792, %v2790
        %v3887 = vpack.c.b16 %v2795, %v2793
        %v3888 = vpack.c.b16 %v2796, %v2794
        %v3889 = vpack.c.b16 %v2799, %v2797
        %v3890 = vpack.c.b16 %v2800, %v2798
        %v3891 = vpack.c.b16 %v2803, %v2801
        %v3892 = vpack.c.b16 %v2804, %v2802
        %v3893 = vpack.c.b16 %v2807, %v2805
        %v3894 = vpack.c.b16 %v2808, %v2806
        %v3895 = vpack.c.b16 %v2811, %v2809
        %v3896 = vpack.c.b16 %v2812, %v2810
        %v3897 = vpack.c.b16 %v2815, %v2813
        %v3898 = vpack.c.b16 %v2816, %v2814
        %v3899 = vpack.c.b16 %v2819, %v2817
        %v3900 = vpack.c.b16 %v2820, %v2818
        %v3901 = vpack.c.b16 %v2823, %v2821
        %v3902 = vpack.c.b16 %v2824, %v2822
        %v3903 = vpack.c.b16 %v2827, %v2825
        %v3904 = vpack.c.b16 %v2828, %v2826
        %v3905 = vpack.c.b16 %v2831, %v2829
        %v3906 = vpack.c.b16 %v2832, %v2830
        %v3907 = vpack.c.b16 %v2835, %v2833
        %v3908 = vpack.c.b16 %v2836, %v2834
        %v3909 = vpack.c.b16 %v2839, %v2837
        %v3910 = vpack.c.b16 %v2840, %v2838
        %v3911 = vpack.c.b16 %v2843, %v2841
        %v3912 = vpack.c.b16 %v2844, %v2842
        %v3913 = vpack.c.b16 %v2847, %v2845
        %v3914 = vpack.c.b16 %v2848, %v2846
        %v3915 = vpack.c.b16 %v2851, %v2849
        %v3916 = vpack.c.b16 %v2852, %v2850
        %v3917 = vpack.c.b16 %v2855, %v2853
        %v3918 = vpack.c.b16 %v2856, %v2854
        %v3919 = vpack.c.b16 %v2859, %v2857
        %v3920 = vpack.c.b16 %v2860, %v2858
        %v3921 = vpack.c.b16 %v2863, %v2861
        %v3922 = vpack.c.b16 %v2864, %v2862
        %v3923 = vpack.c.b16 %v2867, %v2865
        %v3924 = vpack.c.b16 %v2868, %v2866
        %v3925 = vpack.c.b16 %v2871, %v2869
        %v3926 = vpack.c.b16 %v2872, %v2870
        %v3927 = vpack.c.b16 %v2875, %v2873
        %v3928 = vpack.c.b16 %v2876, %v2874
        %v3929 = vpack.c.b16 %v2879, %v2877
        %v3930 = vpack.c.b16 %v2880, %v2878
        %v3931 = vpack.c.b16 %v2883, %v2881
        %v3932 = vpack.c.b16 %v2884, %v2882
        %v3933 = vpack.c.b16 %v2887, %v2885
        %v3934 = vpack.c.b16 %v2888, %v2886
        %v3935 = vpack.c.b16 %v2891, %v2889
        %v3936 = vpack.c.b16 %v2892, %v2890
        %v3937 = vpack.c.b16 %v2895, %v2893
        %v3938 = vpack.c.b16 %v2896, %v2894
        %v3939 = vpack.c.b16 %v2899, %v2897
        %v3940 = vpack.c.b16 %v2900, %v2898
        %v3941 = vpack.c.b16 %v2903, %v2901
        %v3942 = vpack.c.b16 %v2904, %v2902
        %v3943 = vpack.c.b16 %v2907, %v2905
        %v3944 = vpack.c.b16 %v2908, %v2906
        %v3945 = vpack.c.b16 %v2911, %v2909
        %v3946 = vpack.c.b16 %v2912, %v2910
        %v3947 = vpack.c.b16 %v2915, %v2913
        %v3948 = vpack.c.b16 %v2916, %v2914
        %v3949 = vpack.c.b16 %v2919, %v2917
        %v3950 = vpack.c.b16 %v2920, %v2918
        %v3951 = vpack.c.b16 %v2923, %v2921
        %v3952 = vpack.c.b16 %v2924, %v2922
        %v3953 = vpack.c.b16 %v2927, %v2925
        %v3954 = vpack.c.b16 %v2928, %v2926
        %v3955 = vpack.c.b16 %v2931, %v2929
        %v3956 = vpack.c.b16 %v2932, %v2930
        %v3957 = vpack.c.b16 %v2935, %v2933
        %v3958 = vpack.c.b16 %v2936, %v2934
        %v3959 = vpack.c.b16 %v2939, %v2937
        %v3960 = vpack.c.b16 %v2940, %v2938
        %v3961 = vpack.c.b16 %v2943, %v2941
        %v3962 = vpack.c.b16 %v2944, %v2942
        %v3963 = vpack.c.b16 %v2947, %v2945
        %v3964 = vpack.c.b16 %v2948, %v2946
        %v3965 = vpack.c.b16 %v2951, %v2949
        %v3966 = vpack.c.b16 %v2952, %v2950
        %v3967 = vpack.c.b16 %v2955, %v2953
        %v3968 = vpack.c.b16 %v2956, %v2954
        %v3969 = vpack.c.b16 %v2959, %v2957
        %v3970 = vpack.c.b16 %v2960, %v2958
        %v3971 = vpack.c.b16 %v2963, %v2961
        %v3972 = vpack.c.b16 %v2964, %v2962
        %v3973 = vpack.c.b16 %v2967, %v2965
        %v3974 = vpack.c.b16 %v2968, %v2966
        %v3975 = vpack.c.b16 %v2971, %v2969
        %v3976 = vpack.c.b16 %v2972, %v2970
        %v3977 = vpack.c.b16 %v2975, %v2973
        %v3978 = vpack.c.b16 %v2976, %v2974
        %v3979 = vpack.c.b16 %v2979, %v2977
        %v3980 = vpack.c.b16 %v2980, %v2978
        %v3981 = vpack.c.b16 %v2983, %v2981
        %v3982 = vpack.c.b16 %v2984, %v2982
        %v3983 = vpack.c.b16 %v2987, %v2985
        %v3984 = vpack.c.b16 %v2988, %v2986
        %v3985 = vpack.c.b16 %v2991, %v2989
        %v3986 = vpack.c.b16 %v2992, %v2990
        %v3987 = vpack.c.b16 %v2995, %v2993
        %v3988 = vpack.c.b16 %v2996, %v2994
        %v3989 = vpack.c.b16 %v2999, %v2997
        %v3990 = vpack.c.b16 %v3000, %v2998
        %v3991 = vpack.c.b16 %v3003, %v3001
        %v3992 = vpack.c.b16 %v3004, %v3002
        %v3993 = vpack.c.b16 %v3007, %v3005
        %v3994 = vpack.c.b16 %v3008, %v3006
        %v3995 = vpack.c.b16 %v3011, %v3009
        %v3996 = vpack.c.b16 %v3012, %v3010
        %v3997 = vpack.c.b16 %v3015, %v3013
        %v3998 = vpack.c.b16 %v3016, %v3014
        %v3999 = vpack.c.b16 %v3019, %v3017
        %v4000 = vpack.c.b16 %v3020, %v3018
        %v4001 = vpack.c.b16 %v3023, %v3021
        %v4002 = vpack.c.b16 %v3024, %v3022
        %v4003 = vpack.c.b16 %v3027, %v3025
        %v4004 = vpack.c.b16 %v3028, %v3026
        %v4005 = vpack.c.b16 %v3031, %v3029
        %v4006 = vpack.c.b16 %v3032, %v3030
        %v4007 = vpack.c.b16 %v3035, %v3033
        %v4008 = vpack.c.b16 %v3036, %v3034
        %v4009 = vpack.c.b16 %v3039, %v3037
        %v4010 = vpack.c.b16 %v3040, %v3038
        %v4011 = vpack.c.b16 %v3043, %v3041
        %v4012 = vpack.c.b16 %v3044, %v3042
        %v4013 = vpack.c.b16 %v3047, %v3045
        %v4014 = vpack.c.b16 %v3048, %v3046
        %v4015 = vpack.c.b16 %v3051, %v3049
        %v4016 = vpack.c.b16 %v3052, %v3050
        %v4017 = vpack.c.b16 %v3055, %v3053
        %v4018 = vpack.c.b16 %v3056, %v3054
        %v4019 = vpack.c.b16 %v3059, %v3057
        %v4020 = vpack.c.b16 %v3060, %v3058
        %v4021 = vpack.c.b16 %v3063, %v3061
        %v4022 = vpack.c.b16 %v3064, %v3062
        %v4023 = vpack.c.b16 %v3067, %v3065
        %v4024 = vpack.c.b16 %v3068, %v3066
        %v4025 = vpack.c.b16 %v3071, %v3069
        %v4026 = vpack.c.b16 %v3072, %v3070
        %v4027 = vpack.c.b16 %v3075, %v3073
        %v4028 = vpack.c.b16 %v3076, %v3074
        %v4029 = vpack.c.b16 %v3079, %v3077
        %v4030 = vpack.c.b16 %v3080, %v3078
        %v4031 = vpack.c.b16 %v3083, %v3081
        %v4032 = vpack.c.b16 %v3084, %v3082
        %v4033 = vpack.c.b16 %v3087, %v3085
        %v4034 = vpack.c.b16 %v3088, %v3086
        %v4035 = vpack.c.b16 %v3091, %v3089
        %v4036 = vpack.c.b16 %v3092, %v3090
        %v4037 = vpack.c.b16 %v3095, %v3093
        %v4038 = vpack.c.b16 %v3096, %v3094
        %v4039 = vpack.c.b16 %v3099, %v3097
        %v4040 = vpack.c.b16 %v3100, %v3098
        %v4041 = vpack.c.b16 %v3103, %v3101
        %v4042 = vpack.c.b16 %v3104, %v3102
        %v4043 = vpack.c.b16 %v3107, %v3105
        %v4044 = vpack.c.b16 %v3108, %v3106
        %v4045 = vpack.c.b16 %v3111, %v3109
        %v4046 = vpack.c.b16 %v3112, %v3110
        %v4047 = vpack.c.b16 %v3115, %v3113
        %v4048 = vpack.c.b16 %v3116, %v3114
        %v4049 = vpack.c.b16 %v3119, %v3117
        %v4050 = vpack.c.b16 %v3120, %v3118
        %v4051 = vpack.c.b16 %v3123, %v3121
        %v4052 = vpack.c.b16 %v3124, %v3122
        %v4053 = vpack.c.b16 %v3127, %v3125
        %v4054 = vpack.c.b16 %v3128, %v3126
        %v4055 = vpack.c.b16 %v3131, %v3129
        %v4056 = vpack.c.b16 %v3132, %v3130
        %v4057 = vpack.c.b16 %v3135, %v3133
        %v4058 = vpack.c.b16 %v3136, %v3134
        %v4059 = vpack.c.b16 %v3139, %v3137
        %v4060 = vpack.c.b16 %v3140, %v3138
        %v4061 = vpack.c.b16 %v3143, %v3141
        %v4062 = vpack.c.b16 %v3144, %v3142
        %v4063 = vpack.c.b16 %v3147, %v3145
        %v4064 = vpack.c.b16 %v3148, %v3146
        %v4065 = vpack.c.b16 %v3151, %v3149
        %v4066 = vpack.c.b16 %v3152, %v3150
        %v4067 = vpack.c.b16 %v3155, %v3153
        %v4068 = vpack.c.b16 %v3156, %v3154
        %v4069 = vpack.c.b16 %v3159, %v3157
        %v4070 = vpack.c.b16 %v3160, %v3158
        %v4071 = vpack.c.b16 %v3163, %v3161
        %v4072 = vpack.c.b16 %v3164, %v3162
        %v4073 = vpack.c.b16 %v3167, %v3165
        %v4074 = vpack.c.b16 %v3168, %v3166
        %v4075 = vpack.c.b16 %v3171, %v3169
        %v4076 = vpack.c.b16 %v3172, %v3170
        %v4077 = vpack.c.b16 %v3175, %v3173
        %v4078 = vpack.c.b16 %v3176, %v3174
        %v4079 = vpack.c.b16 %v3179, %v3177
        %v4080 = vpack.c.b16 %v3180, %v3178
        %v4081 = vpack.c.b16 %v3183, %v3181
        %v4082 = vpack.c.b16 %v3184, %v3182
        %v4083 = vpack.c.b16 %v3187, %v3185
        %v4084 = vpack.c.b16 %v3188, %v3186
        %v4085 = vpack.c.b16 %v3191, %v3189
        %v4086 = vpack.c.b16 %v3192, %v3190
        %v4087 = vpack.c.b16 %v3195, %v3193
        %v4088 = vpack.c.b16 %v3196, %v3194
        %v4089 = vpack.c.b16 %v3199, %v3197
        %v4090 = vpack.c.b16 %v3200, %v3198
        %v4091 = vpack.c.b16 %v3203, %v3201
        %v4092 = vpack.c.b16 %v3204, %v3202
        %v4093 = vpack.c.b16 %v3207, %v3205
        %v4094 = vpack.c.b16 %v3208, %v3206
        %v4095 = vpack.c.b16 %v3211, %v3209
        %v4096 = vpack.c.b16 %v3212, %v3210
        %v4097 = vpack.c.b16 %v3215, %v3213
        %v4098 = vpack.c.b16 %v3216, %v3214
        %v4099 = vpack.c.b16 %v3219, %v3217
        %v4100 = vpack.c.b16 %v3220, %v3218
        %v4101 = vpack.c.b16 %v3223, %v3221
        %v4102 = vpack.c.b16 %v3224, %v3222
        %v4103 = vpack.c.b16 %v3227, %v3225
        %v4104 = vpack.c.b16 %v3228, %v3226
        %v4105 = vpack.c.b16 %v3231, %v3229
        %v4106 = vpack.c.b16 %v3232, %v3230
        %v4107 = vpack.c.b16 %v3235, %v3233
        %v4108 = vpack.c.b16 %v3236, %v3234
        %v4109 = vpack.c.b16 %v3239, %v3237
        %v4110 = vpack.c.b16 %v3240, %v3238
        %v4111 = vpack.c.b16 %v3243, %v3241
        %v4112 = vpack.c.b16 %v3244, %v3242
        %v4113 = vpack.c.b16 %v3247, %v3245
        %v4114 = vpack.c.b16 %v3248, %v3246
        %v4115 = vpack.c.b16 %v3251, %v3249
        %v4116 = vpack.c.b16 %v3252, %v3250
        %v4117 = vpack.c.b16 %v3255, %v3253
        %v4118 = vpack.c.b16 %v3256, %v3254
        %v4119 = vpack.c.b16 %v3259, %v3257
        %v4120 = vpack.c.b16 %v3260, %v3258
        %v4121 = vpack.c.b16 %v3263, %v3261
        %v4122 = vpack.c.b16 %v3264, %v3262
        %v4123 = vpack.c.b16 %v3267, %v3265
        %v4124 = vpack.c.b16 %v3268, %v3266
        %v4125 = vpack.c.b16 %v3271, %v3269
        %v4126 = vpack.c.b16 %v3272, %v3270
        %v4127 = vpack.c.b16 %v3275, %v3273
        %v4128 = vpack.c.b16 %v3276, %v3274
        %v4129 = vpack.c.b16 %v3279, %v3277
        %v4130 = vpack.c.b16 %v3280, %v3278
        %v4131 = vpack.c.b16 %v3283, %v3281
        %v4132 = vpack.c.b16 %v3284, %v3282
        %v4133 = vpack.c.b16 %v3287, %v3285
        %v4134 = vpack.c.b16 %v3288, %v3286
        %v4135 = vpack.c.b16 %v3291, %v3289
        %v4136 = vpack.c.b16 %v3292, %v3290
        %v4137 = vpack.c.b16 %v3295, %v3293
        %v4138 = vpack.c.b16 %v3296, %v3294
        %v4139 = vpack.c.b16 %v3299, %v3297
        %v4140 = vpack.c.b16 %v3300, %v3298
        %v4141 = vpack.c.b16 %v3303, %v3301
        %v4142 = vpack.c.b16 %v3304, %v3302
        %v4143 = vpack.c.b16 %v3307, %v3305
        %v4144 = vpack.c.b16 %v3308, %v3306
        %v4145 = vpack.c.b16 %v3311, %v3309
        %v4146 = vpack.c.b16 %v3312, %v3310
        %v4147 = vpack.c.b16 %v3315, %v3313
        %v4148 = vpack.c.b16 %v3316, %v3314
        %v4149 = vpack.c.b16 %v3319, %v3317
        %v4150 = vpack.c.b16 %v3320, %v3318
        %v4151 = vpack.c.b16 %v3323, %v3321
        %v4152 = vpack.c.b16 %v3324, %v3322
        %v4153 = vpack.c.b16 %v3327, %v3325
        %v4154 = vpack.c.b16 %v3328, %v3326
        %v4155 = vpack.c.b16 %v3331, %v3329
        %v4156 = vpack.c.b16 %v3332, %v3330
        %v4157 = vpack.c.b16 %v3335, %v3333
        %v4158 = vpack.c.b16 %v3336, %v3334
        %v4159 = vpack.c.b16 %v3339, %v3337
        %v4160 = vpack.c.b16 %v3340, %v3338
        %v4161 = vpack.c.b16 %v3343, %v3341
        %v4162 = vpack.c.b16 %v3344, %v3342
        %v4163 = vpack.c.b16 %v3347, %v3345
        %v4164 = vpack.c.b16 %v3348, %v3346
        %v4165 = vpack.c.b16 %v3351, %v3349
        %v4166 = vpack.c.b16 %v3352, %v3350
        %v4167 = vpack.c.b16 %v3355, %v3353
        %v4168 = vpack.c.b16 %v3356, %v3354
        %v4169 = vpack.c.b16 %v3359, %v3357
        %v4170 = vpack.c.b16 %v3360, %v3358
        %v4171 = vpack.c.b16 %v3363, %v3361
        %v4172 = vpack.c.b16 %v3364, %v3362
        %v4173 = vpack.c.b16 %v3367, %v3365
        %v4174 = vpack.c.b16 %v3368, %v3366
        %v4175 = vpack.c.b16 %v3371, %v3369
        %v4176 = vpack.c.b16 %v3372, %v3370
        %v4177 = vpack.c.b16 %v3375, %v3373
        %v4178 = vpack.c.b16 %v3376, %v3374
        %v4179 = vpack.c.b16 %v3379, %v3377
        %v4180 = vpack.c.b16 %v3380, %v3378
        %v4181 = vpack.c.b16 %v3383, %v3381
        %v4182 = vpack.c.b16 %v3384, %v3382
        %v4183 = vpack.c.b16 %v3387, %v3385
        %v4184 = vpack.c.b16 %v3388, %v3386
        %v4185 = vpack.c.b16 %v3391, %v3389
        %v4186 = vpack.c.b16 %v3392, %v3390
        %v4187 = vpack.c.b16 %v3395, %v3393
        %v4188 = vpack.c.b16 %v3396, %v3394
        %v4189 = vpack.c.b16 %v3399, %v3397
        %v4190 = vpack.c.b16 %v3400, %v3398
        %v4191 = vpack.c.b16 %v3403, %v3401
        %v4192 = vpack.c.b16 %v3404, %v3402
        %v4193 = vpack.c.b16 %v3407, %v3405
        %v4194 = vpack.c.b16 %v3408, %v3406
        %v4195 = vpack.c.b16 %v3411, %v3409
        %v4196 = vpack.c.b16 %v3412, %v3410
        %v4197 = vpack.c.b16 %v3415, %v3413
        %v4198 = vpack.c.b16 %v3416, %v3414
        %v4199 = vpack.c.b16 %v3419, %v3417
        %v4200 = vpack.c.b16 %v3420, %v3418
        %v4201 = vpack.c.b16 %v3423, %v3421
        %v4202 = vpack.c.b16 %v3424, %v3422
        %v4203 = vpack.c.b16 %v3427, %v3425
        %v4204 = vpack.c.b16 %v3428, %v3426
        %v4205 = vpack.c.b16 %v3431, %v3429
        %v4206 = vpack.c.b16 %v3432, %v3430
        %v4207 = vpack.c.b16 %v3435, %v3433
        %v4208 = vpack.c.b16 %v3436, %v3434
        %v4209 = vpack.c.b16 %v3439, %v3437
        %v4210 = vpack.c.b16 %v3440, %v3438
        %v4211 = vpack.c.b16 %v3443, %v3441
        %v4212 = vpack.c.b16 %v3444, %v3442
        %v4213 = vpack.c.b16 %v3447, %v3445
        %v4214 = vpack.c.b16 %v3448, %v3446
        %v4215 = vpack.c.b16 %v3451, %v3449
        %v4216 = vpack.c.b16 %v3452, %v3450
        %v4217 = vpack.c.b16 %v3455, %v3453
        %v4218 = vpack.c.b16 %v3456, %v3454
        %v4219 = vpack.c.b16 %v3459, %v3457
        %v4220 = vpack.c.b16 %v3460, %v3458
        %v4221 = vpack.c.b16 %v3463, %v3461
        %v4222 = vpack.c.b16 %v3464, %v3462
        %v4223 = vpack.c.b16 %v3467, %v3465
        %v4224 = vpack.c.b16 %v3468, %v3466
        %v4225 = vpack.c.b16 %v3471, %v3469
        %v4226 = vpack.c.b16 %v3472, %v3470
        %v4227 = vpack.c.b16 %v3475, %v3473
        %v4228 = vpack.c.b16 %v3476, %v3474
        %4981 = vmatprep.subr.bf16.mxu0 %v3478
        %4982 = vmatpush1.bf16.msra.mxu0 %v3477
        %4983 = vmatprep.subr.bf16.mxu0 %v3480
        %4984 = vmatpush1.bf16.msra.mxu0 %v3479
        %4985 = vmatprep.subr.bf16.mxu0 %v3482
        %4986 = vmatpush1.bf16.msra.mxu0 %v3481
        %4987 = vmatprep.subr.bf16.mxu0 %v3484
        %4988 = vmatpush1.bf16.msra.mxu0 %v3483
        %4989 = vmatprep.subr.bf16.mxu0 %v3486
        %4990 = vmatpush1.bf16.msra.mxu0 %v3485
        %4991 = vmatprep.subr.bf16.mxu0 %v3488
        %4992 = vmatpush1.bf16.msra.mxu0 %v3487
        %4993 = vmatprep.subr.bf16.mxu0 %v3490
        %4994 = vmatpush1.bf16.msra.mxu0 %v3489
        %4995 = vmatprep.subr.bf16.mxu0 %v3492
        %4996 = vmatpush1.bf16.msra.mxu0 %v3491
        %4997 = vmatprep.subr.bf16.mxu0 %v3494
        %4998 = vmatpush1.bf16.msra.mxu0 %v3493
        %4999 = vmatprep.subr.bf16.mxu0 %v3496
        %5000 = vmatpush1.bf16.msra.mxu0 %v3495
        %5001 = vmatprep.subr.bf16.mxu0 %v3498
        %5002 = vmatpush1.bf16.msra.mxu0 %v3497
        %5003 = vmatprep.subr.bf16.mxu0 %v3500
        %5004 = vmatpush1.bf16.msra.mxu0 %v3499
        %5005 = vmatprep.subr.bf16.mxu0 %v3502
        %5006 = vmatpush1.bf16.msra.mxu0 %v3501
        %5007 = vmatprep.subr.bf16.mxu0 %v3504
        %5008 = vmatpush1.bf16.msra.mxu0 %v3503
        %5009 = vmatprep.subr.bf16.mxu0 %v3506
        %5010 = vmatpush1.bf16.msra.mxu0 %v3505
        %5011 = vmatprep.subr.bf16.mxu0 %v3508
        %5012 = vmatpush1.bf16.msra.mxu0 %v3507
        %5013 = vmatprep.mubr.bf16.mxu0 %v1128
        %5014 = vmatmul.mubr.bf16.gmra.mrb[0].mxu0 %v1127
        %v5015 = vpop.f32.mrb[0].mxu0
        %v5016 = vadd.f32 0.0, %v5015
        %v5017 = vpop.f32.mrb[0].mxu0
        %v5018 = vadd.f32 0.0, %v5017
        %v5019 = vpop.f32.mrb[0].mxu0
        %v5020 = vpop.f32.mrb[0].mxu0
        %5021 = vdwg.mxu0
        %5022 = vmatprep.subr.bf16.mxu0 %v3510
        %5023 = vmatpush1.bf16.msra.mxu0 %v3509
        %5024 = vmatprep.subr.bf16.mxu0 %v3512
        %5025 = vmatpush1.bf16.msra.mxu0 %v3511
        %5026 = vmatprep.subr.bf16.mxu0 %v3514
        %5027 = vmatpush1.bf16.msra.mxu0 %v3513
        %5028 = vmatprep.subr.bf16.mxu0 %v3516
        %5029 = vmatpush1.bf16.msra.mxu0 %v3515
        %5030 = vmatprep.subr.bf16.mxu0 %v3518
        %5031 = vmatpush1.bf16.msra.mxu0 %v3517
        %5032 = vmatprep.subr.bf16.mxu0 %v3520
        %5033 = vmatpush1.bf16.msra.mxu0 %v3519
        %5034 = vmatprep.subr.bf16.mxu0 %v3522
        %5035 = vmatpush1.bf16.msra.mxu0 %v3521
        %5036 = vmatprep.subr.bf16.mxu0 %v3524
        %5037 = vmatpush1.bf16.msra.mxu0 %v3523
        %5038 = vmatprep.subr.bf16.mxu0 %v3526
        %5039 = vmatpush1.bf16.msra.mxu0 %v3525
        %5040 = vmatprep.subr.bf16.mxu0 %v3528
        %5041 = vmatpush1.bf16.msra.mxu0 %v3527
        %5042 = vmatprep.subr.bf16.mxu0 %v3530
        %5043 = vmatpush1.bf16.msra.mxu0 %v3529
        %5044 = vmatprep.subr.bf16.mxu0 %v3532
        %5045 = vmatpush1.bf16.msra.mxu0 %v3531
        %5046 = vmatprep.subr.bf16.mxu0 %v3534
        %5047 = vmatpush1.bf16.msra.mxu0 %v3533
        %5048 = vmatprep.subr.bf16.mxu0 %v3536
        %5049 = vmatpush1.bf16.msra.mxu0 %v3535
        %5050 = vmatprep.subr.bf16.mxu0 %v3538
        %5051 = vmatpush1.bf16.msra.mxu0 %v3537
        %5052 = vmatprep.subr.bf16.mxu0 %v3540
        %5053 = vmatpush1.bf16.msra.mxu0 %v3539
        %5054 = vmatprep.mubr.bf16.mxu0 %v1130
        %5055 = vmatmul.mubr.bf16.gmra.mrb[0].mxu0 %v1129
        %v5056 = vpop.f32.mrb[0].mxu0
        %v5057 = vadd.f32 %v5016, %v5056
        %v5058 = vpop.f32.mrb[0].mxu0
        %v5059 = vadd.f32 %v5018, %v5058
        %v5060 = vpop.f32.mrb[0].mxu0
        %v5061 = vpop.f32.mrb[0].mxu0
        %5062 = vdwg.mxu0
        %5063 = vmatprep.subr.bf16.mxu0 %v3542
        %5064 = vmatpush1.bf16.msra.mxu0 %v3541
        %5065 = vmatprep.subr.bf16.mxu0 %v3544
        %5066 = vmatpush1.bf16.msra.mxu0 %v3543
        %5067 = vmatprep.subr.bf16.mxu0 %v3546
        %5068 = vmatpush1.bf16.msra.mxu0 %v3545
        %5069 = vmatprep.subr.bf16.mxu0 %v3548
        %5070 = vmatpush1.bf16.msra.mxu0 %v3547
        %5071 = vmatprep.subr.bf16.mxu0 %v3550
        %5072 = vmatpush1.bf16.msra.mxu0 %v3549
        %5073 = vmatprep.subr.bf16.mxu0 %v3552
        %5074 = vmatpush1.bf16.msra.mxu0 %v3551
        %5075 = vmatprep.subr.bf16.mxu0 %v3554
        %5076 = vmatpush1.bf16.msra.mxu0 %v3553
        %5077 = vmatprep.subr.bf16.mxu0 %v3556
        %5078 = vmatpush1.bf16.msra.mxu0 %v3555
        %5079 = vmatprep.subr.bf16.mxu0 %v3558
        %5080 = vmatpush1.bf16.msra.mxu0 %v3557
        %5081 = vmatprep.subr.bf16.mxu0 %v3560
        %5082 = vmatpush1.bf16.msra.mxu0 %v3559
        %5083 = vmatprep.subr.bf16.mxu0 %v3562
        %5084 = vmatpush1.bf16.msra.mxu0 %v3561
        %5085 = vmatprep.subr.bf16.mxu0 %v3564
        %5086 = vmatpush1.bf16.msra.mxu0 %v3563
        %5087 = vmatprep.subr.bf16.mxu0 %v3566
        %5088 = vmatpush1.bf16.msra.mxu0 %v3565
        %5089 = vmatprep.subr.bf16.mxu0 %v3568
        %5090 = vmatpush1.bf16.msra.mxu0 %v3567
        %5091 = vmatprep.subr.bf16.mxu0 %v3570
        %5092 = vmatpush1.bf16.msra.mxu0 %v3569
        %5093 = vmatprep.subr.bf16.mxu0 %v3572
        %5094 = vmatpush1.bf16.msra.mxu0 %v3571
        %5095 = vmatprep.mubr.bf16.mxu0 %v1132
        %5096 = vmatmul.mubr.bf16.gmra.mrb[0].mxu0 %v1131
        %v5097 = vpop.f32.mrb[0].mxu0
        %v5098 = vadd.f32 %v5057, %v5097
        %v5099 = vpop.f32.mrb[0].mxu0
        %v5100 = vadd.f32 %v5059, %v5099
        %v5101 = vpop.f32.mrb[0].mxu0
        %v5102 = vpop.f32.mrb[0].mxu0
        %5103 = vdwg.mxu0
        %5104 = vmatprep.subr.bf16.mxu0 %v3574
        %5105 = vmatpush1.bf16.msra.mxu0 %v3573
        %5106 = vmatprep.subr.bf16.mxu0 %v3576
        %5107 = vmatpush1.bf16.msra.mxu0 %v3575
        %5108 = vmatprep.subr.bf16.mxu0 %v3578
        %5109 = vmatpush1.bf16.msra.mxu0 %v3577
        %5110 = vmatprep.subr.bf16.mxu0 %v3580
        %5111 = vmatpush1.bf16.msra.mxu0 %v3579
        %5112 = vmatprep.subr.bf16.mxu0 %v3582
        %5113 = vmatpush1.bf16.msra.mxu0 %v3581
        %5114 = vmatprep.subr.bf16.mxu0 %v3584
        %5115 = vmatpush1.bf16.msra.mxu0 %v3583
        %5116 = vmatprep.subr.bf16.mxu0 %v3586
        %5117 = vmatpush1.bf16.msra.mxu0 %v3585
        %5118 = vmatprep.subr.bf16.mxu0 %v3588
        %5119 = vmatpush1.bf16.msra.mxu0 %v3587
        %5120 = vmatprep.subr.bf16.mxu0 %v3590
        %5121 = vmatpush1.bf16.msra.mxu0 %v3589
        %5122 = vmatprep.subr.bf16.mxu0 %v3592
        %5123 = vmatpush1.bf16.msra.mxu0 %v3591
        %5124 = vmatprep.subr.bf16.mxu0 %v3594
        %5125 = vmatpush1.bf16.msra.mxu0 %v3593
        %5126 = vmatprep.subr.bf16.mxu0 %v3596
        %5127 = vmatpush1.bf16.msra.mxu0 %v3595
        %5128 = vmatprep.subr.bf16.mxu0 %v3598
        %5129 = vmatpush1.bf16.msra.mxu0 %v3597
        %5130 = vmatprep.subr.bf16.mxu0 %v3600
        %5131 = vmatpush1.bf16.msra.mxu0 %v3599
        %5132 = vmatprep.subr.bf16.mxu0 %v3602
        %5133 = vmatpush1.bf16.msra.mxu0 %v3601
        %5134 = vmatprep.subr.bf16.mxu0 %v3604
        %5135 = vmatpush1.bf16.msra.mxu0 %v3603
        %5136 = vmatprep.mubr.bf16.mxu0 %v1134
        %5137 = vmatmul.mubr.bf16.gmra.mrb[0].mxu0 %v1133
        %v5138 = vpop.f32.mrb[0].mxu0
        %v5139 = vadd.f32 %v5098, %v5138
        %v5140 = vpop.f32.mrb[0].mxu0
        %v5141 = vadd.f32 %v5100, %v5140
        %v5142 = vpop.f32.mrb[0].mxu0
        %v5143 = vpop.f32.mrb[0].mxu0
        %5144 = vdwg.mxu0
        %5145 = vmatprep.subr.bf16.mxu0 %v3606
        %5146 = vmatpush1.bf16.msra.mxu0 %v3605
        %5147 = vmatprep.subr.bf16.mxu0 %v3608
        %5148 = vmatpush1.bf16.msra.mxu0 %v3607
        %5149 = vmatprep.subr.bf16.mxu0 %v3610
        %5150 = vmatpush1.bf16.msra.mxu0 %v3609
        %5151 = vmatprep.subr.bf16.mxu0 %v3612
        %5152 = vmatpush1.bf16.msra.mxu0 %v3611
        %5153 = vmatprep.subr.bf16.mxu0 %v3614
        %5154 = vmatpush1.bf16.msra.mxu0 %v3613
        %5155 = vmatprep.subr.bf16.mxu0 %v3616
        %5156 = vmatpush1.bf16.msra.mxu0 %v3615
        %5157 = vmatprep.subr.bf16.mxu0 %v3618
        %5158 = vmatpush1.bf16.msra.mxu0 %v3617
        %5159 = vmatprep.subr.bf16.mxu0 %v3620
        %5160 = vmatpush1.bf16.msra.mxu0 %v3619
        %5161 = vmatprep.subr.bf16.mxu0 %v3622
        %5162 = vmatpush1.bf16.msra.mxu0 %v3621
        %5163 = vmatprep.subr.bf16.mxu0 %v3624
        %5164 = vmatpush1.bf16.msra.mxu0 %v3623
        %5165 = vmatprep.subr.bf16.mxu0 %v3626
        %5166 = vmatpush1.bf16.msra.mxu0 %v3625
        %5167 = vmatprep.subr.bf16.mxu0 %v3628
        %5168 = vmatpush1.bf16.msra.mxu0 %v3627
        %5169 = vmatprep.subr.bf16.mxu0 %v3630
        %5170 = vmatpush1.bf16.msra.mxu0 %v3629
        %5171 = vmatprep.subr.bf16.mxu0 %v3632
        %5172 = vmatpush1.bf16.msra.mxu0 %v3631
        %5173 = vmatprep.subr.bf16.mxu0 %v3634
        %5174 = vmatpush1.bf16.msra.mxu0 %v3633
        %5175 = vmatprep.subr.bf16.mxu0 %v3636
        %5176 = vmatpush1.bf16.msra.mxu0 %v3635
        %5177 = vmatprep.mubr.bf16.mxu0 %v1136
        %5178 = vmatmul.mubr.bf16.gmra.mrb[0].mxu0 %v1135
        %v5179 = vpop.f32.mrb[0].mxu0
        %v5180 = vadd.f32 %v5139, %v5179
        %v5181 = vpop.f32.mrb[0].mxu0
        %v5182 = vadd.f32 %v5141, %v5181
        %v5183 = vpop.f32.mrb[0].mxu0
        %v5184 = vpop.f32.mrb[0].mxu0
        %5185 = vdwg.mxu0
        %5186 = vmatprep.subr.bf16.mxu0 %v3638
        %5187 = vmatpush1.bf16.msra.mxu0 %v3637
        %5188 = vmatprep.subr.bf16.mxu0 %v3640
        %5189 = vmatpush1.bf16.msra.mxu0 %v3639
        %5190 = vmatprep.subr.bf16.mxu0 %v3642
        %5191 = vmatpush1.bf16.msra.mxu0 %v3641
        %5192 = vmatprep.subr.bf16.mxu0 %v3644
        %5193 = vmatpush1.bf16.msra.mxu0 %v3643
        %5194 = vmatprep.subr.bf16.mxu0 %v3646
        %5195 = vmatpush1.bf16.msra.mxu0 %v3645
        %5196 = vmatprep.subr.bf16.mxu0 %v3648
        %5197 = vmatpush1.bf16.msra.mxu0 %v3647
        %5198 = vmatprep.subr.bf16.mxu0 %v3650
        %5199 = vmatpush1.bf16.msra.mxu0 %v3649
        %5200 = vmatprep.subr.bf16.mxu0 %v3652
        %5201 = vmatpush1.bf16.msra.mxu0 %v3651
        %5202 = vmatprep.subr.bf16.mxu0 %v3654
        %5203 = vmatpush1.bf16.msra.mxu0 %v3653
        %5204 = vmatprep.subr.bf16.mxu0 %v3656
        %5205 = vmatpush1.bf16.msra.mxu0 %v3655
        %5206 = vmatprep.subr.bf16.mxu0 %v3658
        %5207 = vmatpush1.bf16.msra.mxu0 %v3657
        %5208 = vmatprep.subr.bf16.mxu0 %v3660
        %5209 = vmatpush1.bf16.msra.mxu0 %v3659
        %5210 = vmatprep.subr.bf16.mxu0 %v3662
        %5211 = vmatpush1.bf16.msra.mxu0 %v3661
        %5212 = vmatprep.subr.bf16.mxu0 %v3664
        %5213 = vmatpush1.bf16.msra.mxu0 %v3663
        %5214 = vmatprep.subr.bf16.mxu0 %v3666
        %5215 = vmatpush1.bf16.msra.mxu0 %v3665
        %5216 = vmatprep.subr.bf16.mxu0 %v3668
        %5217 = vmatpush1.bf16.msra.mxu0 %v3667
        %5218 = vmatprep.mubr.bf16.mxu0 %v1138
        %5219 = vmatmul.mubr.bf16.gmra.mrb[0].mxu0 %v1137
        %v5220 = vpop.f32.mrb[0].mxu0
        %v5221 = vadd.f32 %v5180, %v5220
        %v5222 = vpop.f32.mrb[0].mxu0
        %v5223 = vadd.f32 %v5182, %v5222
        %v5224 = vpop.f32.mrb[0].mxu0
        %v5225 = vpop.f32.mrb[0].mxu0
        %5226 = vdwg.mxu0
        %5227 = vmatprep.subr.bf16.mxu0 %v3670
        %5228 = vmatpush1.bf16.msra.mxu0 %v3669
        %5229 = vmatprep.subr.bf16.mxu0 %v3672
        %5230 = vmatpush1.bf16.msra.mxu0 %v3671
        %5231 = vmatprep.subr.bf16.mxu0 %v3674
        %5232 = vmatpush1.bf16.msra.mxu0 %v3673
        %5233 = vmatprep.subr.bf16.mxu0 %v3676
        %5234 = vmatpush1.bf16.msra.mxu0 %v3675
        %5235 = vmatprep.subr.bf16.mxu0 %v3678
        %5236 = vmatpush1.bf16.msra.mxu0 %v3677
        %5237 = vmatprep.subr.bf16.mxu0 %v3680
        %5238 = vmatpush1.bf16.msra.mxu0 %v3679
        %5239 = vmatprep.subr.bf16.mxu0 %v3682
        %5240 = vmatpush1.bf16.msra.mxu0 %v3681
        %5241 = vmatprep.subr.bf16.mxu0 %v3684
        %5242 = vmatpush1.bf16.msra.mxu0 %v3683
        %5243 = vmatprep.subr.bf16.mxu0 %v3686
        %5244 = vmatpush1.bf16.msra.mxu0 %v3685
        %5245 = vmatprep.subr.bf16.mxu0 %v3688
        %5246 = vmatpush1.bf16.msra.mxu0 %v3687
        %5247 = vmatprep.subr.bf16.mxu0 %v3690
        %5248 = vmatpush1.bf16.msra.mxu0 %v3689
        %5249 = vmatprep.subr.bf16.mxu0 %v3692
        %5250 = vmatpush1.bf16.msra.mxu0 %v3691
        %5251 = vmatprep.subr.bf16.mxu0 %v3694
        %5252 = vmatpush1.bf16.msra.mxu0 %v3693
        %5253 = vmatprep.subr.bf16.mxu0 %v3696
        %5254 = vmatpush1.bf16.msra.mxu0 %v3695
        %5255 = vmatprep.subr.bf16.mxu0 %v3698
        %5256 = vmatpush1.bf16.msra.mxu0 %v3697
        %5257 = vmatprep.subr.bf16.mxu0 %v3700
        %5258 = vmatpush1.bf16.msra.mxu0 %v3699
        %5259 = vmatprep.mubr.bf16.mxu0 %v1140
        %5260 = vmatmul.mubr.bf16.gmra.mrb[0].mxu0 %v1139
        %v5261 = vpop.f32.mrb[0].mxu0
        %v5262 = vadd.f32 %v5221, %v5261
        %v5263 = vpop.f32.mrb[0].mxu0
        %v5264 = vadd.f32 %v5223, %v5263
        %v5265 = vpop.f32.mrb[0].mxu0
        %v5266 = vpop.f32.mrb[0].mxu0
        %5267 = vdwg.mxu0
        %5268 = vmatprep.subr.bf16.mxu0 %v3702
        %5269 = vmatpush1.bf16.msra.mxu0 %v3701
        %5270 = vmatprep.subr.bf16.mxu0 %v3704
        %5271 = vmatpush1.bf16.msra.mxu0 %v3703
        %5272 = vmatprep.subr.bf16.mxu0 %v3706
        %5273 = vmatpush1.bf16.msra.mxu0 %v3705
        %5274 = vmatprep.subr.bf16.mxu0 %v3708
        %5275 = vmatpush1.bf16.msra.mxu0 %v3707
        %5276 = vmatprep.subr.bf16.mxu0 %v3710
        %5277 = vmatpush1.bf16.msra.mxu0 %v3709
        %5278 = vmatprep.subr.bf16.mxu0 %v3712
        %5279 = vmatpush1.bf16.msra.mxu0 %v3711
        %5280 = vmatprep.subr.bf16.mxu0 %v3714
        %5281 = vmatpush1.bf16.msra.mxu0 %v3713
        %5282 = vmatprep.subr.bf16.mxu0 %v3716
        %5283 = vmatpush1.bf16.msra.mxu0 %v3715
        %5284 = vmatprep.subr.bf16.mxu0 %v3718
        %5285 = vmatpush1.bf16.msra.mxu0 %v3717
        %5286 = vmatprep.subr.bf16.mxu0 %v3720
        %5287 = vmatpush1.bf16.msra.mxu0 %v3719
        %5288 = vmatprep.subr.bf16.mxu0 %v3722
        %5289 = vmatpush1.bf16.msra.mxu0 %v3721
        %5290 = vmatprep.subr.bf16.mxu0 %v3724
        %5291 = vmatpush1.bf16.msra.mxu0 %v3723
        %5292 = vmatprep.subr.bf16.mxu0 %v3726
        %5293 = vmatpush1.bf16.msra.mxu0 %v3725
        %5294 = vmatprep.subr.bf16.mxu0 %v3728
        %5295 = vmatpush1.bf16.msra.mxu0 %v3727
        %5296 = vmatprep.subr.bf16.mxu0 %v3730
        %5297 = vmatpush1.bf16.msra.mxu0 %v3729
        %5298 = vmatprep.subr.bf16.mxu0 %v3732
        %5299 = vmatpush1.bf16.msra.mxu0 %v3731
        %5300 = vmatprep.mubr.bf16.mxu0 %v1142
        %5301 = vmatmul.mubr.bf16.gmra.mrb[0].mxu0 %v1141
        %v5302 = vpop.f32.mrb[0].mxu0
        %v5303 = vadd.f32 %v5262, %v5302
        %v5304 = vpop.f32.mrb[0].mxu0
        %v5305 = vadd.f32 %v5264, %v5304
        %v5306 = vpop.f32.mrb[0].mxu0
        %v5307 = vpop.f32.mrb[0].mxu0
        %5308 = vdwg.mxu0
        %5309 = vmatprep.subr.bf16.mxu0 %v3734
        %5310 = vmatpush1.bf16.msra.mxu0 %v3733
        %5311 = vmatprep.subr.bf16.mxu0 %v3736
        %5312 = vmatpush1.bf16.msra.mxu0 %v3735
        %5313 = vmatprep.subr.bf16.mxu0 %v3738
        %5314 = vmatpush1.bf16.msra.mxu0 %v3737
        %5315 = vmatprep.subr.bf16.mxu0 %v3740
        %5316 = vmatpush1.bf16.msra.mxu0 %v3739
        %5317 = vmatprep.subr.bf16.mxu0 %v3742
        %5318 = vmatpush1.bf16.msra.mxu0 %v3741
        %5319 = vmatprep.subr.bf16.mxu0 %v3744
        %5320 = vmatpush1.bf16.msra.mxu0 %v3743
        %5321 = vmatprep.subr.bf16.mxu0 %v3746
        %5322 = vmatpush1.bf16.msra.mxu0 %v3745
        %5323 = vmatprep.subr.bf16.mxu0 %v3748
        %5324 = vmatpush1.bf16.msra.mxu0 %v3747
        %5325 = vmatprep.subr.bf16.mxu0 %v3750
        %5326 = vmatpush1.bf16.msra.mxu0 %v3749
        %5327 = vmatprep.subr.bf16.mxu0 %v3752
        %5328 = vmatpush1.bf16.msra.mxu0 %v3751
        %5329 = vmatprep.subr.bf16.mxu0 %v3754
        %5330 = vmatpush1.bf16.msra.mxu0 %v3753
        %5331 = vmatprep.subr.bf16.mxu0 %v3756
        %5332 = vmatpush1.bf16.msra.mxu0 %v3755
        %5333 = vmatprep.subr.bf16.mxu0 %v3758
        %5334 = vmatpush1.bf16.msra.mxu0 %v3757
        %5335 = vmatprep.subr.bf16.mxu0 %v3760
        %5336 = vmatpush1.bf16.msra.mxu0 %v3759
        %5337 = vmatprep.subr.bf16.mxu0 %v3762
        %5338 = vmatpush1.bf16.msra.mxu0 %v3761
        %5339 = vmatprep.subr.bf16.mxu0 %v3764
        %5340 = vmatpush1.bf16.msra.mxu0 %v3763
        %5341 = vmatprep.mubr.bf16.mxu0 %v1144
        %5342 = vmatmul.mubr.bf16.gmra.mrb[0].mxu0 %v1143
        %v5343 = vpop.f32.mrb[0].mxu0
        %v5344 = vadd.f32 %v5303, %v5343
        %v5345 = vpop.f32.mrb[0].mxu0
        %v5346 = vadd.f32 %v5305, %v5345
        %v5347 = vpop.f32.mrb[0].mxu0
        %v5348 = vpop.f32.mrb[0].mxu0
        %5349 = vdwg.mxu0
        %5350 = vmatprep.subr.bf16.mxu0 %v3766
        %5351 = vmatpush1.bf16.msra.mxu0 %v3765
        %5352 = vmatprep.subr.bf16.mxu0 %v3768
        %5353 = vmatpush1.bf16.msra.mxu0 %v3767
        %5354 = vmatprep.subr.bf16.mxu0 %v3770
        %5355 = vmatpush1.bf16.msra.mxu0 %v3769
        %5356 = vmatprep.subr.bf16.mxu0 %v3772
        %5357 = vmatpush1.bf16.msra.mxu0 %v3771
        %5358 = vmatprep.subr.bf16.mxu0 %v3774
        %5359 = vmatpush1.bf16.msra.mxu0 %v3773
        %5360 = vmatprep.subr.bf16.mxu0 %v3776
        %5361 = vmatpush1.bf16.msra.mxu0 %v3775
        %5362 = vmatprep.subr.bf16.mxu0 %v3778
        %5363 = vmatpush1.bf16.msra.mxu0 %v3777
        %5364 = vmatprep.subr.bf16.mxu0 %v3780
        %5365 = vmatpush1.bf16.msra.mxu0 %v3779
        %5366 = vmatprep.subr.bf16.mxu0 %v3782
        %5367 = vmatpush1.bf16.msra.mxu0 %v3781
        %5368 = vmatprep.subr.bf16.mxu0 %v3784
        %5369 = vmatpush1.bf16.msra.mxu0 %v3783
        %5370 = vmatprep.subr.bf16.mxu0 %v3786
        %5371 = vmatpush1.bf16.msra.mxu0 %v3785
        %5372 = vmatprep.subr.bf16.mxu0 %v3788
        %5373 = vmatpush1.bf16.msra.mxu0 %v3787
        %5374 = vmatprep.subr.bf16.mxu0 %v3790
        %5375 = vmatpush1.bf16.msra.mxu0 %v3789
        %5376 = vmatprep.subr.bf16.mxu0 %v3792
        %5377 = vmatpush1.bf16.msra.mxu0 %v3791
        %5378 = vmatprep.subr.bf16.mxu0 %v3794
        %5379 = vmatpush1.bf16.msra.mxu0 %v3793
        %5380 = vmatprep.subr.bf16.mxu0 %v3796
        %5381 = vmatpush1.bf16.msra.mxu0 %v3795
        %5382 = vmatprep.mubr.bf16.mxu0 %v1146
        %5383 = vmatmul.mubr.bf16.gmra.mrb[0].mxu0 %v1145
        %v5384 = vpop.f32.mrb[0].mxu0
        %v5385 = vadd.f32 %v5344, %v5384
        %v5386 = vpop.f32.mrb[0].mxu0
        %v5387 = vadd.f32 %v5346, %v5386
        %v5388 = vpop.f32.mrb[0].mxu0
        %v5389 = vpop.f32.mrb[0].mxu0
        %5390 = vdwg.mxu0
        %5391 = vmatprep.subr.bf16.mxu0 %v3798
        %5392 = vmatpush1.bf16.msra.mxu0 %v3797
        %5393 = vmatprep.subr.bf16.mxu0 %v3800
        %5394 = vmatpush1.bf16.msra.mxu0 %v3799
        %5395 = vmatprep.subr.bf16.mxu0 %v3802
        %5396 = vmatpush1.bf16.msra.mxu0 %v3801
        %5397 = vmatprep.subr.bf16.mxu0 %v3804
        %5398 = vmatpush1.bf16.msra.mxu0 %v3803
        %5399 = vmatprep.subr.bf16.mxu0 %v3806
        %5400 = vmatpush1.bf16.msra.mxu0 %v3805
        %5401 = vmatprep.subr.bf16.mxu0 %v3808
        %5402 = vmatpush1.bf16.msra.mxu0 %v3807
        %5403 = vmatprep.subr.bf16.mxu0 %v3810
        %5404 = vmatpush1.bf16.msra.mxu0 %v3809
        %5405 = vmatprep.subr.bf16.mxu0 %v3812
        %5406 = vmatpush1.bf16.msra.mxu0 %v3811
        %5407 = vmatprep.subr.bf16.mxu0 %v3814
        %5408 = vmatpush1.bf16.msra.mxu0 %v3813
        %5409 = vmatprep.subr.bf16.mxu0 %v3816
        %5410 = vmatpush1.bf16.msra.mxu0 %v3815
        %5411 = vmatprep.subr.bf16.mxu0 %v3818
        %5412 = vmatpush1.bf16.msra.mxu0 %v3817
        %5413 = vmatprep.subr.bf16.mxu0 %v3820
        %5414 = vmatpush1.bf16.msra.mxu0 %v3819
        %5415 = vmatprep.subr.bf16.mxu0 %v3822
        %5416 = vmatpush1.bf16.msra.mxu0 %v3821
        %5417 = vmatprep.subr.bf16.mxu0 %v3824
        %5418 = vmatpush1.bf16.msra.mxu0 %v3823
        %5419 = vmatprep.subr.bf16.mxu0 %v3826
        %5420 = vmatpush1.bf16.msra.mxu0 %v3825
        %5421 = vmatprep.subr.bf16.mxu0 %v3828
        %5422 = vmatpush1.bf16.msra.mxu0 %v3827
        %5423 = vmatprep.mubr.bf16.mxu0 %v1148
        %5424 = vmatmul.mubr.bf16.gmra.mrb[0].mxu0 %v1147
        %v5425 = vpop.f32.mrb[0].mxu0
        %v5426 = vadd.f32 %v5385, %v5425
        %v5427 = vpop.f32.mrb[0].mxu0
        %v5428 = vadd.f32 %v5387, %v5427
        %v5429 = vpop.f32.mrb[0].mxu0
        %v5430 = vpop.f32.mrb[0].mxu0
        %5431 = vdwg.mxu0
        %5432 = vmatprep.subr.bf16.mxu0 %v3830
        %5433 = vmatpush1.bf16.msra.mxu0 %v3829
        %5434 = vmatprep.subr.bf16.mxu0 %v3832
        %5435 = vmatpush1.bf16.msra.mxu0 %v3831
        %5436 = vmatprep.subr.bf16.mxu0 %v3834
        %5437 = vmatpush1.bf16.msra.mxu0 %v3833
        %5438 = vmatprep.subr.bf16.mxu0 %v3836
        %5439 = vmatpush1.bf16.msra.mxu0 %v3835
        %5440 = vmatprep.subr.bf16.mxu0 %v3838
        %5441 = vmatpush1.bf16.msra.mxu0 %v3837
        %5442 = vmatprep.subr.bf16.mxu0 %v3840
        %5443 = vmatpush1.bf16.msra.mxu0 %v3839
        %5444 = vmatprep.subr.bf16.mxu0 %v3842
        %5445 = vmatpush1.bf16.msra.mxu0 %v3841
        %5446 = vmatprep.subr.bf16.mxu0 %v3844
        %5447 = vmatpush1.bf16.msra.mxu0 %v3843
        %5448 = vmatprep.subr.bf16.mxu0 %v3846
        %5449 = vmatpush1.bf16.msra.mxu0 %v3845
        %5450 = vmatprep.subr.bf16.mxu0 %v3848
        %5451 = vmatpush1.bf16.msra.mxu0 %v3847
        %5452 = vmatprep.subr.bf16.mxu0 %v3850
        %5453 = vmatpush1.bf16.msra.mxu0 %v3849
        %5454 = vmatprep.subr.bf16.mxu0 %v3852
        %5455 = vmatpush1.bf16.msra.mxu0 %v3851
        %5456 = vmatprep.subr.bf16.mxu0 %v3854
        %5457 = vmatpush1.bf16.msra.mxu0 %v3853
        %5458 = vmatprep.subr.bf16.mxu0 %v3856
        %5459 = vmatpush1.bf16.msra.mxu0 %v3855
        %5460 = vmatprep.subr.bf16.mxu0 %v3858
        %5461 = vmatpush1.bf16.msra.mxu0 %v3857
        %5462 = vmatprep.subr.bf16.mxu0 %v3860
        %5463 = vmatpush1.bf16.msra.mxu0 %v3859
        %5464 = vmatprep.mubr.bf16.mxu0 %v1150
        %5465 = vmatmul.mubr.bf16.gmra.mrb[0].mxu0 %v1149
        %v5466 = vpop.f32.mrb[0].mxu0
        %v5467 = vadd.f32 %v5426, %v5466
        %v5468 = vpop.f32.mrb[0].mxu0
        %v5469 = vadd.f32 %v5428, %v5468
        %v5470 = vpop.f32.mrb[0].mxu0
        %v5471 = vpop.f32.mrb[0].mxu0
        %5472 = vdwg.mxu0
        %5473 = vmatprep.subr.bf16.mxu0 %v3862
        %5474 = vmatpush1.bf16.msra.mxu0 %v3861
        %5475 = vmatprep.subr.bf16.mxu0 %v3864
        %5476 = vmatpush1.bf16.msra.mxu0 %v3863
        %5477 = vmatprep.subr.bf16.mxu0 %v3866
        %5478 = vmatpush1.bf16.msra.mxu0 %v3865
        %5479 = vmatprep.subr.bf16.mxu0 %v3868
        %5480 = vmatpush1.bf16.msra.mxu0 %v3867
        %5481 = vmatprep.subr.bf16.mxu0 %v3870
        %5482 = vmatpush1.bf16.msra.mxu0 %v3869
        %5483 = vmatprep.subr.bf16.mxu0 %v3872
        %5484 = vmatpush1.bf16.msra.mxu0 %v3871
        %5485 = vmatprep.subr.bf16.mxu0 %v3874
        %5486 = vmatpush1.bf16.msra.mxu0 %v3873
        %5487 = vmatprep.subr.bf16.mxu0 %v3876
        %5488 = vmatpush1.bf16.msra.mxu0 %v3875
        %5489 = vmatprep.subr.bf16.mxu0 %v3878
        %5490 = vmatpush1.bf16.msra.mxu0 %v3877
        %5491 = vmatprep.subr.bf16.mxu0 %v3880
        %5492 = vmatpush1.bf16.msra.mxu0 %v3879
        %5493 = vmatprep.subr.bf16.mxu0 %v3882
        %5494 = vmatpush1.bf16.msra.mxu0 %v3881
        %5495 = vmatprep.subr.bf16.mxu0 %v3884
        %5496 = vmatpush1.bf16.msra.mxu0 %v3883
        %5497 = vmatprep.subr.bf16.mxu0 %v3886
        %5498 = vmatpush1.bf16.msra.mxu0 %v3885
        %5499 = vmatprep.subr.bf16.mxu0 %v3888
        %5500 = vmatpush1.bf16.msra.mxu0 %v3887
        %5501 = vmatprep.subr.bf16.mxu0 %v3890
        %5502 = vmatpush1.bf16.msra.mxu0 %v3889
        %5503 = vmatprep.subr.bf16.mxu0 %v3892
        %5504 = vmatpush1.bf16.msra.mxu0 %v3891
        %5505 = vmatprep.mubr.bf16.mxu0 %v1152
        %5506 = vmatmul.mubr.bf16.gmra.mrb[0].mxu0 %v1151
        %v5507 = vpop.f32.mrb[0].mxu0
        %v5508 = vadd.f32 %v5467, %v5507
        %v5509 = vpop.f32.mrb[0].mxu0
        %v5510 = vadd.f32 %v5469, %v5509
        %v5511 = vpop.f32.mrb[0].mxu0
        %v5512 = vpop.f32.mrb[0].mxu0
        %5513 = vdwg.mxu0
        %5514 = vmatprep.subr.bf16.mxu0 %v3894
        %5515 = vmatpush1.bf16.msra.mxu0 %v3893
        %5516 = vmatprep.subr.bf16.mxu0 %v3896
        %5517 = vmatpush1.bf16.msra.mxu0 %v3895
        %5518 = vmatprep.subr.bf16.mxu0 %v3898
        %5519 = vmatpush1.bf16.msra.mxu0 %v3897
        %5520 = vmatprep.subr.bf16.mxu0 %v3900
        %5521 = vmatpush1.bf16.msra.mxu0 %v3899
        %5522 = vmatprep.subr.bf16.mxu0 %v3902
        %5523 = vmatpush1.bf16.msra.mxu0 %v3901
        %5524 = vmatprep.subr.bf16.mxu0 %v3904
        %5525 = vmatpush1.bf16.msra.mxu0 %v3903
        %5526 = vmatprep.subr.bf16.mxu0 %v3906
        %5527 = vmatpush1.bf16.msra.mxu0 %v3905
        %5528 = vmatprep.subr.bf16.mxu0 %v3908
        %5529 = vmatpush1.bf16.msra.mxu0 %v3907
        %5530 = vmatprep.subr.bf16.mxu0 %v3910
        %5531 = vmatpush1.bf16.msra.mxu0 %v3909
        %5532 = vmatprep.subr.bf16.mxu0 %v3912
        %5533 = vmatpush1.bf16.msra.mxu0 %v3911
        %5534 = vmatprep.subr.bf16.mxu0 %v3914
        %5535 = vmatpush1.bf16.msra.mxu0 %v3913
        %5536 = vmatprep.subr.bf16.mxu0 %v3916
        %5537 = vmatpush1.bf16.msra.mxu0 %v3915
        %5538 = vmatprep.subr.bf16.mxu0 %v3918
        %5539 = vmatpush1.bf16.msra.mxu0 %v3917
        %5540 = vmatprep.subr.bf16.mxu0 %v3920
        %5541 = vmatpush1.bf16.msra.mxu0 %v3919
        %5542 = vmatprep.subr.bf16.mxu0 %v3922
        %5543 = vmatpush1.bf16.msra.mxu0 %v3921
        %5544 = vmatprep.subr.bf16.mxu0 %v3924
        %5545 = vmatpush1.bf16.msra.mxu0 %v3923
        %5546 = vmatprep.mubr.bf16.mxu0 %v1154
        %5547 = vmatmul.mubr.bf16.gmra.mrb[0].mxu0 %v1153
        %v5548 = vpop.f32.mrb[0].mxu0
        %v5549 = vadd.f32 %v5508, %v5548
        %v5550 = vpop.f32.mrb[0].mxu0
        %v5551 = vadd.f32 %v5510, %v5550
        %v5552 = vpop.f32.mrb[0].mxu0
        %v5553 = vpop.f32.mrb[0].mxu0
        %5554 = vdwg.mxu0
        %5555 = vmatprep.subr.bf16.mxu0 %v3926
        %5556 = vmatpush1.bf16.msra.mxu0 %v3925
        %5557 = vmatprep.subr.bf16.mxu0 %v3928
        %5558 = vmatpush1.bf16.msra.mxu0 %v3927
        %5559 = vmatprep.subr.bf16.mxu0 %v3930
        %5560 = vmatpush1.bf16.msra.mxu0 %v3929
        %5561 = vmatprep.subr.bf16.mxu0 %v3932
        %5562 = vmatpush1.bf16.msra.mxu0 %v3931
        %5563 = vmatprep.subr.bf16.mxu0 %v3934
        %5564 = vmatpush1.bf16.msra.mxu0 %v3933
        %5565 = vmatprep.subr.bf16.mxu0 %v3936
        %5566 = vmatpush1.bf16.msra.mxu0 %v3935
        %5567 = vmatprep.subr.bf16.mxu0 %v3938
        %5568 = vmatpush1.bf16.msra.mxu0 %v3937
        %5569 = vmatprep.subr.bf16.mxu0 %v3940
        %5570 = vmatpush1.bf16.msra.mxu0 %v3939
        %5571 = vmatprep.subr.bf16.mxu0 %v3942
        %5572 = vmatpush1.bf16.msra.mxu0 %v3941
        %5573 = vmatprep.subr.bf16.mxu0 %v3944
        %5574 = vmatpush1.bf16.msra.mxu0 %v3943
        %5575 = vmatprep.subr.bf16.mxu0 %v3946
        %5576 = vmatpush1.bf16.msra.mxu0 %v3945
        %5577 = vmatprep.subr.bf16.mxu0 %v3948
        %5578 = vmatpush1.bf16.msra.mxu0 %v3947
        %5579 = vmatprep.subr.bf16.mxu0 %v3950
        %5580 = vmatpush1.bf16.msra.mxu0 %v3949
        %5581 = vmatprep.subr.bf16.mxu0 %v3952
        %5582 = vmatpush1.bf16.msra.mxu0 %v3951
        %5583 = vmatprep.subr.bf16.mxu0 %v3954
        %5584 = vmatpush1.bf16.msra.mxu0 %v3953
        %5585 = vmatprep.subr.bf16.mxu0 %v3956
        %5586 = vmatpush1.bf16.msra.mxu0 %v3955
        %5587 = vmatprep.mubr.bf16.mxu0 %v1156
        %5588 = vmatmul.mubr.bf16.gmra.mrb[0].mxu0 %v1155
        %v5589 = vpop.f32.mrb[0].mxu0
        %v5590 = vadd.f32 %v5549, %v5589
        %v5591 = vpop.f32.mrb[0].mxu0
        %v5592 = vadd.f32 %v5551, %v5591
        %v5593 = vpop.f32.mrb[0].mxu0
        %v5594 = vpop.f32.mrb[0].mxu0
        %5595 = vdwg.mxu0
        %5596 = vmatprep.subr.bf16.mxu0 %v3958
        %5597 = vmatpush1.bf16.msra.mxu0 %v3957
        %5598 = vmatprep.subr.bf16.mxu0 %v3960
        %5599 = vmatpush1.bf16.msra.mxu0 %v3959
        %5600 = vmatprep.subr.bf16.mxu0 %v3962
        %5601 = vmatpush1.bf16.msra.mxu0 %v3961
        %5602 = vmatprep.subr.bf16.mxu0 %v3964
        %5603 = vmatpush1.bf16.msra.mxu0 %v3963
        %5604 = vmatprep.subr.bf16.mxu0 %v3966
        %5605 = vmatpush1.bf16.msra.mxu0 %v3965
        %5606 = vmatprep.subr.bf16.mxu0 %v3968
        %5607 = vmatpush1.bf16.msra.mxu0 %v3967
        %5608 = vmatprep.subr.bf16.mxu0 %v3970
        %5609 = vmatpush1.bf16.msra.mxu0 %v3969
        %5610 = vmatprep.subr.bf16.mxu0 %v3972
        %5611 = vmatpush1.bf16.msra.mxu0 %v3971
        %5612 = vmatprep.subr.bf16.mxu0 %v3974
        %5613 = vmatpush1.bf16.msra.mxu0 %v3973
        %5614 = vmatprep.subr.bf16.mxu0 %v3976
        %5615 = vmatpush1.bf16.msra.mxu0 %v3975
        %5616 = vmatprep.subr.bf16.mxu0 %v3978
        %5617 = vmatpush1.bf16.msra.mxu0 %v3977
        %5618 = vmatprep.subr.bf16.mxu0 %v3980
        %5619 = vmatpush1.bf16.msra.mxu0 %v3979
        %5620 = vmatprep.subr.bf16.mxu0 %v3982
        %5621 = vmatpush1.bf16.msra.mxu0 %v3981
        %5622 = vmatprep.subr.bf16.mxu0 %v3984
        %5623 = vmatpush1.bf16.msra.mxu0 %v3983
        %5624 = vmatprep.subr.bf16.mxu0 %v3986
        %5625 = vmatpush1.bf16.msra.mxu0 %v3985
        %5626 = vmatprep.subr.bf16.mxu0 %v3988
        %5627 = vmatpush1.bf16.msra.mxu0 %v3987
        %5628 = vmatprep.mubr.bf16.mxu0 %v1158
        %5629 = vmatmul.mubr.bf16.gmra.mrb[0].mxu0 %v1157
        %v5630 = vpop.f32.mrb[0].mxu0
        %v5631 = vadd.f32 %v5590, %v5630
        %v5632 = vpop.f32.mrb[0].mxu0
        %v5633 = vadd.f32 %v5592, %v5632
        %v5634 = vpop.f32.mrb[0].mxu0
        %v5635 = vpop.f32.mrb[0].mxu0
        %5636 = vdwg.mxu0
        %5637 = vmatprep.subr.bf16.mxu0 %v3990
        %5638 = vmatpush1.bf16.msra.mxu0 %v3989
        %5639 = vmatprep.subr.bf16.mxu0 %v3992
        %5640 = vmatpush1.bf16.msra.mxu0 %v3991
        %5641 = vmatprep.subr.bf16.mxu0 %v3994
        %5642 = vmatpush1.bf16.msra.mxu0 %v3993
        %5643 = vmatprep.subr.bf16.mxu0 %v3996
        %5644 = vmatpush1.bf16.msra.mxu0 %v3995
        %5645 = vmatprep.subr.bf16.mxu0 %v3998
        %5646 = vmatpush1.bf16.msra.mxu0 %v3997
        %5647 = vmatprep.subr.bf16.mxu0 %v4000
        %5648 = vmatpush1.bf16.msra.mxu0 %v3999
        %5649 = vmatprep.subr.bf16.mxu0 %v4002
        %5650 = vmatpush1.bf16.msra.mxu0 %v4001
        %5651 = vmatprep.subr.bf16.mxu0 %v4004
        %5652 = vmatpush1.bf16.msra.mxu0 %v4003
        %5653 = vmatprep.subr.bf16.mxu0 %v4006
        %5654 = vmatpush1.bf16.msra.mxu0 %v4005
        %5655 = vmatprep.subr.bf16.mxu0 %v4008
        %5656 = vmatpush1.bf16.msra.mxu0 %v4007
        %5657 = vmatprep.subr.bf16.mxu0 %v4010
        %5658 = vmatpush1.bf16.msra.mxu0 %v4009
        %5659 = vmatprep.subr.bf16.mxu0 %v4012
        %5660 = vmatpush1.bf16.msra.mxu0 %v4011
        %5661 = vmatprep.subr.bf16.mxu0 %v4014
        %5662 = vmatpush1.bf16.msra.mxu0 %v4013
        %5663 = vmatprep.subr.bf16.mxu0 %v4016
        %5664 = vmatpush1.bf16.msra.mxu0 %v4015
        %5665 = vmatprep.subr.bf16.mxu0 %v4018
        %5666 = vmatpush1.bf16.msra.mxu0 %v4017
        %5667 = vmatprep.subr.bf16.mxu0 %v4020
        %5668 = vmatpush1.bf16.msra.mxu0 %v4019
        %5669 = vmatprep.mubr.bf16.mxu0 %v1160
        %5670 = vmatmul.mubr.bf16.gmra.mrb[0].mxu0 %v1159
        %v5671 = vpop.f32.mrb[0].mxu0
        %v5672 = vadd.f32 %v5631, %v5671
        %v5673 = vpop.f32.mrb[0].mxu0
        %v5674 = vadd.f32 %v5633, %v5673
        %v5675 = vpop.f32.mrb[0].mxu0
        %v5676 = vpop.f32.mrb[0].mxu0
        %5677 = vdwg.mxu0
        %5678 = vmatprep.subr.bf16.mxu0 %v4022
        %5679 = vmatpush1.bf16.msra.mxu0 %v4021
        %5680 = vmatprep.subr.bf16.mxu0 %v4024
        %5681 = vmatpush1.bf16.msra.mxu0 %v4023
        %5682 = vmatprep.subr.bf16.mxu0 %v4026
        %5683 = vmatpush1.bf16.msra.mxu0 %v4025
        %5684 = vmatprep.subr.bf16.mxu0 %v4028
        %5685 = vmatpush1.bf16.msra.mxu0 %v4027
        %5686 = vmatprep.subr.bf16.mxu0 %v4030
        %5687 = vmatpush1.bf16.msra.mxu0 %v4029
        %5688 = vmatprep.subr.bf16.mxu0 %v4032
        %5689 = vmatpush1.bf16.msra.mxu0 %v4031
        %5690 = vmatprep.subr.bf16.mxu0 %v4034
        %5691 = vmatpush1.bf16.msra.mxu0 %v4033
        %5692 = vmatprep.subr.bf16.mxu0 %v4036
        %5693 = vmatpush1.bf16.msra.mxu0 %v4035
        %5694 = vmatprep.subr.bf16.mxu0 %v4038
        %5695 = vmatpush1.bf16.msra.mxu0 %v4037
        %5696 = vmatprep.subr.bf16.mxu0 %v4040
        %5697 = vmatpush1.bf16.msra.mxu0 %v4039
        %5698 = vmatprep.subr.bf16.mxu0 %v4042
        %5699 = vmatpush1.bf16.msra.mxu0 %v4041
        %5700 = vmatprep.subr.bf16.mxu0 %v4044
        %5701 = vmatpush1.bf16.msra.mxu0 %v4043
        %5702 = vmatprep.subr.bf16.mxu0 %v4046
        %5703 = vmatpush1.bf16.msra.mxu0 %v4045
        %5704 = vmatprep.subr.bf16.mxu0 %v4048
        %5705 = vmatpush1.bf16.msra.mxu0 %v4047
        %5706 = vmatprep.subr.bf16.mxu0 %v4050
        %5707 = vmatpush1.bf16.msra.mxu0 %v4049
        %5708 = vmatprep.subr.bf16.mxu0 %v4052
        %5709 = vmatpush1.bf16.msra.mxu0 %v4051
        %5710 = vmatprep.mubr.bf16.mxu0 %v1162
        %5711 = vmatmul.mubr.bf16.gmra.mrb[0].mxu0 %v1161
        %v5712 = vpop.f32.mrb[0].mxu0
        %v5713 = vadd.f32 %v5672, %v5712
        %v5714 = vpop.f32.mrb[0].mxu0
        %v5715 = vadd.f32 %v5674, %v5714
        %v5716 = vpop.f32.mrb[0].mxu0
        %v5717 = vpop.f32.mrb[0].mxu0
        %5718 = vdwg.mxu0
        %5719 = vmatprep.subr.bf16.mxu0 %v4054
        %5720 = vmatpush1.bf16.msra.mxu0 %v4053
        %5721 = vmatprep.subr.bf16.mxu0 %v4056
        %5722 = vmatpush1.bf16.msra.mxu0 %v4055
        %5723 = vmatprep.subr.bf16.mxu0 %v4058
        %5724 = vmatpush1.bf16.msra.mxu0 %v4057
        %5725 = vmatprep.subr.bf16.mxu0 %v4060
        %5726 = vmatpush1.bf16.msra.mxu0 %v4059
        %5727 = vmatprep.subr.bf16.mxu0 %v4062
        %5728 = vmatpush1.bf16.msra.mxu0 %v4061
        %5729 = vmatprep.subr.bf16.mxu0 %v4064
        %5730 = vmatpush1.bf16.msra.mxu0 %v4063
        %5731 = vmatprep.subr.bf16.mxu0 %v4066
        %5732 = vmatpush1.bf16.msra.mxu0 %v4065
        %5733 = vmatprep.subr.bf16.mxu0 %v4068
        %5734 = vmatpush1.bf16.msra.mxu0 %v4067
        %5735 = vmatprep.subr.bf16.mxu0 %v4070
        %5736 = vmatpush1.bf16.msra.mxu0 %v4069
        %5737 = vmatprep.subr.bf16.mxu0 %v4072
        %5738 = vmatpush1.bf16.msra.mxu0 %v4071
        %5739 = vmatprep.subr.bf16.mxu0 %v4074
        %5740 = vmatpush1.bf16.msra.mxu0 %v4073
        %5741 = vmatprep.subr.bf16.mxu0 %v4076
        %5742 = vmatpush1.bf16.msra.mxu0 %v4075
        %5743 = vmatprep.subr.bf16.mxu0 %v4078
        %5744 = vmatpush1.bf16.msra.mxu0 %v4077
        %5745 = vmatprep.subr.bf16.mxu0 %v4080
        %5746 = vmatpush1.bf16.msra.mxu0 %v4079
        %5747 = vmatprep.subr.bf16.mxu0 %v4082
        %5748 = vmatpush1.bf16.msra.mxu0 %v4081
        %5749 = vmatprep.subr.bf16.mxu0 %v4084
        %5750 = vmatpush1.bf16.msra.mxu0 %v4083
        %5751 = vmatprep.mubr.bf16.mxu0 %v1164
        %5752 = vmatmul.mubr.bf16.gmra.mrb[0].mxu0 %v1163
        %v5753 = vpop.f32.mrb[0].mxu0
        %v5754 = vadd.f32 %v5713, %v5753
        %v5755 = vpop.f32.mrb[0].mxu0
        %v5756 = vadd.f32 %v5715, %v5755
        %v5757 = vpop.f32.mrb[0].mxu0
        %v5758 = vpop.f32.mrb[0].mxu0
        %5759 = vdwg.mxu0
        %5760 = vmatprep.subr.bf16.mxu0 %v4086
        %5761 = vmatpush1.bf16.msra.mxu0 %v4085
        %5762 = vmatprep.subr.bf16.mxu0 %v4088
        %5763 = vmatpush1.bf16.msra.mxu0 %v4087
        %5764 = vmatprep.subr.bf16.mxu0 %v4090
        %5765 = vmatpush1.bf16.msra.mxu0 %v4089
        %5766 = vmatprep.subr.bf16.mxu0 %v4092
        %5767 = vmatpush1.bf16.msra.mxu0 %v4091
        %5768 = vmatprep.subr.bf16.mxu0 %v4094
        %5769 = vmatpush1.bf16.msra.mxu0 %v4093
        %5770 = vmatprep.subr.bf16.mxu0 %v4096
        %5771 = vmatpush1.bf16.msra.mxu0 %v4095
        %5772 = vmatprep.subr.bf16.mxu0 %v4098
        %5773 = vmatpush1.bf16.msra.mxu0 %v4097
        %5774 = vmatprep.subr.bf16.mxu0 %v4100
        %5775 = vmatpush1.bf16.msra.mxu0 %v4099
        %5776 = vmatprep.subr.bf16.mxu0 %v4102
        %5777 = vmatpush1.bf16.msra.mxu0 %v4101
        %5778 = vmatprep.subr.bf16.mxu0 %v4104
        %5779 = vmatpush1.bf16.msra.mxu0 %v4103
        %5780 = vmatprep.subr.bf16.mxu0 %v4106
        %5781 = vmatpush1.bf16.msra.mxu0 %v4105
        %5782 = vmatprep.subr.bf16.mxu0 %v4108
        %5783 = vmatpush1.bf16.msra.mxu0 %v4107
        %5784 = vmatprep.subr.bf16.mxu0 %v4110
        %5785 = vmatpush1.bf16.msra.mxu0 %v4109
        %5786 = vmatprep.subr.bf16.mxu0 %v4112
        %5787 = vmatpush1.bf16.msra.mxu0 %v4111
        %5788 = vmatprep.subr.bf16.mxu0 %v4114
        %5789 = vmatpush1.bf16.msra.mxu0 %v4113
        %5790 = vmatprep.subr.bf16.mxu0 %v4116
        %5791 = vmatpush1.bf16.msra.mxu0 %v4115
        %5792 = vmatprep.mubr.bf16.mxu0 %v1166
        %5793 = vmatmul.mubr.bf16.gmra.mrb[0].mxu0 %v1165
        %v5794 = vpop.f32.mrb[0].mxu0
        %v5795 = vadd.f32 %v5754, %v5794
        %v5796 = vpop.f32.mrb[0].mxu0
        %v5797 = vadd.f32 %v5756, %v5796
        %v5798 = vpop.f32.mrb[0].mxu0
        %v5799 = vpop.f32.mrb[0].mxu0
        %5800 = vdwg.mxu0
        %5801 = vmatprep.subr.bf16.mxu0 %v4118
        %5802 = vmatpush1.bf16.msra.mxu0 %v4117
        %5803 = vmatprep.subr.bf16.mxu0 %v4120
        %5804 = vmatpush1.bf16.msra.mxu0 %v4119
        %5805 = vmatprep.subr.bf16.mxu0 %v4122
        %5806 = vmatpush1.bf16.msra.mxu0 %v4121
        %5807 = vmatprep.subr.bf16.mxu0 %v4124
        %5808 = vmatpush1.bf16.msra.mxu0 %v4123
        %5809 = vmatprep.subr.bf16.mxu0 %v4126
        %5810 = vmatpush1.bf16.msra.mxu0 %v4125
        %5811 = vmatprep.subr.bf16.mxu0 %v4128
        %5812 = vmatpush1.bf16.msra.mxu0 %v4127
        %5813 = vmatprep.subr.bf16.mxu0 %v4130
        %5814 = vmatpush1.bf16.msra.mxu0 %v4129
        %5815 = vmatprep.subr.bf16.mxu0 %v4132
        %5816 = vmatpush1.bf16.msra.mxu0 %v4131
        %5817 = vmatprep.subr.bf16.mxu0 %v4134
        %5818 = vmatpush1.bf16.msra.mxu0 %v4133
        %5819 = vmatprep.subr.bf16.mxu0 %v4136
        %5820 = vmatpush1.bf16.msra.mxu0 %v4135
        %5821 = vmatprep.subr.bf16.mxu0 %v4138
        %5822 = vmatpush1.bf16.msra.mxu0 %v4137
        %5823 = vmatprep.subr.bf16.mxu0 %v4140
        %5824 = vmatpush1.bf16.msra.mxu0 %v4139
        %5825 = vmatprep.subr.bf16.mxu0 %v4142
        %5826 = vmatpush1.bf16.msra.mxu0 %v4141
        %5827 = vmatprep.subr.bf16.mxu0 %v4144
        %5828 = vmatpush1.bf16.msra.mxu0 %v4143
        %5829 = vmatprep.subr.bf16.mxu0 %v4146
        %5830 = vmatpush1.bf16.msra.mxu0 %v4145
        %5831 = vmatprep.subr.bf16.mxu0 %v4148
        %5832 = vmatpush1.bf16.msra.mxu0 %v4147
        %5833 = vmatprep.mubr.bf16.mxu0 %v1168
        %5834 = vmatmul.mubr.bf16.gmra.mrb[0].mxu0 %v1167
        %v5835 = vpop.f32.mrb[0].mxu0
        %v5836 = vadd.f32 %v5795, %v5835
        %v5837 = vpop.f32.mrb[0].mxu0
        %v5838 = vadd.f32 %v5797, %v5837
        %v5839 = vpop.f32.mrb[0].mxu0
        %v5840 = vpop.f32.mrb[0].mxu0
        %5841 = vdwg.mxu0
        %5842 = vmatprep.subr.bf16.mxu0 %v4150
        %5843 = vmatpush1.bf16.msra.mxu0 %v4149
        %5844 = vmatprep.subr.bf16.mxu0 %v4152
        %5845 = vmatpush1.bf16.msra.mxu0 %v4151
        %5846 = vmatprep.subr.bf16.mxu0 %v4154
        %5847 = vmatpush1.bf16.msra.mxu0 %v4153
        %5848 = vmatprep.subr.bf16.mxu0 %v4156
        %5849 = vmatpush1.bf16.msra.mxu0 %v4155
        %5850 = vmatprep.subr.bf16.mxu0 %v4158
        %5851 = vmatpush1.bf16.msra.mxu0 %v4157
        %5852 = vmatprep.subr.bf16.mxu0 %v4160
        %5853 = vmatpush1.bf16.msra.mxu0 %v4159
        %5854 = vmatprep.subr.bf16.mxu0 %v4162
        %5855 = vmatpush1.bf16.msra.mxu0 %v4161
        %5856 = vmatprep.subr.bf16.mxu0 %v4164
        %5857 = vmatpush1.bf16.msra.mxu0 %v4163
        %5858 = vmatprep.subr.bf16.mxu0 %v4166
        %5859 = vmatpush1.bf16.msra.mxu0 %v4165
        %5860 = vmatprep.subr.bf16.mxu0 %v4168
        %5861 = vmatpush1.bf16.msra.mxu0 %v4167
        %5862 = vmatprep.subr.bf16.mxu0 %v4170
        %5863 = vmatpush1.bf16.msra.mxu0 %v4169
        %5864 = vmatprep.subr.bf16.mxu0 %v4172
        %5865 = vmatpush1.bf16.msra.mxu0 %v4171
        %5866 = vmatprep.subr.bf16.mxu0 %v4174
        %5867 = vmatpush1.bf16.msra.mxu0 %v4173
        %5868 = vmatprep.subr.bf16.mxu0 %v4176
        %5869 = vmatpush1.bf16.msra.mxu0 %v4175
        %5870 = vmatprep.subr.bf16.mxu0 %v4178
        %5871 = vmatpush1.bf16.msra.mxu0 %v4177
        %5872 = vmatprep.subr.bf16.mxu0 %v4180
        %5873 = vmatpush1.bf16.msra.mxu0 %v4179
        %5874 = vmatprep.mubr.bf16.mxu0 %v1170
        %5875 = vmatmul.mubr.bf16.gmra.mrb[0].mxu0 %v1169
        %v5876 = vpop.f32.mrb[0].mxu0
        %v5877 = vadd.f32 %v5836, %v5876
        %v5878 = vpop.f32.mrb[0].mxu0
        %v5879 = vadd.f32 %v5838, %v5878
        %v5880 = vpop.f32.mrb[0].mxu0
        %v5881 = vpop.f32.mrb[0].mxu0
        %5882 = vdwg.mxu0
        %5883 = vmatprep.subr.bf16.mxu0 %v4182
        %5884 = vmatpush1.bf16.msra.mxu0 %v4181
        %5885 = vmatprep.subr.bf16.mxu0 %v4184
        %5886 = vmatpush1.bf16.msra.mxu0 %v4183
        %5887 = vmatprep.subr.bf16.mxu0 %v4186
        %5888 = vmatpush1.bf16.msra.mxu0 %v4185
        %5889 = vmatprep.subr.bf16.mxu0 %v4188
        %5890 = vmatpush1.bf16.msra.mxu0 %v4187
        %5891 = vmatprep.subr.bf16.mxu0 %v4190
        %5892 = vmatpush1.bf16.msra.mxu0 %v4189
        %5893 = vmatprep.subr.bf16.mxu0 %v4192
        %5894 = vmatpush1.bf16.msra.mxu0 %v4191
        %5895 = vmatprep.subr.bf16.mxu0 %v4194
        %5896 = vmatpush1.bf16.msra.mxu0 %v4193
        %5897 = vmatprep.subr.bf16.mxu0 %v4196
        %5898 = vmatpush1.bf16.msra.mxu0 %v4195
        %5899 = vmatprep.subr.bf16.mxu0 %v4198
        %5900 = vmatpush1.bf16.msra.mxu0 %v4197
        %5901 = vmatprep.subr.bf16.mxu0 %v4200
        %5902 = vmatpush1.bf16.msra.mxu0 %v4199
        %5903 = vmatprep.subr.bf16.mxu0 %v4202
        %5904 = vmatpush1.bf16.msra.mxu0 %v4201
        %5905 = vmatprep.subr.bf16.mxu0 %v4204
        %5906 = vmatpush1.bf16.msra.mxu0 %v4203
        %5907 = vmatprep.subr.bf16.mxu0 %v4206
        %5908 = vmatpush1.bf16.msra.mxu0 %v4205
        %5909 = vmatprep.subr.bf16.mxu0 %v4208
        %5910 = vmatpush1.bf16.msra.mxu0 %v4207
        %5911 = vmatprep.subr.bf16.mxu0 %v4210
        %5912 = vmatpush1.bf16.msra.mxu0 %v4209
        %5913 = vmatprep.subr.bf16.mxu0 %v4212
        %5914 = vmatpush1.bf16.msra.mxu0 %v4211
        %5915 = vmatprep.mubr.bf16.mxu0 %v1172
        %5916 = vmatmul.mubr.bf16.gmra.mrb[0].mxu0 %v1171
        %v5917 = vpop.f32.mrb[0].mxu0
        %v5918 = vadd.f32 %v5877, %v5917
        %v5919 = vpop.f32.mrb[0].mxu0
        %v5920 = vadd.f32 %v5879, %v5919
        %v5921 = vpop.f32.mrb[0].mxu0
        %v5922 = vpop.f32.mrb[0].mxu0
        %5923 = vdwg.mxu0
        %5924 = vmatprep.subr.bf16.mxu0 %v4214
        %5925 = vmatpush1.bf16.msra.mxu0 %v4213
        %5926 = vmatprep.subr.bf16.mxu0 %v4216
        %5927 = vmatpush1.bf16.msra.mxu0 %v4215
        %5928 = vmatprep.subr.bf16.mxu0 %v4218
        %5929 = vmatpush1.bf16.msra.mxu0 %v4217
        %5930 = vmatprep.subr.bf16.mxu0 %v4220
        %5931 = vmatpush1.bf16.msra.mxu0 %v4219
        %5932 = vmatprep.subr.bf16.mxu0 %v4222
        %5933 = vmatpush1.bf16.msra.mxu0 %v4221
        %5934 = vmatprep.subr.bf16.mxu0 %v4224
        %5935 = vmatpush1.bf16.msra.mxu0 %v4223
        %5936 = vmatprep.subr.bf16.mxu0 %v4226
        %5937 = vmatpush1.bf16.msra.mxu0 %v4225
        %5938 = vmatprep.subr.bf16.mxu0 %v4228
        %5939 = vmatpush1.bf16.msra.mxu0 %v4227
        %5940 = vmatprep.subr.bf16.mxu0 0
        %5941 = vmatpush1.bf16.msra.mxu0 0
        %5942 = vmatprep.subr.bf16.mxu0 0
        %5943 = vmatpush1.bf16.msra.mxu0 0
        %5944 = vmatprep.subr.bf16.mxu0 0
        %5945 = vmatpush1.bf16.msra.mxu0 0
        %5946 = vmatprep.subr.bf16.mxu0 0
        %5947 = vmatpush1.bf16.msra.mxu0 0
        %5948 = vmatprep.subr.bf16.mxu0 0
        %5949 = vmatpush1.bf16.msra.mxu0 0
        %5950 = vmatprep.subr.bf16.mxu0 0
        %5951 = vmatpush1.bf16.msra.mxu0 0
        %5952 = vmatprep.subr.bf16.mxu0 0
        %5953 = vmatpush1.bf16.msra.mxu0 0
        %5954 = vmatprep.subr.bf16.mxu0 0
        %5955 = vmatpush1.bf16.msra.mxu0 0
        %5956 = vmatprep.mubr.bf16.mxu0 0
        %5957 = vmatmul.mubr.bf16.gmra.mrb[0].mxu0 %v1173
        %v5958 = vpop.f32.mrb[0].mxu0
        %v5959 = vadd.f32 %v5918, %v5958
        %v5960 = vpop.f32.mrb[0].mxu0
        %v5961 = vadd.f32 %v5920, %v5960
        %v5962 = vpop.f32.mrb[0].mxu0
        %v5963 = vpop.f32.mrb[0].mxu0
        %5964 = vdwg.mxu0
        %v5965 = vadd.f32 %v278, %v5959
        %v5966 = vadd.f32 %v279, %v5961
        %5967 = vst [vmem:[%s269] sm:$0xff] %v5965
        %5968 = vst [vmem:[%s269 + $0x8] sm:$0xff] %v5966
        %p5969 = scmp.eq.s32.totalorder %s25, 1
        // Predicated region
        $region45: #{policy_step.1} parent=31 // pred_check
          %p5970 = pneg %p5969
        $region46: #{policy_step.1} parent=31 // pred_check_branch
          %5972 = sbr.rel (%p5970) target = $region48
        $region47: #{policy_step.1} parent=31 // pred_region
          %v5973 = vld [vmem:[%s269] sm:$0xff]
          %v5974 = vld [vmem:[%s269 + $0x8] sm:$0xff]
          %v5975 = vld [vmem:[%s224] sm:$0x3]
          %v5977 = vlaneseq
          %v5978 = vshrl.u32 %v5977, 7
          %v5979 = vsub.s32 0, %v5978
          %v5980 = vrot.slane %v5975, %v5979
          %v5981 = vlaneseq
          %v5982 = vshrl.u32 %v5981, 7
          %v5983 = vsub.s32 1, %v5982
          %v5984 = vrot.slane %v5975, %v5983
          %v5987 = vadd.f32 %v5973, %v5980
          %v5988 = vadd.f32 %v5974, %v5984
          %v5989 = vmax.f32 %v5987, 0.0
          %v5990 = vmax.f32 %v5988, 0.0
          %5991 = vst [vmem:[%s269] sm:$0xff] %v5989
          %5992 = vst [vmem:[%s269 + $0x8] sm:$0xff] %v5990
        $region48: #{policy_step.1} parent=31 // pred_fallthru
          _
        %s5993 = smul.u32 2, %s24
        %p5994 = scmp.lt.s32.totalorder %s5993, 3
        %s5995 = scalar_select %p5994, %s5993, 3
        %s5996 = smul.addr %s5995, 8
        %s5997 = scalar_lea.vmem %s3, %s5996
        // Predicated region
        $region49: #{policy_step.1} parent=31 // pred_check
          %p5998 = pneg %p130
        $region50: #{policy_step.1} parent=31 // pred_check_branch
          %6000 = sbr.rel (%p5998) target = $region52
        $region51: #{policy_step.1} parent=31 // pred_region
          %s6001 = smul.u32 2, %s24
        $region52: #{policy_step.1} parent=31 // pred_fallthru
          _
      $region32: #{policy_step.1} parent=5 // pred_fallthru
        _
      %p6002 = scmp.le.s32.totalorder 2, %s15
      // Predicated region
      $region53: #{policy_step.1} parent=5 // pred_check
        %p6003 = pneg %p6002
      $region54: #{policy_step.1} parent=5 // pred_check_branch
        %6005 = sbr.rel (%p6003) target = $region56
      $region55: #{policy_step.1} parent=5 // pred_region
        %s6006 = ssub.s32 %s15, 2
        // Predicated region
        $region57: #{policy_step.1} parent=55 // pred_check
          %p6007 = pneg %p136
        $region58: #{policy_step.1} parent=55 // pred_check_branch
          %6009 = sbr.rel (%p6007) target = $region60
        $region59: #{policy_step.1} parent=55 // pred_region
          %s6010 = smul.u32 2, %s26
          %p6011 = scmp.lt.s32.totalorder %s6010, 3
          %s6012 = scalar_select %p6011, %s6010, 3
          %s6013 = smul.addr %s6012, 8
          %s6014 = scalar_lea.vmem %s3, %s6013
        $region60: #{policy_step.1} parent=55 // pred_fallthru
          _
      $region56: #{policy_step.1} parent=5 // pred_fallthru
        _
    $region6: #{policy_step.1} parent=1 // loop_footer
      %s19 = sadd.s32 1, %s15
    $region7: #{policy_step.1} parent=1 // loop_footer_branch
      %14 = sbr.rel target = $region3
    $region8: #{policy_step.1} parent=1 // loop_exit
      _
    %6015 = vsyncpa [#allocation3], 1
    %s6016 = scalar_lea.sflag [#allocation3], 1
    %6017 = vsyncpa %s6016, 1
    %6018 = vsyncpa [#allocation5], 1
    %s6019 = scalar_lea.sflag [#allocation5], 1
    %6020 = vsyncpa %s6019, 1

</llo_original>
